<compile_context>
chip_gen: v7x
topology: tpu7x:2x2x1
jax: 0.10.0
libtpu: 0.0.40
codegen_flags: <defaults>
</compile_context>

<pallas_src>
import functools
import math

import jax
import jax.numpy as jnp
from jax.experimental import pallas as pl
from jax.experimental.pallas import tpu as pltpu


# ----------------------------------------------------------------------------
# Config (small synthetic sizes consistent with SiglipVisionConfig semantics)
# ----------------------------------------------------------------------------
BATCH = 2
NUM_CHANNELS = 3
IMAGE_SIZE = 16
PATCH_SIZE = 8
HIDDEN_SIZE = 32
INTERMEDIATE_SIZE = 64
NUM_LAYERS = 2
NUM_HEADS = 4
HEAD_DIM = HIDDEN_SIZE // NUM_HEADS
LAYER_NORM_EPS = 1e-6

NUM_PATCHES = (IMAGE_SIZE // PATCH_SIZE) ** 2          # tokens per image
PATCH_DIM = NUM_CHANNELS * PATCH_SIZE * PATCH_SIZE     # C*P*P = 192

LANE = 128


def _round_up(x, m):
    return (x + m - 1) // m * m


D_PAD = _round_up(HIDDEN_SIZE, LANE)          # 128
I_PAD = _round_up(INTERMEDIATE_SIZE, LANE)    # 128
PATCH_PAD = _round_up(PATCH_DIM, LANE)        # 256
ROWS = BATCH * NUM_PATCHES                    # 8 rows = one full sublane group
NEG_INF = -1e30


# ----------------------------------------------------------------------------
# In-kernel helpers
# ----------------------------------------------------------------------------
def _layernorm_padded(x, w, b, real_d, eps):
    """LayerNorm over a lane-padded feature dim.

    Invariant: padded lanes of `x` are zero and `w`/`b` are zero there too,
    so sums over the padded lane dim equal sums over the real features and the
    output keeps zeros in the padded lanes.
    """
    s1 = jnp.sum(x, axis=-1, keepdims=True)
    s2 = jnp.sum(x * x, axis=-1, keepdims=True)
    mu = s1 / real_d
    var = s2 / real_d - mu * mu
    return (x - mu) * jax.lax.rsqrt(var + eps) * w + b


def _gelu_tanh(x):
    # gelu_pytorch_tanh
    c = math.sqrt(2.0 / math.pi)
    return 0.5 * x * (1.0 + jnp.tanh(c * (x + 0.044715 * x * x * x)))


# ----------------------------------------------------------------------------
# The single fused kernel: embeddings -> L encoder layers -> final LN + pooler
# ----------------------------------------------------------------------------
def siglip_kernel(patches_ref, patch_w_ref, pos_bias_ref, attn_bias_ref,
                  tok0_ref, head_mask_ref,
                  ln1w_ref, ln1b_ref, wqkv_ref, bqkv_ref, wo_ref, bo_ref,
                  ln2w_ref, ln2b_ref, w1_ref, b1_ref, w2_ref, b2_ref,
                  postw_ref, postb_ref, poolw_ref, poolb_ref,
                  last_ref, pooled_ref,
                  act_ref,
                  *, num_heads, head_dim, real_d, eps):
    l = pl.program_id(0)

    # ---- patch embedding (runs once, fills the VMEM-resident activation) ----
    @pl.when(l == 0)
    def _embed():
        emb = jnp.dot(patches_ref[...], patch_w_ref[...],
                      preferred_element_type=jnp.float32)
        act_ref[...] = emb + pos_bias_ref[...]          # conv bias folded in

    x = act_ref[...]                                    # (R, D_PAD)
    d_pad = x.shape[-1]

    # ---- self-attention ------------------------------------------------------
    h = _layernorm_padded(x, ln1w_ref[0], ln1b_ref[0], real_d, eps)

    # fused Q|K|V projection: one lane-dense (R, D_PAD) @ (D_PAD, 3*D_PAD)
    qkv = jnp.dot(h, wqkv_ref[0], preferred_element_type=jnp.float32) + bqkv_ref[0]
    q = qkv[:, :d_pad] * (head_dim ** -0.5)             # (R, D_PAD)
    k = qkv[:, d_pad:2 * d_pad]                         # (R, D_PAD)
    v = qkv[:, 2 * d_pad:]                              # (R, D_PAD)

    bias = attn_bias_ref[...]                            # (R, R) block-diag mask
    hmask = head_mask_ref[...]                           # (H, D_PAD) 0/1 lane mask
    ctx = jnp.zeros_like(x)                              # (R, D_PAD)
    for hh in range(num_heads):                          # unrolled, tiny H
        mask = hmask[hh:hh + 1, :]                       # (1, D_PAD)
        km = k * mask
        vm = v * mask
        # scores restricted to head hh's lanes (other lanes of q hit zeros)
        s = jax.lax.dot_general(q, km, (((1,), (1,)), ((), ())),
                                preferred_element_type=jnp.float32) + bias
        m = jnp.max(s, axis=-1, keepdims=True)
        e = jnp.exp(s - m)
        p = e * pl.reciprocal(jnp.sum(e, axis=-1, keepdims=True), approx=True)
        # head hh's context lands only in its own lanes (vm zero elsewhere)
        ctx = ctx + jnp.dot(p, vm, preferred_element_type=jnp.float32)

    attn = jnp.dot(ctx, wo_ref[0], preferred_element_type=jnp.float32) + bo_ref[0]
    x = x + attn

    # ---- MLP -----------------------------------------------------------------
    h2 = _layernorm_padded(x, ln2w_ref[0], ln2b_ref[0], real_d, eps)
    mlp = jnp.dot(h2, w1_ref[0], preferred_element_type=jnp.float32) + b1_ref[0]
    mlp = _gelu_tanh(mlp)
    mlp = jnp.dot(mlp, w2_ref[0], preferred_element_type=jnp.float32) + b2_ref[0]
    x = x + mlp

    act_ref[...] = x                                    # stays resident in VMEM

    # ---- final LayerNorm + pooler (last layer only) --------------------------
    @pl.when(l == pl.num_programs(0) - 1)
    def _finalize():
        y = _layernorm_padded(x, postw_ref[...], postb_ref[...], real_d, eps)
        last_ref[...] = y                               # (R, D_PAD)
        # gather token 0 of every image with one selector matmul, then pool
        first = jnp.dot(tok0_ref[...], y,
                        preferred_element_type=jnp.float32)     # (B, D_PAD)
        pooled = jnp.dot(first, poolw_ref[...],
                         preferred_element_type=jnp.float32) + poolb_ref[...]
        pooled_ref[...] = jnp.tanh(pooled)


# ----------------------------------------------------------------------------
# Wrapper-side parameter packing: lane padding + per-layer stacking
# ----------------------------------------------------------------------------
def pack_params(params):
    def pad2(a, rows, cols):
        return jnp.pad(a, ((0, rows - a.shape[0]), (0, cols - a.shape[1])))

    keys = ("ln1_w", "ln1_b", "wqkv", "bqkv", "wo", "bo",
            "ln2_w", "ln2_b", "w1", "b1", "w2", "b2")
    stacked = {k: [] for k in keys}
    for lyr in params["layers"]:
        stacked["ln1_w"].append(pad2(lyr["ln1_w"], 1, D_PAD))
        stacked["ln1_b"].append(pad2(lyr["ln1_b"], 1, D_PAD))
        stacked["wqkv"].append(jnp.concatenate(
            [pad2(lyr["wq"], D_PAD, D_PAD),
             pad2(lyr["wk"], D_PAD, D_PAD),
             pad2(lyr["wv"], D_PAD, D_PAD)], axis=1))       # (D_PAD, 3*D_PAD)
        stacked["bqkv"].append(jnp.concatenate(
            [pad2(lyr["bq"], 1, D_PAD),
             pad2(lyr["bk"], 1, D_PAD),
             pad2(lyr["bv"], 1, D_PAD)], axis=1))            # (1, 3*D_PAD)
        stacked["wo"].append(pad2(lyr["wo"], D_PAD, D_PAD))
        stacked["bo"].append(pad2(lyr["bo"], 1, D_PAD))
        stacked["ln2_w"].append(pad2(lyr["ln2_w"], 1, D_PAD))
        stacked["ln2_b"].append(pad2(lyr["ln2_b"], 1, D_PAD))
        stacked["w1"].append(pad2(lyr["w1"], D_PAD, I_PAD))
        stacked["b1"].append(pad2(lyr["b1"], 1, I_PAD))
        stacked["w2"].append(pad2(lyr["w2"], I_PAD, D_PAD))
        stacked["b2"].append(pad2(lyr["b2"], 1, D_PAD))
    packed = {k: jnp.stack(v, axis=0) for k, v in stacked.items()}

    packed["patch_w"] = pad2(params["patch_w"], PATCH_PAD, D_PAD)
    # positional embedding tiled over (b, n)-flattened rows, conv bias folded in
    pos = pad2(params["pos_emb"], NUM_PATCHES, D_PAD)
    packed["pos_bias"] = jnp.tile(pos, (BATCH, 1)) + pad2(params["patch_b"], 1, D_PAD)
    packed["post_ln_w"] = pad2(params["post_ln_w"], 1, D_PAD)
    packed["post_ln_b"] = pad2(params["post_ln_b"], 1, D_PAD)
    packed["pooler_w"] = pad2(params["pooler_w"], D_PAD, D_PAD)
    packed["pooler_b"] = pad2(params["pooler_b"], 1, D_PAD)
    return packed


# ----------------------------------------------------------------------------
# Forward wrapper
# ----------------------------------------------------------------------------
@jax.jit
def siglip_vision_forward(pixel_values, params):
    """pixel_values: (B, C, H, W) float32 (NCHW, like PyTorch)."""
    B, C, Himg, Wimg = pixel_values.shape
    P = PATCH_SIZE
    R = ROWS
    H = NUM_HEADS
    L = NUM_LAYERS

    # --- glue: NCHW -> (B*Np, C*P*P) patches (matches Conv2d weight flattening)
    xg = pixel_values.reshape(B, C, Himg // P, P, Wimg // P, P)
    xg = jnp.transpose(xg, (0, 2, 4, 1, 3, 5))          # (B, Hp, Wp, C, P, P)
    patches = xg.reshape(R, PATCH_DIM)
    patches = jnp.pad(patches, ((0, 0), (0, PATCH_PAD - PATCH_DIM)))

    pk = pack_params(params)

    # constants: block-diagonal (per-image) attention bias, token-0 selector,
    # and per-head lane masks
    r = jnp.arange(R)
    same_img = (r[:, None] // NUM_PATCHES) == (r[None, :] // NUM_PATCHES)
    attn_bias = jnp.where(same_img, 0.0, NEG_INF).astype(jnp.float32)
    tok0 = (r[None, :] == (jnp.arange(B) * NUM_PATCHES)[:, None]).astype(jnp.float32)
    lanes = jnp.arange(D_PAD)
    head_mask = ((lanes[None, :] >= (jnp.arange(H) * HEAD_DIM)[:, None]) &
                 (lanes[None, :] < ((jnp.arange(H) + 1) * HEAD_DIM)[:, None])
                 ).astype(jnp.float32)                   # (H, D_PAD)

    def fixed(shape):
        zeros = (0,) * len(shape)
        return pl.BlockSpec(shape, lambda l, z=zeros: z)

    def per_layer(shape):
        zeros = (0,) * len(shape)
        return pl.BlockSpec((1,) + shape, lambda l, z=zeros: (l,) + z)

    kernel = functools.partial(
        siglip_kernel,
        num_heads=H, head_dim=HEAD_DIM,
        real_d=float(HIDDEN_SIZE), eps=LAYER_NORM_EPS)

    last_p, pooled_p = pl.pallas_call(
        kernel,
        out_shape=(jax.ShapeDtypeStruct((R, D_PAD), jnp.float32),
                   jax.ShapeDtypeStruct((B, D_PAD), jnp.float32)),
        grid=(L,),
        in_specs=[
            fixed((R, PATCH_PAD)),                   # patches
            fixed((PATCH_PAD, D_PAD)),               # patch embedding weight
            fixed((R, D_PAD)),                       # pos embedding + conv bias
            fixed((R, R)),                           # block-diag attention bias
            fixed((B, R)),                           # token-0 selector
            fixed((H, D_PAD)),                       # per-head lane masks
            per_layer((1, D_PAD)),                   # ln1_w   (stacked over L)
            per_layer((1, D_PAD)),                   # ln1_b
            per_layer((D_PAD, 3 * D_PAD)),           # wqkv (fused, lane-dense)
            per_layer((1, 3 * D_PAD)),               # bqkv
            per_layer((D_PAD, D_PAD)),               # wo
            per_layer((1, D_PAD)),                   # bo
            per_layer((1, D_PAD)),                   # ln2_w
            per_layer((1, D_PAD)),                   # ln2_b
            per_layer((D_PAD, I_PAD)),               # w1
            per_layer((1, I_PAD)),                   # b1
            per_layer((I_PAD, D_PAD)),               # w2
            per_layer((1, D_PAD)),                   # b2
            fixed((1, D_PAD)),                       # post_ln_w
            fixed((1, D_PAD)),                       # post_ln_b
            fixed((D_PAD, D_PAD)),                   # pooler_w
            fixed((1, D_PAD)),                       # pooler_b
        ],
        out_specs=(fixed((R, D_PAD)), fixed((B, D_PAD))),
        scratch_shapes=[pltpu.VMEM((R, D_PAD), jnp.float32)],   # resident acts
        compiler_params=pltpu.CompilerParams(
            dimension_semantics=("arbitrary",)),
    )(patches, pk["patch_w"], pk["pos_bias"], attn_bias, tok0, head_mask,
      pk["ln1_w"], pk["ln1_b"], pk["wqkv"], pk["bqkv"], pk["wo"], pk["bo"],
      pk["ln2_w"], pk["ln2_b"], pk["w1"], pk["b1"], pk["w2"], pk["b2"],
      pk["post_ln_w"], pk["post_ln_b"], pk["pooler_w"], pk["pooler_b"])

    last_hidden = last_p[:, :HIDDEN_SIZE].reshape(B, NUM_PATCHES, HIDDEN_SIZE)
    pooled = pooled_p[:, :HIDDEN_SIZE]
    return last_hidden, pooled


# ----------------------------------------------------------------------------
# Pure-JAX reference (for a numerical sanity check)
# ----------------------------------------------------------------------------
def siglip_reference(pixel_values, params):
    B, C, Himg, Wimg = pixel_values.shape
    P = PATCH_SIZE
    xg = pixel_values.reshape(B, C, Himg // P, P, Wimg // P, P)
    xg = jnp.transpose(xg, (0, 2, 4, 1, 3, 5)).reshape(B, NUM_PATCHES, PATCH_DIM)
    h = xg @ params["patch_w"] + params["patch_b"] + params["pos_emb"][None]

    def ln(v, w, b):
        mu = jnp.mean(v, axis=-1, keepdims=True)
        var = jnp.mean((v - mu) ** 2, axis=-1, keepdims=True)
        return (v - mu) * jax.lax.rsqrt(var + LAYER_NORM_EPS) * w + b

    def split(t):      # (B, N, D) -> (B, H, N, hd)
        return t.reshape(B, NUM_PATCHES, NUM_HEADS, HEAD_DIM).transpose(0, 2, 1, 3)

    for lyr in params["layers"]:
        y = ln(h, lyr["ln1_w"], lyr["ln1_b"])
        q = split(y @ lyr["wq"] + lyr["bq"]) * HEAD_DIM ** -0.5
        k = split(y @ lyr["wk"] + lyr["bk"])
        v = split(y @ lyr["wv"] + lyr["bv"])
        s = jnp.einsum('bhqe,bhke->bhqk', q, k)
        p = jax.nn.softmax(s, axis=-1)
        ctx = jnp.einsum('bhqk,bhke->bhqe', p, v)
        ctx = ctx.transpose(0, 2, 1, 3).reshape(B, NUM_PATCHES, HIDDEN_SIZE)
        h = h + ctx @ lyr["wo"] + lyr["bo"]
        y2 = ln(h, lyr["ln2_w"], lyr["ln2_b"])
        m = _gelu_tanh(y2 @ lyr["w1"] + lyr["b1"])
        h = h + m @ lyr["w2"] + lyr["b2"]

    last = ln(h, params["post_ln_w"], params["post_ln_b"])
    pooled = jnp.tanh(last[:, 0, :] @ params["pooler_w"] + params["pooler_b"])
    return last, pooled


# ----------------------------------------------------------------------------
# Deterministic parameter init (synthetic — shapes follow the module __init__)
# ----------------------------------------------------------------------------
def init_params(key):
    D, I, Dp, Np = HIDDEN_SIZE, INTERMEDIATE_SIZE, PATCH_DIM, NUM_PATCHES

    def nrm(k, shape, scale=0.02):
        return (scale * jax.random.normal(k, shape)).astype(jnp.float32)

    keys = jax.random.split(key, 6 + NUM_LAYERS)
    params = {
        # conv weight (D, C, P, P) flattened to a matmul weight (C*P*P, D)
        "patch_w": nrm(keys[0], (Dp, D)),
        "patch_b": nrm(keys[1], (1, D)),
        "pos_emb": nrm(keys[2], (Np, D)),
        "post_ln_w": jnp.ones((1, D), jnp.float32),
        "post_ln_b": jnp.zeros((1, D), jnp.float32),
        "pooler_w": nrm(keys[3], (D, D)),
        "pooler_b": nrm(keys[4], (1, D)),
        "layers": [],
    }
    for li in range(NUM_LAYERS):
        ks = jax.random.split(keys[6 + li], 12)
        params["layers"].append({
            "ln1_w": jnp.ones((1, D), jnp.float32),
            "ln1_b": jnp.zeros((1, D), jnp.float32),
            "wq": nrm(ks[0], (D, D)), "bq": nrm(ks[1], (1, D)),
            "wk": nrm(ks[2], (D, D)), "bk": nrm(ks[3], (1, D)),
            "wv": nrm(ks[4], (D, D)), "bv": nrm(ks[5], (1, D)),
            "wo": nrm(ks[6], (D, D)), "bo": nrm(ks[7], (1, D)),
            "ln2_w": jnp.ones((1, D), jnp.float32),
            "ln2_b": jnp.zeros((1, D), jnp.float32),
            "w1": nrm(ks[8], (D, I)), "b1": nrm(ks[9], (1, I)),
            "w2": nrm(ks[10], (I, D)), "b2": nrm(ks[11], (1, D)),
        })
    return params


if __name__ == "__main__":
    key = jax.random.PRNGKey(0)
    pkey, xkey = jax.random.split(key)
    params = init_params(pkey)
    pixel_values = jax.random.normal(
        xkey, (BATCH, NUM_CHANNELS, IMAGE_SIZE, IMAGE_SIZE), dtype=jnp.float32)

    last_hidden, pooled = siglip_vision_forward(pixel_values, params)
    jax.block_until_ready((last_hidden, pooled))

    assert last_hidden.shape == (BATCH, NUM_PATCHES, HIDDEN_SIZE)
    assert pooled.shape == (BATCH, HIDDEN_SIZE)
    assert bool(jnp.all(jnp.isfinite(last_hidden)))
    assert bool(jnp.all(jnp.isfinite(pooled)))

    # numerical sanity check against a plain-JAX reference
    with jax.default_matmul_precision("float32"):
        ref_last, ref_pooled = siglip_reference(pixel_values, params)
    assert jnp.allclose(last_hidden, ref_last, atol=5e-2, rtol=5e-2), (
        "last_hidden mismatch, max abs err = "
        f"{float(jnp.max(jnp.abs(last_hidden - ref_last)))}")
    assert jnp.allclose(pooled, ref_pooled, atol=5e-2, rtol=5e-2), (
        "pooled mismatch, max abs err = "
        f"{float(jnp.max(jnp.abs(pooled - ref_pooled)))}")

    print("KERNEL_OK")
</pallas_src>

<mosaic_0001>
module attributes {stable_mosaic.version = 11 : i64} {
  func.func @siglip_kernel(%arg0: i32, %arg1: memref<8x256xf32, #tpu.memory_space<vmem>>, %arg2: memref<256x128xf32, #tpu.memory_space<vmem>>, %arg3: memref<8x128xf32, #tpu.memory_space<vmem>>, %arg4: memref<8x8xf32, #tpu.memory_space<vmem>>, %arg5: memref<2x8xf32, #tpu.memory_space<vmem>>, %arg6: memref<4x128xf32, #tpu.memory_space<vmem>>, %arg7: memref<1x1x128xf32, #tpu.memory_space<vmem>>, %arg8: memref<1x1x128xf32, #tpu.memory_space<vmem>>, %arg9: memref<1x128x384xf32, #tpu.memory_space<vmem>>, %arg10: memref<1x1x384xf32, #tpu.memory_space<vmem>>, %arg11: memref<1x128x128xf32, #tpu.memory_space<vmem>>, %arg12: memref<1x1x128xf32, #tpu.memory_space<vmem>>, %arg13: memref<1x1x128xf32, #tpu.memory_space<vmem>>, %arg14: memref<1x1x128xf32, #tpu.memory_space<vmem>>, %arg15: memref<1x128x128xf32, #tpu.memory_space<vmem>>, %arg16: memref<1x1x128xf32, #tpu.memory_space<vmem>>, %arg17: memref<1x128x128xf32, #tpu.memory_space<vmem>>, %arg18: memref<1x1x128xf32, #tpu.memory_space<vmem>>, %arg19: memref<1x128xf32, #tpu.memory_space<vmem>>, %arg20: memref<1x128xf32, #tpu.memory_space<vmem>>, %arg21: memref<128x128xf32, #tpu.memory_space<vmem>>, %arg22: memref<1x128xf32, #tpu.memory_space<vmem>>, %arg23: memref<8x128xf32, #tpu.memory_space<vmem>>, %arg24: memref<2x128xf32, #tpu.memory_space<vmem>>, %arg25: memref<8x128xf32, #tpu.memory_space<vmem>>) attributes {dimension_semantics = [#tpu.dimension_semantics<arbitrary>], iteration_bounds = array<i64: 2>, scalar_prefetch = 0 : i64, scratch_operands = 1 : i64, tpu.core_type = #tpu.core_type<tc>, window_params = [{pipeline_mode = #tpu.pipeline_mode<synchronous>, transform_indices = @transform_0, window_bounds = array<i64: 8, 256>}, {pipeline_mode = #tpu.pipeline_mode<synchronous>, transform_indices = @transform_1, window_bounds = array<i64: 256, 128>}, {pipeline_mode = #tpu.pipeline_mode<synchronous>, transform_indices = @transform_2, window_bounds = array<i64: 8, 128>}, {pipeline_mode = #tpu.pipeline_mode<synchronous>, transform_indices = @transform_3, window_bounds = array<i64: 8, 8>}, {pipeline_mode = #tpu.pipeline_mode<synchronous>, transform_indices = @transform_4, window_bounds = array<i64: 2, 8>}, {pipeline_mode = #tpu.pipeline_mode<synchronous>, transform_indices = @transform_5, window_bounds = array<i64: 4, 128>}, {transform_indices = @transform_6, window_bounds = array<i64: 1, 1, 128>}, {transform_indices = @transform_7, window_bounds = array<i64: 1, 1, 128>}, {transform_indices = @transform_8, window_bounds = array<i64: 1, 128, 384>}, {transform_indices = @transform_9, window_bounds = array<i64: 1, 1, 384>}, {transform_indices = @transform_10, window_bounds = array<i64: 1, 128, 128>}, {transform_indices = @transform_11, window_bounds = array<i64: 1, 1, 128>}, {transform_indices = @transform_12, window_bounds = array<i64: 1, 1, 128>}, {transform_indices = @transform_13, window_bounds = array<i64: 1, 1, 128>}, {transform_indices = @transform_14, window_bounds = array<i64: 1, 128, 128>}, {transform_indices = @transform_15, window_bounds = array<i64: 1, 1, 128>}, {transform_indices = @transform_16, window_bounds = array<i64: 1, 128, 128>}, {transform_indices = @transform_17, window_bounds = array<i64: 1, 1, 128>}, {pipeline_mode = #tpu.pipeline_mode<synchronous>, transform_indices = @transform_18, window_bounds = array<i64: 1, 128>}, {pipeline_mode = #tpu.pipeline_mode<synchronous>, transform_indices = @transform_19, window_bounds = array<i64: 1, 128>}, {pipeline_mode = #tpu.pipeline_mode<synchronous>, transform_indices = @transform_20, window_bounds = array<i64: 128, 128>}, {pipeline_mode = #tpu.pipeline_mode<synchronous>, transform_indices = @transform_21, window_bounds = array<i64: 1, 128>}, {pipeline_mode = #tpu.pipeline_mode<synchronous>, transform_indices = @transform_22, window_bounds = array<i64: 8, 128>}, {pipeline_mode = #tpu.pipeline_mode<synchronous>, transform_indices = @transform_23, window_bounds = array<i64: 2, 128>}]} {
    %c0_i32 = arith.constant 0 : i32
    %0 = arith.cmpi eq, %arg0, %c0_i32 : i32
    %1 = arith.extui %0 : i1 to i32
    %c0_i32_0 = arith.constant 0 : i32
    %2 = arith.cmpi ne, %1, %c0_i32_0 : i32
    scf.if %2 {
      %c0_80 = arith.constant 0 : index
      %c0_81 = arith.constant 0 : index
      %187 = vector.load %arg1[%c0_80, %c0_81] : memref<8x256xf32, #tpu.memory_space<vmem>>, vector<8x256xf32>
      %c0_82 = arith.constant 0 : index
      %c0_83 = arith.constant 0 : index
      %188 = vector.load %arg2[%c0_82, %c0_83] : memref<256x128xf32, #tpu.memory_space<vmem>>, vector<256x128xf32>
      %cst_84 = arith.constant dense<0.000000e+00> : vector<8x128xf32>
      %189 = tpu.matmul %187, %188, %cst_84 {dimension_numbers = #tpu.dot_dimension_numbers<[1], [0], [0], [1], [0, 0, 1, 1], [], []>} : vector<8x256xf32>, vector<256x128xf32>, vector<8x128xf32> -> vector<8x128xf32>
      %c0_85 = arith.constant 0 : index
      %c0_86 = arith.constant 0 : index
      %190 = vector.load %arg3[%c0_85, %c0_86] : memref<8x128xf32, #tpu.memory_space<vmem>>, vector<8x128xf32>
      %191 = arith.addf %189, %190 : vector<8x128xf32>
      %c0_87 = arith.constant 0 : index
      %c0_88 = arith.constant 0 : index
      %192 = vector.load %arg25[%c0_87, %c0_88] : memref<8x128xf32, #tpu.memory_space<vmem>>, vector<8x128xf32>
      tpu.vector_store %arg25[%c0_87, %c0_88], %191 {strides = array<i32>} : memref<8x128xf32, #tpu.memory_space<vmem>>, vector<8x128xf32>,
    } else {
    }
    %c0 = arith.constant 0 : index
    %c0_1 = arith.constant 0 : index
    %3 = vector.load %arg25[%c0, %c0_1] : memref<8x128xf32, #tpu.memory_space<vmem>>, vector<8x128xf32>
    %c0_2 = arith.constant 0 : index
    %c0_3 = arith.constant 0 : index
    %c0_4 = arith.constant 0 : index
    %4 = vector.load %arg7[%c0_2, %c0_3, %c0_4] : memref<1x1x128xf32, #tpu.memory_space<vmem>>, vector<1x1x128xf32>
    %5 = vector.shape_cast %4 : vector<1x1x128xf32> to vector<1x128xf32>
    %c0_5 = arith.constant 0 : index
    %c0_6 = arith.constant 0 : index
    %c0_7 = arith.constant 0 : index
    %6 = vector.load %arg8[%c0_5, %c0_6, %c0_7] : memref<1x1x128xf32, #tpu.memory_space<vmem>>, vector<1x1x128xf32>
    %7 = vector.shape_cast %6 : vector<1x1x128xf32> to vector<1x128xf32>
    %cst = arith.constant dense<0.000000e+00> : vector<8xf32>
    %8 = vector.multi_reduction <add>, %3, %cst [1] : vector<8x128xf32> to vector<8xf32>
    %9 = vector.shape_cast %8 : vector<8xf32> to vector<8x1xf32>
    %10 = arith.mulf %3, %3 : vector<8x128xf32>
    %cst_8 = arith.constant dense<0.000000e+00> : vector<8xf32>
    %11 = vector.multi_reduction <add>, %10, %cst_8 [1] : vector<8x128xf32> to vector<8xf32>
    %12 = vector.shape_cast %11 : vector<8xf32> to vector<8x1xf32>
    %cst_9 = arith.constant 3.200000e+01 : f32
    %13 = vector.broadcast %cst_9 : f32 to vector<8x1xf32>
    %14 = arith.divf %9, %13 : vector<8x1xf32>
    %cst_10 = arith.constant 3.200000e+01 : f32
    %15 = vector.broadcast %cst_10 : f32 to vector<8x1xf32>
    %16 = arith.divf %12, %15 : vector<8x1xf32>
    %17 = arith.mulf %14, %14 : vector<8x1xf32>
    %18 = arith.subf %16, %17 : vector<8x1xf32>
    %19 = vector.broadcast %14 : vector<8x1xf32> to vector<8x128xf32>
    %20 = arith.subf %3, %19 : vector<8x128xf32>
    %cst_11 = arith.constant 9.99999997E-7 : f32
    %21 = vector.broadcast %cst_11 : f32 to vector<8x1xf32>
    %22 = arith.addf %18, %21 : vector<8x1xf32>
    %23 = math.rsqrt %22 : vector<8x1xf32>
    %24 = vector.broadcast %23 : vector<8x1xf32> to vector<8x128xf32>
    %25 = arith.mulf %20, %24 : vector<8x128xf32>
    %26 = vector.broadcast %5 : vector<1x128xf32> to vector<8x128xf32>
    %27 = arith.mulf %25, %26 : vector<8x128xf32>
    %28 = vector.broadcast %7 : vector<1x128xf32> to vector<8x128xf32>
    %29 = arith.addf %27, %28 : vector<8x128xf32>
    %c0_12 = arith.constant 0 : index
    %c0_13 = arith.constant 0 : index
    %c0_14 = arith.constant 0 : index
    %30 = vector.load %arg9[%c0_12, %c0_13, %c0_14] : memref<1x128x384xf32, #tpu.memory_space<vmem>>, vector<1x128x384xf32>
    %31 = vector.shape_cast %30 : vector<1x128x384xf32> to vector<128x384xf32>
    %cst_15 = arith.constant dense<0.000000e+00> : vector<8x384xf32>
    %32 = tpu.matmul %29, %31, %cst_15 {dimension_numbers = #tpu.dot_dimension_numbers<[1], [0], [0], [1], [0, 0, 1, 1], [], []>} : vector<8x128xf32>, vector<128x384xf32>, vector<8x384xf32> -> vector<8x384xf32>
    %c0_16 = arith.constant 0 : index
    %c0_17 = arith.constant 0 : index
    %c0_18 = arith.constant 0 : index
    %33 = vector.load %arg10[%c0_16, %c0_17, %c0_18] : memref<1x1x384xf32, #tpu.memory_space<vmem>>, vector<1x1x384xf32>
    %34 = vector.shape_cast %33 : vector<1x1x384xf32> to vector<1x384xf32>
    %35 = vector.broadcast %34 : vector<1x384xf32> to vector<8x384xf32>
    %36 = arith.addf %32, %35 : vector<8x384xf32>
    %37 = vector.extract_strided_slice %36 {offsets = [0, 0], sizes = [8, 128], strides = [1, 1]} : vector<8x384xf32> to vector<8x128xf32>
    %cst_19 = arith.constant 0.353553385 : f32
    %38 = vector.broadcast %cst_19 : f32 to vector<8x128xf32>
    %39 = arith.mulf %37, %38 : vector<8x128xf32>
    %40 = vector.extract_strided_slice %36 {offsets = [0, 128], sizes = [8, 128], strides = [1, 1]} : vector<8x384xf32> to vector<8x128xf32>
    %41 = vector.extract_strided_slice %36 {offsets = [0, 256], sizes = [8, 128], strides = [1, 1]} : vector<8x384xf32> to vector<8x128xf32>
    %c0_20 = arith.constant 0 : index
    %c0_21 = arith.constant 0 : index
    %42 = vector.load %arg4[%c0_20, %c0_21] : memref<8x8xf32, #tpu.memory_space<vmem>>, vector<8x8xf32>
    %c0_22 = arith.constant 0 : index
    %c0_23 = arith.constant 0 : index
    %43 = vector.load %arg6[%c0_22, %c0_23] : memref<4x128xf32, #tpu.memory_space<vmem>>, vector<4x128xf32>
    %cst_24 = arith.constant 0.000000e+00 : f32
    %44 = vector.broadcast %cst_24 : f32 to vector<8x128xf32>
    %45 = vector.extract_strided_slice %43 {offsets = [0, 0], sizes = [1, 128], strides = [1, 1]} : vector<4x128xf32> to vector<1x128xf32>
    %46 = vector.broadcast %45 : vector<1x128xf32> to vector<8x128xf32>
    %47 = arith.mulf %40, %46 : vector<8x128xf32>
    %48 = vector.broadcast %45 : vector<1x128xf32> to vector<8x128xf32>
    %49 = arith.mulf %41, %48 : vector<8x128xf32>
    %cst_25 = arith.constant dense<0.000000e+00> : vector<8x8xf32>
    %50 = tpu.matmul %39, %47, %cst_25 {dimension_numbers = #tpu.dot_dimension_numbers<[1], [1], [0], [0], [0, 0, 1, 0], [], []>} : vector<8x128xf32>, vector<8x128xf32>, vector<8x8xf32> -> vector<8x8xf32>
    %51 = arith.addf %50, %42 : vector<8x8xf32>
    %cst_26 = arith.constant dense<0xFF800000> : vector<8xf32>
    %52 = vector.multi_reduction <maximumf>, %51, %cst_26 [1] : vector<8x8xf32> to vector<8xf32>
    %53 = vector.shape_cast %52 : vector<8xf32> to vector<8x1xf32>
    %54 = vector.broadcast %53 : vector<8x1xf32> to vector<8x8xf32>
    %55 = arith.subf %51, %54 : vector<8x8xf32>
    %56 = math.exp %55 : vector<8x8xf32>
    %cst_27 = arith.constant dense<0.000000e+00> : vector<8xf32>
    %57 = vector.multi_reduction <add>, %56, %cst_27 [1] : vector<8x8xf32> to vector<8xf32>
    %58 = vector.shape_cast %57 : vector<8xf32> to vector<8x1xf32>
    %59 = tpu.reciprocal %58 {approx = true} : vector<8x1xf32> -> vector<8x1xf32>
    %60 = vector.broadcast %59 : vector<8x1xf32> to vector<8x8xf32>
    %61 = arith.mulf %56, %60 : vector<8x8xf32>
    %cst_28 = arith.constant dense<0.000000e+00> : vector<8x128xf32>
    %62 = tpu.matmul %61, %49, %cst_28 {dimension_numbers = #tpu.dot_dimension_numbers<[1], [0], [0], [1], [0, 0, 1, 1], [], []>} : vector<8x8xf32>, vector<8x128xf32>, vector<8x128xf32> -> vector<8x128xf32>
    %63 = arith.addf %44, %62 : vector<8x128xf32>
    %64 = vector.extract_strided_slice %43 {offsets = [1, 0], sizes = [1, 128], strides = [1, 1]} : vector<4x128xf32> to vector<1x128xf32>
    %65 = vector.broadcast %64 : vector<1x128xf32> to vector<8x128xf32>
    %66 = arith.mulf %40, %65 : vector<8x128xf32>
    %67 = vector.broadcast %64 : vector<1x128xf32> to vector<8x128xf32>
    %68 = arith.mulf %41, %67 : vector<8x128xf32>
    %cst_29 = arith.constant dense<0.000000e+00> : vector<8x8xf32>
    %69 = tpu.matmul %39, %66, %cst_29 {dimension_numbers = #tpu.dot_dimension_numbers<[1], [1], [0], [0], [0, 0, 1, 0], [], []>} : vector<8x128xf32>, vector<8x128xf32>, vector<8x8xf32> -> vector<8x8xf32>
    %70 = arith.addf %69, %42 : vector<8x8xf32>
    %cst_30 = arith.constant dense<0xFF800000> : vector<8xf32>
    %71 = vector.multi_reduction <maximumf>, %70, %cst_30 [1] : vector<8x8xf32> to vector<8xf32>
    %72 = vector.shape_cast %71 : vector<8xf32> to vector<8x1xf32>
    %73 = vector.broadcast %72 : vector<8x1xf32> to vector<8x8xf32>
    %74 = arith.subf %70, %73 : vector<8x8xf32>
    %75 = math.exp %74 : vector<8x8xf32>
    %cst_31 = arith.constant dense<0.000000e+00> : vector<8xf32>
    %76 = vector.multi_reduction <add>, %75, %cst_31 [1] : vector<8x8xf32> to vector<8xf32>
    %77 = vector.shape_cast %76 : vector<8xf32> to vector<8x1xf32>
    %78 = tpu.reciprocal %77 {approx = true} : vector<8x1xf32> -> vector<8x1xf32>
    %79 = vector.broadcast %78 : vector<8x1xf32> to vector<8x8xf32>
    %80 = arith.mulf %75, %79 : vector<8x8xf32>
    %cst_32 = arith.constant dense<0.000000e+00> : vector<8x128xf32>
    %81 = tpu.matmul %80, %68, %cst_32 {dimension_numbers = #tpu.dot_dimension_numbers<[1], [0], [0], [1], [0, 0, 1, 1], [], []>} : vector<8x8xf32>, vector<8x128xf32>, vector<8x128xf32> -> vector<8x128xf32>
    %82 = arith.addf %63, %81 : vector<8x128xf32>
    %83 = vector.extract_strided_slice %43 {offsets = [2, 0], sizes = [1, 128], strides = [1, 1]} : vector<4x128xf32> to vector<1x128xf32>
    %84 = vector.broadcast %83 : vector<1x128xf32> to vector<8x128xf32>
    %85 = arith.mulf %40, %84 : vector<8x128xf32>
    %86 = vector.broadcast %83 : vector<1x128xf32> to vector<8x128xf32>
    %87 = arith.mulf %41, %86 : vector<8x128xf32>
    %cst_33 = arith.constant dense<0.000000e+00> : vector<8x8xf32>
    %88 = tpu.matmul %39, %85, %cst_33 {dimension_numbers = #tpu.dot_dimension_numbers<[1], [1], [0], [0], [0, 0, 1, 0], [], []>} : vector<8x128xf32>, vector<8x128xf32>, vector<8x8xf32> -> vector<8x8xf32>
    %89 = arith.addf %88, %42 : vector<8x8xf32>
    %cst_34 = arith.constant dense<0xFF800000> : vector<8xf32>
    %90 = vector.multi_reduction <maximumf>, %89, %cst_34 [1] : vector<8x8xf32> to vector<8xf32>
    %91 = vector.shape_cast %90 : vector<8xf32> to vector<8x1xf32>
    %92 = vector.broadcast %91 : vector<8x1xf32> to vector<8x8xf32>
    %93 = arith.subf %89, %92 : vector<8x8xf32>
    %94 = math.exp %93 : vector<8x8xf32>
    %cst_35 = arith.constant dense<0.000000e+00> : vector<8xf32>
    %95 = vector.multi_reduction <add>, %94, %cst_35 [1] : vector<8x8xf32> to vector<8xf32>
    %96 = vector.shape_cast %95 : vector<8xf32> to vector<8x1xf32>
    %97 = tpu.reciprocal %96 {approx = true} : vector<8x1xf32> -> vector<8x1xf32>
    %98 = vector.broadcast %97 : vector<8x1xf32> to vector<8x8xf32>
    %99 = arith.mulf %94, %98 : vector<8x8xf32>
    %cst_36 = arith.constant dense<0.000000e+00> : vector<8x128xf32>
    %100 = tpu.matmul %99, %87, %cst_36 {dimension_numbers = #tpu.dot_dimension_numbers<[1], [0], [0], [1], [0, 0, 1, 1], [], []>} : vector<8x8xf32>, vector<8x128xf32>, vector<8x128xf32> -> vector<8x128xf32>
    %101 = arith.addf %82, %100 : vector<8x128xf32>
    %102 = vector.extract_strided_slice %43 {offsets = [3, 0], sizes = [1, 128], strides = [1, 1]} : vector<4x128xf32> to vector<1x128xf32>
    %103 = vector.broadcast %102 : vector<1x128xf32> to vector<8x128xf32>
    %104 = arith.mulf %40, %103 : vector<8x128xf32>
    %105 = vector.broadcast %102 : vector<1x128xf32> to vector<8x128xf32>
    %106 = arith.mulf %41, %105 : vector<8x128xf32>
    %cst_37 = arith.constant dense<0.000000e+00> : vector<8x8xf32>
    %107 = tpu.matmul %39, %104, %cst_37 {dimension_numbers = #tpu.dot_dimension_numbers<[1], [1], [0], [0], [0, 0, 1, 0], [], []>} : vector<8x128xf32>, vector<8x128xf32>, vector<8x8xf32> -> vector<8x8xf32>
    %108 = arith.addf %107, %42 : vector<8x8xf32>
    %cst_38 = arith.constant dense<0xFF800000> : vector<8xf32>
    %109 = vector.multi_reduction <maximumf>, %108, %cst_38 [1] : vector<8x8xf32> to vector<8xf32>
    %110 = vector.shape_cast %109 : vector<8xf32> to vector<8x1xf32>
    %111 = vector.broadcast %110 : vector<8x1xf32> to vector<8x8xf32>
    %112 = arith.subf %108, %111 : vector<8x8xf32>
    %113 = math.exp %112 : vector<8x8xf32>
    %cst_39 = arith.constant dense<0.000000e+00> : vector<8xf32>
    %114 = vector.multi_reduction <add>, %113, %cst_39 [1] : vector<8x8xf32> to vector<8xf32>
    %115 = vector.shape_cast %114 : vector<8xf32> to vector<8x1xf32>
    %116 = tpu.reciprocal %115 {approx = true} : vector<8x1xf32> -> vector<8x1xf32>
    %117 = vector.broadcast %116 : vector<8x1xf32> to vector<8x8xf32>
    %118 = arith.mulf %113, %117 : vector<8x8xf32>
    %cst_40 = arith.constant dense<0.000000e+00> : vector<8x128xf32>
    %119 = tpu.matmul %118, %106, %cst_40 {dimension_numbers = #tpu.dot_dimension_numbers<[1], [0], [0], [1], [0, 0, 1, 1], [], []>} : vector<8x8xf32>, vector<8x128xf32>, vector<8x128xf32> -> vector<8x128xf32>
    %120 = arith.addf %101, %119 : vector<8x128xf32>
    %c0_41 = arith.constant 0 : index
    %c0_42 = arith.constant 0 : index
    %c0_43 = arith.constant 0 : index
    %121 = vector.load %arg11[%c0_41, %c0_42, %c0_43] : memref<1x128x128xf32, #tpu.memory_space<vmem>>, vector<1x128x128xf32>
    %122 = vector.shape_cast %121 : vector<1x128x128xf32> to vector<128x128xf32>
    %cst_44 = arith.constant dense<0.000000e+00> : vector<8x128xf32>
    %123 = tpu.matmul %120, %122, %cst_44 {dimension_numbers = #tpu.dot_dimension_numbers<[1], [0], [0], [1], [0, 0, 1, 1], [], []>} : vector<8x128xf32>, vector<128x128xf32>, vector<8x128xf32> -> vector<8x128xf32>
    %c0_45 = arith.constant 0 : index
    %c0_46 = arith.constant 0 : index
    %c0_47 = arith.constant 0 : index
    %124 = vector.load %arg12[%c0_45, %c0_46, %c0_47] : memref<1x1x128xf32, #tpu.memory_space<vmem>>, vector<1x1x128xf32>
    %125 = vector.shape_cast %124 : vector<1x1x128xf32> to vector<1x128xf32>
    %126 = vector.broadcast %125 : vector<1x128xf32> to vector<8x128xf32>
    %127 = arith.addf %123, %126 : vector<8x128xf32>
    %128 = arith.addf %3, %127 : vector<8x128xf32>
    %c0_48 = arith.constant 0 : index
    %c0_49 = arith.constant 0 : index
    %c0_50 = arith.constant 0 : index
    %129 = vector.load %arg13[%c0_48, %c0_49, %c0_50] : memref<1x1x128xf32, #tpu.memory_space<vmem>>, vector<1x1x128xf32>
    %130 = vector.shape_cast %129 : vector<1x1x128xf32> to vector<1x128xf32>
    %c0_51 = arith.constant 0 : index
    %c0_52 = arith.constant 0 : index
    %c0_53 = arith.constant 0 : index
    %131 = vector.load %arg14[%c0_51, %c0_52, %c0_53] : memref<1x1x128xf32, #tpu.memory_space<vmem>>, vector<1x1x128xf32>
    %132 = vector.shape_cast %131 : vector<1x1x128xf32> to vector<1x128xf32>
    %cst_54 = arith.constant dense<0.000000e+00> : vector<8xf32>
    %133 = vector.multi_reduction <add>, %128, %cst_54 [1] : vector<8x128xf32> to vector<8xf32>
    %134 = vector.shape_cast %133 : vector<8xf32> to vector<8x1xf32>
    %135 = arith.mulf %128, %128 : vector<8x128xf32>
    %cst_55 = arith.constant dense<0.000000e+00> : vector<8xf32>
    %136 = vector.multi_reduction <add>, %135, %cst_55 [1] : vector<8x128xf32> to vector<8xf32>
    %137 = vector.shape_cast %136 : vector<8xf32> to vector<8x1xf32>
    %cst_56 = arith.constant 3.200000e+01 : f32
    %138 = vector.broadcast %cst_56 : f32 to vector<8x1xf32>
    %139 = arith.divf %134, %138 : vector<8x1xf32>
    %cst_57 = arith.constant 3.200000e+01 : f32
    %140 = vector.broadcast %cst_57 : f32 to vector<8x1xf32>
    %141 = arith.divf %137, %140 : vector<8x1xf32>
    %142 = arith.mulf %139, %139 : vector<8x1xf32>
    %143 = arith.subf %141, %142 : vector<8x1xf32>
    %144 = vector.broadcast %139 : vector<8x1xf32> to vector<8x128xf32>
    %145 = arith.subf %128, %144 : vector<8x128xf32>
    %cst_58 = arith.constant 9.99999997E-7 : f32
    %146 = vector.broadcast %cst_58 : f32 to vector<8x1xf32>
    %147 = arith.addf %143, %146 : vector<8x1xf32>
    %148 = math.rsqrt %147 : vector<8x1xf32>
    %149 = vector.broadcast %148 : vector<8x1xf32> to vector<8x128xf32>
    %150 = arith.mulf %145, %149 : vector<8x128xf32>
    %151 = vector.broadcast %130 : vector<1x128xf32> to vector<8x128xf32>
    %152 = arith.mulf %150, %151 : vector<8x128xf32>
    %153 = vector.broadcast %132 : vector<1x128xf32> to vector<8x128xf32>
    %154 = arith.addf %152, %153 : vector<8x128xf32>
    %c0_59 = arith.constant 0 : index
    %c0_60 = arith.constant 0 : index
    %c0_61 = arith.constant 0 : index
    %155 = vector.load %arg15[%c0_59, %c0_60, %c0_61] : memref<1x128x128xf32, #tpu.memory_space<vmem>>, vector<1x128x128xf32>
    %156 = vector.shape_cast %155 : vector<1x128x128xf32> to vector<128x128xf32>
    %cst_62 = arith.constant dense<0.000000e+00> : vector<8x128xf32>
    %157 = tpu.matmul %154, %156, %cst_62 {dimension_numbers = #tpu.dot_dimension_numbers<[1], [0], [0], [1], [0, 0, 1, 1], [], []>} : vector<8x128xf32>, vector<128x128xf32>, vector<8x128xf32> -> vector<8x128xf32>
    %c0_63 = arith.constant 0 : index
    %c0_64 = arith.constant 0 : index
    %c0_65 = arith.constant 0 : index
    %158 = vector.load %arg16[%c0_63, %c0_64, %c0_65] : memref<1x1x128xf32, #tpu.memory_space<vmem>>, vector<1x1x128xf32>
    %159 = vector.shape_cast %158 : vector<1x1x128xf32> to vector<1x128xf32>
    %160 = vector.broadcast %159 : vector<1x128xf32> to vector<8x128xf32>
    %161 = arith.addf %157, %160 : vector<8x128xf32>
    %cst_66 = arith.constant 5.000000e-01 : f32
    %162 = vector.broadcast %cst_66 : f32 to vector<8x128xf32>
    %163 = arith.mulf %162, %161 : vector<8x128xf32>
    %cst_67 = arith.constant 4.471500e-02 : f32
    %164 = vector.broadcast %cst_67 : f32 to vector<8x128xf32>
    %165 = arith.mulf %164, %161 : vector<8x128xf32>
    %166 = arith.mulf %165, %161 : vector<8x128xf32>
    %167 = arith.mulf %166, %161 : vector<8x128xf32>
    %168 = arith.addf %161, %167 : vector<8x128xf32>
    %cst_68 = arith.constant 0.797884583 : f32
    %169 = vector.broadcast %cst_68 : f32 to vector<8x128xf32>
    %170 = arith.mulf %169, %168 : vector<8x128xf32>
    %171 = math.tanh %170 : vector<8x128xf32>
    %cst_69 = arith.constant 1.000000e+00 : f32
    %172 = vector.broadcast %cst_69 : f32 to vector<8x128xf32>
    %173 = arith.addf %172, %171 : vector<8x128xf32>
    %174 = arith.mulf %163, %173 : vector<8x128xf32>
    %c0_70 = arith.constant 0 : index
    %c0_71 = arith.constant 0 : index
    %c0_72 = arith.constant 0 : index
    %175 = vector.load %arg17[%c0_70, %c0_71, %c0_72] : memref<1x128x128xf32, #tpu.memory_space<vmem>>, vector<1x128x128xf32>
    %176 = vector.shape_cast %175 : vector<1x128x128xf32> to vector<128x128xf32>
    %cst_73 = arith.constant dense<0.000000e+00> : vector<8x128xf32>
    %177 = tpu.matmul %174, %176, %cst_73 {dimension_numbers = #tpu.dot_dimension_numbers<[1], [0], [0], [1], [0, 0, 1, 1], [], []>} : vector<8x128xf32>, vector<128x128xf32>, vector<8x128xf32> -> vector<8x128xf32>
    %c0_74 = arith.constant 0 : index
    %c0_75 = arith.constant 0 : index
    %c0_76 = arith.constant 0 : index
    %178 = vector.load %arg18[%c0_74, %c0_75, %c0_76] : memref<1x1x128xf32, #tpu.memory_space<vmem>>, vector<1x1x128xf32>
    %179 = vector.shape_cast %178 : vector<1x1x128xf32> to vector<1x128xf32>
    %180 = vector.broadcast %179 : vector<1x128xf32> to vector<8x128xf32>
    %181 = arith.addf %177, %180 : vector<8x128xf32>
    %182 = arith.addf %128, %181 : vector<8x128xf32>
    %c0_77 = arith.constant 0 : index
    %c0_78 = arith.constant 0 : index
    %183 = vector.load %arg25[%c0_77, %c0_78] : memref<8x128xf32, #tpu.memory_space<vmem>>, vector<8x128xf32>
    tpu.vector_store %arg25[%c0_77, %c0_78], %182 {strides = array<i32>} : memref<8x128xf32, #tpu.memory_space<vmem>>, vector<8x128xf32>,
    %c1_i32 = arith.constant 1 : i32
    %184 = arith.cmpi eq, %arg0, %c1_i32 : i32
    %185 = arith.extui %184 : i1 to i32
    %c0_i32_79 = arith.constant 0 : i32
    %186 = arith.cmpi ne, %185, %c0_i32_79 : i32
    scf.if %186 {
      %c0_80 = arith.constant 0 : index
      %c0_81 = arith.constant 0 : index
      %187 = vector.load %arg19[%c0_80, %c0_81] : memref<1x128xf32, #tpu.memory_space<vmem>>, vector<1x128xf32>
      %c0_82 = arith.constant 0 : index
      %c0_83 = arith.constant 0 : index
      %188 = vector.load %arg20[%c0_82, %c0_83] : memref<1x128xf32, #tpu.memory_space<vmem>>, vector<1x128xf32>
      %cst_84 = arith.constant dense<0.000000e+00> : vector<8xf32>
      %189 = vector.multi_reduction <add>, %182, %cst_84 [1] : vector<8x128xf32> to vector<8xf32>
      %190 = vector.shape_cast %189 : vector<8xf32> to vector<8x1xf32>
      %191 = arith.mulf %182, %182 : vector<8x128xf32>
      %cst_85 = arith.constant dense<0.000000e+00> : vector<8xf32>
      %192 = vector.multi_reduction <add>, %191, %cst_85 [1] : vector<8x128xf32> to vector<8xf32>
      %193 = vector.shape_cast %192 : vector<8xf32> to vector<8x1xf32>
      %cst_86 = arith.constant 3.200000e+01 : f32
      %194 = vector.broadcast %cst_86 : f32 to vector<8x1xf32>
      %195 = arith.divf %190, %194 : vector<8x1xf32>
      %cst_87 = arith.constant 3.200000e+01 : f32
      %196 = vector.broadcast %cst_87 : f32 to vector<8x1xf32>
      %197 = arith.divf %193, %196 : vector<8x1xf32>
      %198 = arith.mulf %195, %195 : vector<8x1xf32>
      %199 = arith.subf %197, %198 : vector<8x1xf32>
      %200 = vector.broadcast %195 : vector<8x1xf32> to vector<8x128xf32>
      %201 = arith.subf %182, %200 : vector<8x128xf32>
      %cst_88 = arith.constant 9.99999997E-7 : f32
      %202 = vector.broadcast %cst_88 : f32 to vector<8x1xf32>
      %203 = arith.addf %199, %202 : vector<8x1xf32>
      %204 = math.rsqrt %203 : vector<8x1xf32>
      %205 = vector.broadcast %204 : vector<8x1xf32> to vector<8x128xf32>
      %206 = arith.mulf %201, %205 : vector<8x128xf32>
      %207 = vector.broadcast %187 : vector<1x128xf32> to vector<8x128xf32>
      %208 = arith.mulf %206, %207 : vector<8x128xf32>
      %209 = vector.broadcast %188 : vector<1x128xf32> to vector<8x128xf32>
      %210 = arith.addf %208, %209 : vector<8x128xf32>
      %c0_89 = arith.constant 0 : index
      %c0_90 = arith.constant 0 : index
      %211 = vector.load %arg23[%c0_89, %c0_90] : memref<8x128xf32, #tpu.memory_space<vmem>>, vector<8x128xf32>
      tpu.vector_store %arg23[%c0_89, %c0_90], %210 {strides = array<i32>} : memref<8x128xf32, #tpu.memory_space<vmem>>, vector<8x128xf32>,
      %c0_91 = arith.constant 0 : index
      %c0_92 = arith.constant 0 : index
      %212 = vector.load %arg5[%c0_91, %c0_92] : memref<2x8xf32, #tpu.memory_space<vmem>>, vector<2x8xf32>
      %cst_93 = arith.constant dense<0.000000e+00> : vector<2x128xf32>
      %213 = tpu.matmul %212, %210, %cst_93 {dimension_numbers = #tpu.dot_dimension_numbers<[1], [0], [0], [1], [0, 0, 1, 1], [], []>} : vector<2x8xf32>, vector<8x128xf32>, vector<2x128xf32> -> vector<2x128xf32>
      %c0_94 = arith.constant 0 : index
      %c0_95 = arith.constant 0 : index
      %214 = vector.load %arg21[%c0_94, %c0_95] : memref<128x128xf32, #tpu.memory_space<vmem>>, vector<128x128xf32>
      %cst_96 = arith.constant dense<0.000000e+00> : vector<2x128xf32>
      %215 = tpu.matmul %213, %214, %cst_96 {dimension_numbers = #tpu.dot_dimension_numbers<[1], [0], [0], [1], [0, 0, 1, 1], [], []>} : vector<2x128xf32>, vector<128x128xf32>, vector<2x128xf32> -> vector<2x128xf32>
      %c0_97 = arith.constant 0 : index
      %c0_98 = arith.constant 0 : index
      %216 = vector.load %arg22[%c0_97, %c0_98] : memref<1x128xf32, #tpu.memory_space<vmem>>, vector<1x128xf32>
      %217 = vector.broadcast %216 : vector<1x128xf32> to vector<2x128xf32>
      %218 = arith.addf %215, %217 : vector<2x128xf32>
      %219 = math.tanh %218 : vector<2x128xf32>
      %c0_99 = arith.constant 0 : index
      %c0_100 = arith.constant 0 : index
      %220 = vector.load %arg24[%c0_99, %c0_100] : memref<2x128xf32, #tpu.memory_space<vmem>>, vector<2x128xf32>
      tpu.vector_store %arg24[%c0_99, %c0_100], %219 {strides = array<i32>} : memref<2x128xf32, #tpu.memory_space<vmem>>, vector<2x128xf32>,
    } else {
    }
    return
  }
  func.func @transform_0(%arg0: i32) -> (i32, i32) {
    %c0_i32 = arith.constant 0 : i32
    %c0_i32_0 = arith.constant 0 : i32
    %c0_i32_1 = arith.constant 0 : i32
    return %c0_i32, %c0_i32_0 : i32, i32
  }
  func.func @transform_1(%arg0: i32) -> (i32, i32) {
    %c0_i32 = arith.constant 0 : i32
    %c0_i32_0 = arith.constant 0 : i32
    %c0_i32_1 = arith.constant 0 : i32
    return %c0_i32, %c0_i32_0 : i32, i32
  }
  func.func @transform_2(%arg0: i32) -> (i32, i32) {
    %c0_i32 = arith.constant 0 : i32
    %c0_i32_0 = arith.constant 0 : i32
    %c0_i32_1 = arith.constant 0 : i32
    return %c0_i32, %c0_i32_0 : i32, i32
  }
  func.func @transform_3(%arg0: i32) -> (i32, i32) {
    %c0_i32 = arith.constant 0 : i32
    %c0_i32_0 = arith.constant 0 : i32
    %c0_i32_1 = arith.constant 0 : i32
    return %c0_i32, %c0_i32_0 : i32, i32
  }
  func.func @transform_4(%arg0: i32) -> (i32, i32) {
    %c0_i32 = arith.constant 0 : i32
    %c0_i32_0 = arith.constant 0 : i32
    %c0_i32_1 = arith.constant 0 : i32
    return %c0_i32, %c0_i32_0 : i32, i32
  }
  func.func @transform_5(%arg0: i32) -> (i32, i32) {
    %c0_i32 = arith.constant 0 : i32
    %c0_i32_0 = arith.constant 0 : i32
    %c0_i32_1 = arith.constant 0 : i32
    return %c0_i32, %c0_i32_0 : i32, i32
  }
  func.func @transform_6(%arg0: i32) -> (i32, i32, i32) {
    %c0_i32 = arith.constant 0 : i32
    %c0_i32_0 = arith.constant 0 : i32
    %c0_i32_1 = arith.constant 0 : i32
    return %arg0, %c0_i32, %c0_i32_0 : i32, i32, i32
  }
  func.func @transform_7(%arg0: i32) -> (i32, i32, i32) {
    %c0_i32 = arith.constant 0 : i32
    %c0_i32_0 = arith.constant 0 : i32
    %c0_i32_1 = arith.constant 0 : i32
    return %arg0, %c0_i32, %c0_i32_0 : i32, i32, i32
  }
  func.func @transform_8(%arg0: i32) -> (i32, i32, i32) {
    %c0_i32 = arith.constant 0 : i32
    %c0_i32_0 = arith.constant 0 : i32
    %c0_i32_1 = arith.constant 0 : i32
    return %arg0, %c0_i32, %c0_i32_0 : i32, i32, i32
  }
  func.func @transform_9(%arg0: i32) -> (i32, i32, i32) {
    %c0_i32 = arith.constant 0 : i32
    %c0_i32_0 = arith.constant 0 : i32
    %c0_i32_1 = arith.constant 0 : i32
    return %arg0, %c0_i32, %c0_i32_0 : i32, i32, i32
  }
  func.func @transform_10(%arg0: i32) -> (i32, i32, i32) {
    %c0_i32 = arith.constant 0 : i32
    %c0_i32_0 = arith.constant 0 : i32
    %c0_i32_1 = arith.constant 0 : i32
    return %arg0, %c0_i32, %c0_i32_0 : i32, i32, i32
  }
  func.func @transform_11(%arg0: i32) -> (i32, i32, i32) {
    %c0_i32 = arith.constant 0 : i32
    %c0_i32_0 = arith.constant 0 : i32
    %c0_i32_1 = arith.constant 0 : i32
    return %arg0, %c0_i32, %c0_i32_0 : i32, i32, i32
  }
  func.func @transform_12(%arg0: i32) -> (i32, i32, i32) {
    %c0_i32 = arith.constant 0 : i32
    %c0_i32_0 = arith.constant 0 : i32
    %c0_i32_1 = arith.constant 0 : i32
    return %arg0, %c0_i32, %c0_i32_0 : i32, i32, i32
  }
  func.func @transform_13(%arg0: i32) -> (i32, i32, i32) {
    %c0_i32 = arith.constant 0 : i32
    %c0_i32_0 = arith.constant 0 : i32
    %c0_i32_1 = arith.constant 0 : i32
    return %arg0, %c0_i32, %c0_i32_0 : i32, i32, i32
  }
  func.func @transform_14(%arg0: i32) -> (i32, i32, i32) {
    %c0_i32 = arith.constant 0 : i32
    %c0_i32_0 = arith.constant 0 : i32
    %c0_i32_1 = arith.constant 0 : i32
    return %arg0, %c0_i32, %c0_i32_0 : i32, i32, i32
  }
  func.func @transform_15(%arg0: i32) -> (i32, i32, i32) {
    %c0_i32 = arith.constant 0 : i32
    %c0_i32_0 = arith.constant 0 : i32
    %c0_i32_1 = arith.constant 0 : i32
    return %arg0, %c0_i32, %c0_i32_0 : i32, i32, i32
  }
  func.func @transform_16(%arg0: i32) -> (i32, i32, i32) {
    %c0_i32 = arith.constant 0 : i32
    %c0_i32_0 = arith.constant 0 : i32
    %c0_i32_1 = arith.constant 0 : i32
    return %arg0, %c0_i32, %c0_i32_0 : i32, i32, i32
  }
  func.func @transform_17(%arg0: i32) -> (i32, i32, i32) {
    %c0_i32 = arith.constant 0 : i32
    %c0_i32_0 = arith.constant 0 : i32
    %c0_i32_1 = arith.constant 0 : i32
    return %arg0, %c0_i32, %c0_i32_0 : i32, i32, i32
  }
  func.func @transform_18(%arg0: i32) -> (i32, i32) {
    %c0_i32 = arith.constant 0 : i32
    %c0_i32_0 = arith.constant 0 : i32
    %c0_i32_1 = arith.constant 0 : i32
    return %c0_i32, %c0_i32_0 : i32, i32
  }
  func.func @transform_19(%arg0: i32) -> (i32, i32) {
    %c0_i32 = arith.constant 0 : i32
    %c0_i32_0 = arith.constant 0 : i32
    %c0_i32_1 = arith.constant 0 : i32
    return %c0_i32, %c0_i32_0 : i32, i32
  }
  func.func @transform_20(%arg0: i32) -> (i32, i32) {
    %c0_i32 = arith.constant 0 : i32
    %c0_i32_0 = arith.constant 0 : i32
    %c0_i32_1 = arith.constant 0 : i32
    return %c0_i32, %c0_i32_0 : i32, i32
  }
  func.func @transform_21(%arg0: i32) -> (i32, i32) {
    %c0_i32 = arith.constant 0 : i32
    %c0_i32_0 = arith.constant 0 : i32
    %c0_i32_1 = arith.constant 0 : i32
    return %c0_i32, %c0_i32_0 : i32, i32
  }
  func.func @transform_22(%arg0: i32) -> (i32, i32) {
    %c0_i32 = arith.constant 0 : i32
    %c0_i32_0 = arith.constant 0 : i32
    %c0_i32_1 = arith.constant 0 : i32
    return %c0_i32, %c0_i32_0 : i32, i32
  }
  func.func @transform_23(%arg0: i32) -> (i32, i32) {
    %c0_i32 = arith.constant 0 : i32
    %c0_i32_0 = arith.constant 0 : i32
    %c0_i32_1 = arith.constant 0 : i32
    return %c0_i32, %c0_i32_0 : i32, i32
  }
}

</mosaic_0001>

<llo_original>
// kernel: siglip_vision_forward.1
$region0: #{siglip_vision_forward.1}
  #allocation0 [shape = 'u32[]', space=smem, size = 0x4, offset = 0x4, fixed_abs, tag = 'smem constant byte address 0x4 - core index']
  #allocation1 [shape = 'u32[144,128]{1,0:T(1,128)}', space=vmem, size = 0x12000, scoped, tag = 'internal scratch']
  #allocation2 [shape = 'f32[8,128]{1,0:T(8,128)}', space=vmem, size = 0x1000, scoped, tag = 'scratch operand']
  %s0 = inlined_call_operand.vmem [shape: f32[8,256], index: 0, kind: input, shape index: {}]
  %s1 = inlined_call_operand.vmem [shape: f32[256,128], index: 1, kind: input, shape index: {}]
  %s2 = inlined_call_operand.vmem [shape: f32[8,128], index: 2, kind: input, shape index: {}]
  %s3 = inlined_call_operand.vmem [shape: f32[8,8], index: 3, kind: input, shape index: {}]
  %s4 = inlined_call_operand.vmem [shape: f32[2,8], index: 4, kind: input, shape index: {}]
  %s5 = inlined_call_operand.vmem [shape: f32[4,128], index: 5, kind: input, shape index: {}]
  %s6 = inlined_call_operand.vmem [shape: f32[2,1,128], index: 6, kind: input, shape index: {}]
  %s7 = inlined_call_operand.vmem [shape: f32[2,1,128], index: 7, kind: input, shape index: {}]
  %s8 = inlined_call_operand.vmem [shape: f32[2,128,384], index: 8, kind: input, shape index: {}]
  %s9 = inlined_call_operand.vmem [shape: f32[2,1,384], index: 9, kind: input, shape index: {}]
  %s10 = inlined_call_operand.vmem [shape: f32[2,128,128], index: 10, kind: input, shape index: {}]
  %s11 = inlined_call_operand.vmem [shape: f32[2,1,128], index: 11, kind: input, shape index: {}]
  %s12 = inlined_call_operand.vmem [shape: f32[2,1,128], index: 12, kind: input, shape index: {}]
  %s13 = inlined_call_operand.vmem [shape: f32[2,1,128], index: 13, kind: input, shape index: {}]
  %s14 = inlined_call_operand.vmem [shape: f32[2,128,128], index: 14, kind: input, shape index: {}]
  %s15 = inlined_call_operand.vmem [shape: f32[2,1,128], index: 15, kind: input, shape index: {}]
  %s16 = inlined_call_operand.vmem [shape: f32[2,128,128], index: 16, kind: input, shape index: {}]
  %s17 = inlined_call_operand.vmem [shape: f32[2,1,128], index: 17, kind: input, shape index: {}]
  %s18 = inlined_call_operand.vmem [shape: f32[1,128], index: 18, kind: input, shape index: {}]
  %s19 = inlined_call_operand.vmem [shape: f32[1,128], index: 19, kind: input, shape index: {}]
  %s20 = inlined_call_operand.vmem [shape: f32[128,128], index: 20, kind: input, shape index: {}]
  %s21 = inlined_call_operand.vmem [shape: f32[1,128], index: 21, kind: input, shape index: {}]
  %s22 = inlined_call_operand.hbm [shape: f32[8,128], index: 22, kind: output, shape index: {0}]
  %s23 = inlined_call_operand.hbm [shape: f32[2,128], index: 23, kind: output, shape index: {1}]
  %24 = xla_tuple %s22, %s23
  %s25 = sld [smem:[#allocation0]]
  $region137: #{siglip_vision_forward.1} parent=0
    _
  %s27 = ssub.s32 1, %s25
  %s28 = scalar_select 0, %s27, %s25
  $region1: #{siglip_vision_forward.1} parent=0
    #allocation3 [shape = 'u8[4096]{0}', space=vmem, size = 0x1000, scoped, tag = 'output window, operand 0, single buffered']
    #allocation4 [shape = 's32[2]{0}', space=sflag, size = 0x8, scoped, tag = 'scoped memory for siglip_vision_forward.1']
    #allocation5 [shape = 'u8[1024]{0}', space=vmem, size = 0x400, scoped, tag = 'output window, operand 1, single buffered']
    #allocation6 [shape = 's32[1]{0}', space=sflag, size = 0x4, scoped, tag = 'scoped memory for siglip_vision_forward.1']
    %29 = vsyncpa [#allocation4], 0
    %30 = vsyncpa [#allocation6], 0
    loop: start=0, step=1, limit=4
    $region2: #{siglip_vision_forward.1} parent=1 // loop_pre_header
      _
    $region3: #{siglip_vision_forward.1} parent=1 // loop_header
      %s32 = sphi 0, %s36
      %p33 = scmp.ge.s32.totalorder %s32, 4
      %s40 = sphi 0, %s40
      %s42 = sphi 0, %s40
      %s43 = sphi 0, %s42
      %s57 = sphi 0, %s43
      %s61 = sphi 0, %s61
      %s63 = sphi 0, %s61
      %s64 = sphi 0, %s63
      %s78 = sphi 0, %s64
      %s82 = sphi 0, %s82
      %s84 = sphi 0, %s82
      %s85 = sphi 0, %s84
      %s99 = sphi 0, %s85
      %s103 = sphi 0, %s103
      %s105 = sphi 0, %s103
      %s106 = sphi 0, %s105
      %s120 = sphi 0, %s106
      %s124 = sphi 0, %s124
      %s126 = sphi 0, %s124
      %s127 = sphi 0, %s126
      %s141 = sphi 0, %s127
      %s145 = sphi 0, %s145
      %s147 = sphi 0, %s145
      %s148 = sphi 0, %s147
      %s162 = sphi 0, %s148
      %s168 = sphi 0, %s170
      %s171 = sphi 0, %s168
      %s172 = sphi 0, %s171
      %s188 = sphi 0, %s172
      %s194 = sphi 0, %s196
      %s197 = sphi 0, %s194
      %s198 = sphi 0, %s197
      %s214 = sphi 0, %s198
      %s220 = sphi 0, %s222
      %s223 = sphi 0, %s220
      %s224 = sphi 0, %s223
      %s240 = sphi 0, %s224
      %s246 = sphi 0, %s248
      %s249 = sphi 0, %s246
      %s250 = sphi 0, %s249
      %s266 = sphi 0, %s250
      %s272 = sphi 0, %s274
      %s275 = sphi 0, %s272
      %s276 = sphi 0, %s275
      %s292 = sphi 0, %s276
      %s298 = sphi 0, %s300
      %s301 = sphi 0, %s298
      %s302 = sphi 0, %s301
      %s318 = sphi 0, %s302
      %s324 = sphi 0, %s326
      %s327 = sphi 0, %s324
      %s328 = sphi 0, %s327
      %s344 = sphi 0, %s328
      %s350 = sphi 0, %s352
      %s353 = sphi 0, %s350
      %s354 = sphi 0, %s353
      %s370 = sphi 0, %s354
      %s376 = sphi 0, %s378
      %s379 = sphi 0, %s376
      %s380 = sphi 0, %s379
      %s396 = sphi 0, %s380
      %s402 = sphi 0, %s404
      %s405 = sphi 0, %s402
      %s406 = sphi 0, %s405
      %s422 = sphi 0, %s406
      %s428 = sphi 0, %s430
      %s431 = sphi 0, %s428
      %s432 = sphi 0, %s431
      %s448 = sphi 0, %s432
      %s454 = sphi 0, %s456
      %s457 = sphi 0, %s454
      %s458 = sphi 0, %s457
      %s474 = sphi 0, %s458
      %s478 = sphi 0, %s478
      %s480 = sphi 0, %s478
      %s481 = sphi 0, %s480
      %s495 = sphi 0, %s481
      %s499 = sphi 0, %s499
      %s501 = sphi 0, %s499
      %s502 = sphi 0, %s501
      %s516 = sphi 0, %s502
      %s520 = sphi 0, %s520
      %s522 = sphi 0, %s520
      %s523 = sphi 0, %s522
      %s537 = sphi 0, %s523
      %s541 = sphi 0, %s541
      %s543 = sphi 0, %s541
      %s544 = sphi 0, %s543
      %s558 = sphi 0, %s544
      %s562 = sphi 0, %s562
      %s564 = sphi 0, %s562
      %s565 = sphi 0, %s564
      %s579 = sphi 0, %s565
      %s583 = sphi 0, %s583
      %s585 = sphi 0, %s583
      %s586 = sphi 0, %s585
      %s600 = sphi 0, %s586
    $region4: #{siglip_vision_forward.1} parent=1 // loop_header_branch
      %35 = sbr.rel (%p33) target = $region8
    $region5: #{siglip_vision_forward.1} parent=1 // loop_body
      %s37 = ssub.s32 %s32, 1
      %s38 = ssub.s32 %s32, 2
      %s39 = sadd.s32 %s32, 1
      %s41 = sadd.s32 %s40, 1
      %p44 = scmp.eq.s32.totalorder %s32, 1
      %p45 = scmp.ne.s32.totalorder %s40, %s42
      %p46 = scmp.eq.s32.totalorder %s32, 0
      %p47 = por %p45, %p46
      %p48 = scmp.ne.s32.totalorder %s40, %s42
      %p49 = scmp.eq.s32.totalorder %s37, 1
      %p50 = por %p48, %p49
      %p51 = scmp.ne.s32.totalorder %s42, %s43
      %p52 = scmp.eq.s32.totalorder %s37, 0
      %p53 = por %p51, %p52
      %p54 = scmp.ne.s32.totalorder %s42, %s43
      %p55 = scmp.eq.s32.totalorder %s38, 1
      %p56 = por %p54, %p55
      %p58 = scmp.ne.s32.totalorder %s43, %s57
      %p59 = scmp.eq.s32.totalorder %s38, 0
      %p60 = por %p58, %p59
      %s62 = sadd.s32 %s61, 1
      %p65 = scmp.eq.s32.totalorder %s32, 1
      %p66 = scmp.ne.s32.totalorder %s61, %s63
      %p67 = scmp.eq.s32.totalorder %s32, 0
      %p68 = por %p66, %p67
      %p69 = scmp.ne.s32.totalorder %s61, %s63
      %p70 = scmp.eq.s32.totalorder %s37, 1
      %p71 = por %p69, %p70
      %p72 = scmp.ne.s32.totalorder %s63, %s64
      %p73 = scmp.eq.s32.totalorder %s37, 0
      %p74 = por %p72, %p73
      %p75 = scmp.ne.s32.totalorder %s63, %s64
      %p76 = scmp.eq.s32.totalorder %s38, 1
      %p77 = por %p75, %p76
      %p79 = scmp.ne.s32.totalorder %s64, %s78
      %p80 = scmp.eq.s32.totalorder %s38, 0
      %p81 = por %p79, %p80
      %s83 = sadd.s32 %s82, 1
      %p86 = scmp.eq.s32.totalorder %s32, 1
      %p87 = scmp.ne.s32.totalorder %s82, %s84
      %p88 = scmp.eq.s32.totalorder %s32, 0
      %p89 = por %p87, %p88
      %p90 = scmp.ne.s32.totalorder %s82, %s84
      %p91 = scmp.eq.s32.totalorder %s37, 1
      %p92 = por %p90, %p91
      %p93 = scmp.ne.s32.totalorder %s84, %s85
      %p94 = scmp.eq.s32.totalorder %s37, 0
      %p95 = por %p93, %p94
      %p96 = scmp.ne.s32.totalorder %s84, %s85
      %p97 = scmp.eq.s32.totalorder %s38, 1
      %p98 = por %p96, %p97
      %p100 = scmp.ne.s32.totalorder %s85, %s99
      %p101 = scmp.eq.s32.totalorder %s38, 0
      %p102 = por %p100, %p101
      %s104 = sadd.s32 %s103, 1
      %p107 = scmp.eq.s32.totalorder %s32, 1
      %p108 = scmp.ne.s32.totalorder %s103, %s105
      %p109 = scmp.eq.s32.totalorder %s32, 0
      %p110 = por %p108, %p109
      %p111 = scmp.ne.s32.totalorder %s103, %s105
      %p112 = scmp.eq.s32.totalorder %s37, 1
      %p113 = por %p111, %p112
      %p114 = scmp.ne.s32.totalorder %s105, %s106
      %p115 = scmp.eq.s32.totalorder %s37, 0
      %p116 = por %p114, %p115
      %p117 = scmp.ne.s32.totalorder %s105, %s106
      %p118 = scmp.eq.s32.totalorder %s38, 1
      %p119 = por %p117, %p118
      %p121 = scmp.ne.s32.totalorder %s106, %s120
      %p122 = scmp.eq.s32.totalorder %s38, 0
      %p123 = por %p121, %p122
      %s125 = sadd.s32 %s124, 1
      %p128 = scmp.eq.s32.totalorder %s32, 1
      %p129 = scmp.ne.s32.totalorder %s124, %s126
      %p130 = scmp.eq.s32.totalorder %s32, 0
      %p131 = por %p129, %p130
      %p132 = scmp.ne.s32.totalorder %s124, %s126
      %p133 = scmp.eq.s32.totalorder %s37, 1
      %p134 = por %p132, %p133
      %p135 = scmp.ne.s32.totalorder %s126, %s127
      %p136 = scmp.eq.s32.totalorder %s37, 0
      %p137 = por %p135, %p136
      %p138 = scmp.ne.s32.totalorder %s126, %s127
      %p139 = scmp.eq.s32.totalorder %s38, 1
      %p140 = por %p138, %p139
      %p142 = scmp.ne.s32.totalorder %s127, %s141
      %p143 = scmp.eq.s32.totalorder %s38, 0
      %p144 = por %p142, %p143
      %s146 = sadd.s32 %s145, 1
      %p149 = scmp.eq.s32.totalorder %s32, 1
      %p150 = scmp.ne.s32.totalorder %s145, %s147
      %p151 = scmp.eq.s32.totalorder %s32, 0
      %p152 = por %p150, %p151
      %p153 = scmp.ne.s32.totalorder %s145, %s147
      %p154 = scmp.eq.s32.totalorder %s37, 1
      %p155 = por %p153, %p154
      %p156 = scmp.ne.s32.totalorder %s147, %s148
      %p157 = scmp.eq.s32.totalorder %s37, 0
      %p158 = por %p156, %p157
      %p159 = scmp.ne.s32.totalorder %s147, %s148
      %p160 = scmp.eq.s32.totalorder %s38, 1
      %p161 = por %p159, %p160
      %p163 = scmp.ne.s32.totalorder %s148, %s162
      %p164 = scmp.eq.s32.totalorder %s38, 0
      %p165 = por %p163, %p164
      %s166 = ssub.s32 %s32, %s39
      %p167 = scmp.eq.s32.totalorder %s166, 0
      %s169 = sadd.s32 %s168, 1
      %s170 = scalar_select %p167, %s168, %s169
      %p173 = pneg %p167
      %p174 = scmp.eq.s32.totalorder %s32, 1
      %p175 = por %p173, %p174
      %p176 = scmp.ne.s32.totalorder %s168, %s171
      %p177 = scmp.eq.s32.totalorder %s32, 0
      %p178 = por %p176, %p177
      %p179 = scmp.ne.s32.totalorder %s168, %s171
      %p180 = scmp.eq.s32.totalorder %s37, 1
      %p181 = por %p179, %p180
      %p182 = scmp.ne.s32.totalorder %s171, %s172
      %p183 = scmp.eq.s32.totalorder %s37, 0
      %p184 = por %p182, %p183
      %p185 = scmp.ne.s32.totalorder %s171, %s172
      %p186 = scmp.eq.s32.totalorder %s38, 1
      %p187 = por %p185, %p186
      %p189 = scmp.ne.s32.totalorder %s172, %s188
      %p190 = scmp.eq.s32.totalorder %s38, 0
      %p191 = por %p189, %p190
      %s192 = ssub.s32 %s32, %s39
      %p193 = scmp.eq.s32.totalorder %s192, 0
      %s195 = sadd.s32 %s194, 1
      %s196 = scalar_select %p193, %s194, %s195
      %p199 = pneg %p193
      %p200 = scmp.eq.s32.totalorder %s32, 1
      %p201 = por %p199, %p200
      %p202 = scmp.ne.s32.totalorder %s194, %s197
      %p203 = scmp.eq.s32.totalorder %s32, 0
      %p204 = por %p202, %p203
      %p205 = scmp.ne.s32.totalorder %s194, %s197
      %p206 = scmp.eq.s32.totalorder %s37, 1
      %p207 = por %p205, %p206
      %p208 = scmp.ne.s32.totalorder %s197, %s198
      %p209 = scmp.eq.s32.totalorder %s37, 0
      %p210 = por %p208, %p209
      %p211 = scmp.ne.s32.totalorder %s197, %s198
      %p212 = scmp.eq.s32.totalorder %s38, 1
      %p213 = por %p211, %p212
      %p215 = scmp.ne.s32.totalorder %s198, %s214
      %p216 = scmp.eq.s32.totalorder %s38, 0
      %p217 = por %p215, %p216
      %s218 = ssub.s32 %s32, %s39
      %p219 = scmp.eq.s32.totalorder %s218, 0
      %s221 = sadd.s32 %s220, 1
      %s222 = scalar_select %p219, %s220, %s221
      %p225 = pneg %p219
      %p226 = scmp.eq.s32.totalorder %s32, 1
      %p227 = por %p225, %p226
      %p228 = scmp.ne.s32.totalorder %s220, %s223
      %p229 = scmp.eq.s32.totalorder %s32, 0
      %p230 = por %p228, %p229
      %p231 = scmp.ne.s32.totalorder %s220, %s223
      %p232 = scmp.eq.s32.totalorder %s37, 1
      %p233 = por %p231, %p232
      %p234 = scmp.ne.s32.totalorder %s223, %s224
      %p235 = scmp.eq.s32.totalorder %s37, 0
      %p236 = por %p234, %p235
      %p237 = scmp.ne.s32.totalorder %s223, %s224
      %p238 = scmp.eq.s32.totalorder %s38, 1
      %p239 = por %p237, %p238
      %p241 = scmp.ne.s32.totalorder %s224, %s240
      %p242 = scmp.eq.s32.totalorder %s38, 0
      %p243 = por %p241, %p242
      %s244 = ssub.s32 %s32, %s39
      %p245 = scmp.eq.s32.totalorder %s244, 0
      %s247 = sadd.s32 %s246, 1
      %s248 = scalar_select %p245, %s246, %s247
      %p251 = pneg %p245
      %p252 = scmp.eq.s32.totalorder %s32, 1
      %p253 = por %p251, %p252
      %p254 = scmp.ne.s32.totalorder %s246, %s249
      %p255 = scmp.eq.s32.totalorder %s32, 0
      %p256 = por %p254, %p255
      %p257 = scmp.ne.s32.totalorder %s246, %s249
      %p258 = scmp.eq.s32.totalorder %s37, 1
      %p259 = por %p257, %p258
      %p260 = scmp.ne.s32.totalorder %s249, %s250
      %p261 = scmp.eq.s32.totalorder %s37, 0
      %p262 = por %p260, %p261
      %p263 = scmp.ne.s32.totalorder %s249, %s250
      %p264 = scmp.eq.s32.totalorder %s38, 1
      %p265 = por %p263, %p264
      %p267 = scmp.ne.s32.totalorder %s250, %s266
      %p268 = scmp.eq.s32.totalorder %s38, 0
      %p269 = por %p267, %p268
      %s270 = ssub.s32 %s32, %s39
      %p271 = scmp.eq.s32.totalorder %s270, 0
      %s273 = sadd.s32 %s272, 1
      %s274 = scalar_select %p271, %s272, %s273
      %p277 = pneg %p271
      %p278 = scmp.eq.s32.totalorder %s32, 1
      %p279 = por %p277, %p278
      %p280 = scmp.ne.s32.totalorder %s272, %s275
      %p281 = scmp.eq.s32.totalorder %s32, 0
      %p282 = por %p280, %p281
      %p283 = scmp.ne.s32.totalorder %s272, %s275
      %p284 = scmp.eq.s32.totalorder %s37, 1
      %p285 = por %p283, %p284
      %p286 = scmp.ne.s32.totalorder %s275, %s276
      %p287 = scmp.eq.s32.totalorder %s37, 0
      %p288 = por %p286, %p287
      %p289 = scmp.ne.s32.totalorder %s275, %s276
      %p290 = scmp.eq.s32.totalorder %s38, 1
      %p291 = por %p289, %p290
      %p293 = scmp.ne.s32.totalorder %s276, %s292
      %p294 = scmp.eq.s32.totalorder %s38, 0
      %p295 = por %p293, %p294
      %s296 = ssub.s32 %s32, %s39
      %p297 = scmp.eq.s32.totalorder %s296, 0
      %s299 = sadd.s32 %s298, 1
      %s300 = scalar_select %p297, %s298, %s299
      %p303 = pneg %p297
      %p304 = scmp.eq.s32.totalorder %s32, 1
      %p305 = por %p303, %p304
      %p306 = scmp.ne.s32.totalorder %s298, %s301
      %p307 = scmp.eq.s32.totalorder %s32, 0
      %p308 = por %p306, %p307
      %p309 = scmp.ne.s32.totalorder %s298, %s301
      %p310 = scmp.eq.s32.totalorder %s37, 1
      %p311 = por %p309, %p310
      %p312 = scmp.ne.s32.totalorder %s301, %s302
      %p313 = scmp.eq.s32.totalorder %s37, 0
      %p314 = por %p312, %p313
      %p315 = scmp.ne.s32.totalorder %s301, %s302
      %p316 = scmp.eq.s32.totalorder %s38, 1
      %p317 = por %p315, %p316
      %p319 = scmp.ne.s32.totalorder %s302, %s318
      %p320 = scmp.eq.s32.totalorder %s38, 0
      %p321 = por %p319, %p320
      %s322 = ssub.s32 %s32, %s39
      %p323 = scmp.eq.s32.totalorder %s322, 0
      %s325 = sadd.s32 %s324, 1
      %s326 = scalar_select %p323, %s324, %s325
      %p329 = pneg %p323
      %p330 = scmp.eq.s32.totalorder %s32, 1
      %p331 = por %p329, %p330
      %p332 = scmp.ne.s32.totalorder %s324, %s327
      %p333 = scmp.eq.s32.totalorder %s32, 0
      %p334 = por %p332, %p333
      %p335 = scmp.ne.s32.totalorder %s324, %s327
      %p336 = scmp.eq.s32.totalorder %s37, 1
      %p337 = por %p335, %p336
      %p338 = scmp.ne.s32.totalorder %s327, %s328
      %p339 = scmp.eq.s32.totalorder %s37, 0
      %p340 = por %p338, %p339
      %p341 = scmp.ne.s32.totalorder %s327, %s328
      %p342 = scmp.eq.s32.totalorder %s38, 1
      %p343 = por %p341, %p342
      %p345 = scmp.ne.s32.totalorder %s328, %s344
      %p346 = scmp.eq.s32.totalorder %s38, 0
      %p347 = por %p345, %p346
      %s348 = ssub.s32 %s32, %s39
      %p349 = scmp.eq.s32.totalorder %s348, 0
      %s351 = sadd.s32 %s350, 1
      %s352 = scalar_select %p349, %s350, %s351
      %p355 = pneg %p349
      %p356 = scmp.eq.s32.totalorder %s32, 1
      %p357 = por %p355, %p356
      %p358 = scmp.ne.s32.totalorder %s350, %s353
      %p359 = scmp.eq.s32.totalorder %s32, 0
      %p360 = por %p358, %p359
      %p361 = scmp.ne.s32.totalorder %s350, %s353
      %p362 = scmp.eq.s32.totalorder %s37, 1
      %p363 = por %p361, %p362
      %p364 = scmp.ne.s32.totalorder %s353, %s354
      %p365 = scmp.eq.s32.totalorder %s37, 0
      %p366 = por %p364, %p365
      %p367 = scmp.ne.s32.totalorder %s353, %s354
      %p368 = scmp.eq.s32.totalorder %s38, 1
      %p369 = por %p367, %p368
      %p371 = scmp.ne.s32.totalorder %s354, %s370
      %p372 = scmp.eq.s32.totalorder %s38, 0
      %p373 = por %p371, %p372
      %s374 = ssub.s32 %s32, %s39
      %p375 = scmp.eq.s32.totalorder %s374, 0
      %s377 = sadd.s32 %s376, 1
      %s378 = scalar_select %p375, %s376, %s377
      %p381 = pneg %p375
      %p382 = scmp.eq.s32.totalorder %s32, 1
      %p383 = por %p381, %p382
      %p384 = scmp.ne.s32.totalorder %s376, %s379
      %p385 = scmp.eq.s32.totalorder %s32, 0
      %p386 = por %p384, %p385
      %p387 = scmp.ne.s32.totalorder %s376, %s379
      %p388 = scmp.eq.s32.totalorder %s37, 1
      %p389 = por %p387, %p388
      %p390 = scmp.ne.s32.totalorder %s379, %s380
      %p391 = scmp.eq.s32.totalorder %s37, 0
      %p392 = por %p390, %p391
      %p393 = scmp.ne.s32.totalorder %s379, %s380
      %p394 = scmp.eq.s32.totalorder %s38, 1
      %p395 = por %p393, %p394
      %p397 = scmp.ne.s32.totalorder %s380, %s396
      %p398 = scmp.eq.s32.totalorder %s38, 0
      %p399 = por %p397, %p398
      %s400 = ssub.s32 %s32, %s39
      %p401 = scmp.eq.s32.totalorder %s400, 0
      %s403 = sadd.s32 %s402, 1
      %s404 = scalar_select %p401, %s402, %s403
      %p407 = pneg %p401
      %p408 = scmp.eq.s32.totalorder %s32, 1
      %p409 = por %p407, %p408
      %p410 = scmp.ne.s32.totalorder %s402, %s405
      %p411 = scmp.eq.s32.totalorder %s32, 0
      %p412 = por %p410, %p411
      %p413 = scmp.ne.s32.totalorder %s402, %s405
      %p414 = scmp.eq.s32.totalorder %s37, 1
      %p415 = por %p413, %p414
      %p416 = scmp.ne.s32.totalorder %s405, %s406
      %p417 = scmp.eq.s32.totalorder %s37, 0
      %p418 = por %p416, %p417
      %p419 = scmp.ne.s32.totalorder %s405, %s406
      %p420 = scmp.eq.s32.totalorder %s38, 1
      %p421 = por %p419, %p420
      %p423 = scmp.ne.s32.totalorder %s406, %s422
      %p424 = scmp.eq.s32.totalorder %s38, 0
      %p425 = por %p423, %p424
      %s426 = ssub.s32 %s32, %s39
      %p427 = scmp.eq.s32.totalorder %s426, 0
      %s429 = sadd.s32 %s428, 1
      %s430 = scalar_select %p427, %s428, %s429
      %p433 = pneg %p427
      %p434 = scmp.eq.s32.totalorder %s32, 1
      %p435 = por %p433, %p434
      %p436 = scmp.ne.s32.totalorder %s428, %s431
      %p437 = scmp.eq.s32.totalorder %s32, 0
      %p438 = por %p436, %p437
      %p439 = scmp.ne.s32.totalorder %s428, %s431
      %p440 = scmp.eq.s32.totalorder %s37, 1
      %p441 = por %p439, %p440
      %p442 = scmp.ne.s32.totalorder %s431, %s432
      %p443 = scmp.eq.s32.totalorder %s37, 0
      %p444 = por %p442, %p443
      %p445 = scmp.ne.s32.totalorder %s431, %s432
      %p446 = scmp.eq.s32.totalorder %s38, 1
      %p447 = por %p445, %p446
      %p449 = scmp.ne.s32.totalorder %s432, %s448
      %p450 = scmp.eq.s32.totalorder %s38, 0
      %p451 = por %p449, %p450
      %s452 = ssub.s32 %s32, %s39
      %p453 = scmp.eq.s32.totalorder %s452, 0
      %s455 = sadd.s32 %s454, 1
      %s456 = scalar_select %p453, %s454, %s455
      %p459 = pneg %p453
      %p460 = scmp.eq.s32.totalorder %s32, 1
      %p461 = por %p459, %p460
      %p462 = scmp.ne.s32.totalorder %s454, %s457
      %p463 = scmp.eq.s32.totalorder %s32, 0
      %p464 = por %p462, %p463
      %p465 = scmp.ne.s32.totalorder %s454, %s457
      %p466 = scmp.eq.s32.totalorder %s37, 1
      %p467 = por %p465, %p466
      %p468 = scmp.ne.s32.totalorder %s457, %s458
      %p469 = scmp.eq.s32.totalorder %s37, 0
      %p470 = por %p468, %p469
      %p471 = scmp.ne.s32.totalorder %s457, %s458
      %p472 = scmp.eq.s32.totalorder %s38, 1
      %p473 = por %p471, %p472
      %p475 = scmp.ne.s32.totalorder %s458, %s474
      %p476 = scmp.eq.s32.totalorder %s38, 0
      %p477 = por %p475, %p476
      %s479 = sadd.s32 %s478, 1
      %p482 = scmp.eq.s32.totalorder %s32, 1
      %p483 = scmp.ne.s32.totalorder %s478, %s480
      %p484 = scmp.eq.s32.totalorder %s32, 0
      %p485 = por %p483, %p484
      %p486 = scmp.ne.s32.totalorder %s478, %s480
      %p487 = scmp.eq.s32.totalorder %s37, 1
      %p488 = por %p486, %p487
      %p489 = scmp.ne.s32.totalorder %s480, %s481
      %p490 = scmp.eq.s32.totalorder %s37, 0
      %p491 = por %p489, %p490
      %p492 = scmp.ne.s32.totalorder %s480, %s481
      %p493 = scmp.eq.s32.totalorder %s38, 1
      %p494 = por %p492, %p493
      %p496 = scmp.ne.s32.totalorder %s481, %s495
      %p497 = scmp.eq.s32.totalorder %s38, 0
      %p498 = por %p496, %p497
      %s500 = sadd.s32 %s499, 1
      %p503 = scmp.eq.s32.totalorder %s32, 1
      %p504 = scmp.ne.s32.totalorder %s499, %s501
      %p505 = scmp.eq.s32.totalorder %s32, 0
      %p506 = por %p504, %p505
      %p507 = scmp.ne.s32.totalorder %s499, %s501
      %p508 = scmp.eq.s32.totalorder %s37, 1
      %p509 = por %p507, %p508
      %p510 = scmp.ne.s32.totalorder %s501, %s502
      %p511 = scmp.eq.s32.totalorder %s37, 0
      %p512 = por %p510, %p511
      %p513 = scmp.ne.s32.totalorder %s501, %s502
      %p514 = scmp.eq.s32.totalorder %s38, 1
      %p515 = por %p513, %p514
      %p517 = scmp.ne.s32.totalorder %s502, %s516
      %p518 = scmp.eq.s32.totalorder %s38, 0
      %p519 = por %p517, %p518
      %s521 = sadd.s32 %s520, 1
      %p524 = scmp.eq.s32.totalorder %s32, 1
      %p525 = scmp.ne.s32.totalorder %s520, %s522
      %p526 = scmp.eq.s32.totalorder %s32, 0
      %p527 = por %p525, %p526
      %p528 = scmp.ne.s32.totalorder %s520, %s522
      %p529 = scmp.eq.s32.totalorder %s37, 1
      %p530 = por %p528, %p529
      %p531 = scmp.ne.s32.totalorder %s522, %s523
      %p532 = scmp.eq.s32.totalorder %s37, 0
      %p533 = por %p531, %p532
      %p534 = scmp.ne.s32.totalorder %s522, %s523
      %p535 = scmp.eq.s32.totalorder %s38, 1
      %p536 = por %p534, %p535
      %p538 = scmp.ne.s32.totalorder %s523, %s537
      %p539 = scmp.eq.s32.totalorder %s38, 0
      %p540 = por %p538, %p539
      %s542 = sadd.s32 %s541, 1
      %p545 = scmp.eq.s32.totalorder %s32, 1
      %p546 = scmp.ne.s32.totalorder %s541, %s543
      %p547 = scmp.eq.s32.totalorder %s32, 0
      %p548 = por %p546, %p547
      %p549 = scmp.ne.s32.totalorder %s541, %s543
      %p550 = scmp.eq.s32.totalorder %s37, 1
      %p551 = por %p549, %p550
      %p552 = scmp.ne.s32.totalorder %s543, %s544
      %p553 = scmp.eq.s32.totalorder %s37, 0
      %p554 = por %p552, %p553
      %p555 = scmp.ne.s32.totalorder %s543, %s544
      %p556 = scmp.eq.s32.totalorder %s38, 1
      %p557 = por %p555, %p556
      %p559 = scmp.ne.s32.totalorder %s544, %s558
      %p560 = scmp.eq.s32.totalorder %s38, 0
      %p561 = por %p559, %p560
      %s563 = sadd.s32 %s562, 1
      %p566 = scmp.eq.s32.totalorder %s32, 1
      %p567 = scmp.ne.s32.totalorder %s562, %s564
      %p568 = scmp.eq.s32.totalorder %s32, 0
      %p569 = por %p567, %p568
      %p570 = scmp.ne.s32.totalorder %s562, %s564
      %p571 = scmp.eq.s32.totalorder %s37, 1
      %p572 = por %p570, %p571
      %p573 = scmp.ne.s32.totalorder %s564, %s565
      %p574 = scmp.eq.s32.totalorder %s37, 0
      %p575 = por %p573, %p574
      %p576 = scmp.ne.s32.totalorder %s564, %s565
      %p577 = scmp.eq.s32.totalorder %s38, 1
      %p578 = por %p576, %p577
      %p580 = scmp.ne.s32.totalorder %s565, %s579
      %p581 = scmp.eq.s32.totalorder %s38, 0
      %p582 = por %p580, %p581
      %s584 = sadd.s32 %s583, 1
      %p587 = scmp.eq.s32.totalorder %s32, 1
      %p588 = scmp.ne.s32.totalorder %s583, %s585
      %p589 = scmp.eq.s32.totalorder %s32, 0
      %p590 = por %p588, %p589
      %p591 = scmp.ne.s32.totalorder %s583, %s585
      %p592 = scmp.eq.s32.totalorder %s37, 1
      %p593 = por %p591, %p592
      %p594 = scmp.ne.s32.totalorder %s585, %s586
      %p595 = scmp.eq.s32.totalorder %s37, 0
      %p596 = por %p594, %p595
      %p597 = scmp.ne.s32.totalorder %s585, %s586
      %p598 = scmp.eq.s32.totalorder %s38, 1
      %p599 = por %p597, %p598
      %p601 = scmp.ne.s32.totalorder %s586, %s600
      %p602 = scmp.eq.s32.totalorder %s38, 0
      %p603 = por %p601, %p602
      %p604 = scmp.le.s32.totalorder 1, %s32
      %p605 = scmp.lt.s32.totalorder %s32, 3
      %p606 = pnand %p604, %p605
      %p607 = pneg %p606
      // Predicated region
      $region9: #{siglip_vision_forward.1} parent=5 // pred_check
        _
      $region10: #{siglip_vision_forward.1} parent=5 // pred_check_branch
        %609 = sbr.rel (%p606) target = $region12
      $region11: #{siglip_vision_forward.1} parent=5 // pred_region
        %s610 = ssub.s32 %s32, 1
        // Predicated region
        $region13: #{siglip_vision_forward.1} parent=11 // pred_check
          %p611 = pneg %p53
        $region14: #{siglip_vision_forward.1} parent=11 // pred_check_branch
          %613 = sbr.rel (%p611) target = $region16
        $region15: #{siglip_vision_forward.1} parent=11 // pred_region
          _
        $region16: #{siglip_vision_forward.1} parent=11 // pred_fallthru
          _
        // Predicated region
        $region17: #{siglip_vision_forward.1} parent=11 // pred_check
          %p614 = pneg %p74
        $region18: #{siglip_vision_forward.1} parent=11 // pred_check_branch
          %616 = sbr.rel (%p614) target = $region20
        $region19: #{siglip_vision_forward.1} parent=11 // pred_region
          _
        $region20: #{siglip_vision_forward.1} parent=11 // pred_fallthru
          _
        // Predicated region
        $region21: #{siglip_vision_forward.1} parent=11 // pred_check
          %p617 = pneg %p95
        $region22: #{siglip_vision_forward.1} parent=11 // pred_check_branch
          %619 = sbr.rel (%p617) target = $region24
        $region23: #{siglip_vision_forward.1} parent=11 // pred_region
          _
        $region24: #{siglip_vision_forward.1} parent=11 // pred_fallthru
          _
        // Predicated region
        $region25: #{siglip_vision_forward.1} parent=11 // pred_check
          %p620 = pneg %p116
        $region26: #{siglip_vision_forward.1} parent=11 // pred_check_branch
          %622 = sbr.rel (%p620) target = $region28
        $region27: #{siglip_vision_forward.1} parent=11 // pred_region
          _
        $region28: #{siglip_vision_forward.1} parent=11 // pred_fallthru
          _
        // Predicated region
        $region29: #{siglip_vision_forward.1} parent=11 // pred_check
          %p623 = pneg %p137
        $region30: #{siglip_vision_forward.1} parent=11 // pred_check_branch
          %625 = sbr.rel (%p623) target = $region32
        $region31: #{siglip_vision_forward.1} parent=11 // pred_region
          _
        $region32: #{siglip_vision_forward.1} parent=11 // pred_fallthru
          _
        // Predicated region
        $region33: #{siglip_vision_forward.1} parent=11 // pred_check
          %p626 = pneg %p158
        $region34: #{siglip_vision_forward.1} parent=11 // pred_check_branch
          %628 = sbr.rel (%p626) target = $region36
        $region35: #{siglip_vision_forward.1} parent=11 // pred_region
          _
        $region36: #{siglip_vision_forward.1} parent=11 // pred_fallthru
          _
        // Predicated region
        $region37: #{siglip_vision_forward.1} parent=11 // pred_check
          %p629 = pneg %p491
        $region38: #{siglip_vision_forward.1} parent=11 // pred_check_branch
          %631 = sbr.rel (%p629) target = $region40
        $region39: #{siglip_vision_forward.1} parent=11 // pred_region
          _
        $region40: #{siglip_vision_forward.1} parent=11 // pred_fallthru
          _
        // Predicated region
        $region41: #{siglip_vision_forward.1} parent=11 // pred_check
          %p632 = pneg %p512
        $region42: #{siglip_vision_forward.1} parent=11 // pred_check_branch
          %634 = sbr.rel (%p632) target = $region44
        $region43: #{siglip_vision_forward.1} parent=11 // pred_region
          _
        $region44: #{siglip_vision_forward.1} parent=11 // pred_fallthru
          _
        // Predicated region
        $region45: #{siglip_vision_forward.1} parent=11 // pred_check
          %p635 = pneg %p533
        $region46: #{siglip_vision_forward.1} parent=11 // pred_check_branch
          %637 = sbr.rel (%p635) target = $region48
        $region47: #{siglip_vision_forward.1} parent=11 // pred_region
          _
        $region48: #{siglip_vision_forward.1} parent=11 // pred_fallthru
          _
        // Predicated region
        $region49: #{siglip_vision_forward.1} parent=11 // pred_check
          %p638 = pneg %p554
        $region50: #{siglip_vision_forward.1} parent=11 // pred_check_branch
          %640 = sbr.rel (%p638) target = $region52
        $region51: #{siglip_vision_forward.1} parent=11 // pred_region
          _
        $region52: #{siglip_vision_forward.1} parent=11 // pred_fallthru
          _
      $region12: #{siglip_vision_forward.1} parent=5 // pred_fallthru
        _
      %p641 = scmp.lt.s32.totalorder %s32, 2
      // Predicated region
      $region53: #{siglip_vision_forward.1} parent=5 // pred_check
        %p642 = pneg %p641
      $region54: #{siglip_vision_forward.1} parent=5 // pred_check_branch
        %644 = sbr.rel (%p642) target = $region56
      $region55: #{siglip_vision_forward.1} parent=5 // pred_region
        // Predicated region
        $region57: #{siglip_vision_forward.1} parent=55 // pred_check
          %p645 = pneg %p178
        $region58: #{siglip_vision_forward.1} parent=55 // pred_check_branch
          %647 = sbr.rel (%p645) target = $region60
        $region59: #{siglip_vision_forward.1} parent=55 // pred_region
          %p648 = scmp.lt.s32.totalorder %s32, 1
          %s649 = scalar_select %p648, %s32, 1
          %s650 = scalar_lea.vmem %s6, %s649
        $region60: #{siglip_vision_forward.1} parent=55 // pred_fallthru
          _
        // Predicated region
        $region61: #{siglip_vision_forward.1} parent=55 // pred_check
          %p651 = pneg %p204
        $region62: #{siglip_vision_forward.1} parent=55 // pred_check_branch
          %653 = sbr.rel (%p651) target = $region64
        $region63: #{siglip_vision_forward.1} parent=55 // pred_region
          %p654 = scmp.lt.s32.totalorder %s32, 1
          %s655 = scalar_select %p654, %s32, 1
          %s656 = scalar_lea.vmem %s7, %s655
        $region64: #{siglip_vision_forward.1} parent=55 // pred_fallthru
          _
        // Predicated region
        $region65: #{siglip_vision_forward.1} parent=55 // pred_check
          %p657 = pneg %p230
        $region66: #{siglip_vision_forward.1} parent=55 // pred_check_branch
          %659 = sbr.rel (%p657) target = $region68
        $region67: #{siglip_vision_forward.1} parent=55 // pred_region
          %p660 = scmp.lt.s32.totalorder %s32, 1
          %s661 = scalar_select %p660, %s32, 1
          %s662 = smul.addr %s661, 48
          %s663 = smul.addr %s662, 8
          %s664 = scalar_lea.vmem %s8, %s663
        $region68: #{siglip_vision_forward.1} parent=55 // pred_fallthru
          _
        // Predicated region
        $region69: #{siglip_vision_forward.1} parent=55 // pred_check
          %p665 = pneg %p256
        $region70: #{siglip_vision_forward.1} parent=55 // pred_check_branch
          %667 = sbr.rel (%p665) target = $region72
        $region71: #{siglip_vision_forward.1} parent=55 // pred_region
          %p668 = scmp.lt.s32.totalorder %s32, 1
          %s669 = scalar_select %p668, %s32, 1
          %s670 = smul.addr %s669, 3
          %s671 = scalar_lea.vmem %s9, %s670
        $region72: #{siglip_vision_forward.1} parent=55 // pred_fallthru
          _
        // Predicated region
        $region73: #{siglip_vision_forward.1} parent=55 // pred_check
          %p672 = pneg %p282
        $region74: #{siglip_vision_forward.1} parent=55 // pred_check_branch
          %674 = sbr.rel (%p672) target = $region76
        $region75: #{siglip_vision_forward.1} parent=55 // pred_region
          %p675 = scmp.lt.s32.totalorder %s32, 1
          %s676 = scalar_select %p675, %s32, 1
          %s677 = smul.addr %s676, 16
          %s678 = smul.addr %s677, 8
          %s679 = scalar_lea.vmem %s10, %s678
        $region76: #{siglip_vision_forward.1} parent=55 // pred_fallthru
          _
        // Predicated region
        $region77: #{siglip_vision_forward.1} parent=55 // pred_check
          %p680 = pneg %p308
        $region78: #{siglip_vision_forward.1} parent=55 // pred_check_branch
          %682 = sbr.rel (%p680) target = $region80
        $region79: #{siglip_vision_forward.1} parent=55 // pred_region
          %p683 = scmp.lt.s32.totalorder %s32, 1
          %s684 = scalar_select %p683, %s32, 1
          %s685 = scalar_lea.vmem %s11, %s684
        $region80: #{siglip_vision_forward.1} parent=55 // pred_fallthru
          _
        // Predicated region
        $region81: #{siglip_vision_forward.1} parent=55 // pred_check
          %p686 = pneg %p334
        $region82: #{siglip_vision_forward.1} parent=55 // pred_check_branch
          %688 = sbr.rel (%p686) target = $region84
        $region83: #{siglip_vision_forward.1} parent=55 // pred_region
          %p689 = scmp.lt.s32.totalorder %s32, 1
          %s690 = scalar_select %p689, %s32, 1
          %s691 = scalar_lea.vmem %s12, %s690
        $region84: #{siglip_vision_forward.1} parent=55 // pred_fallthru
          _
        // Predicated region
        $region85: #{siglip_vision_forward.1} parent=55 // pred_check
          %p692 = pneg %p360
        $region86: #{siglip_vision_forward.1} parent=55 // pred_check_branch
          %694 = sbr.rel (%p692) target = $region88
        $region87: #{siglip_vision_forward.1} parent=55 // pred_region
          %p695 = scmp.lt.s32.totalorder %s32, 1
          %s696 = scalar_select %p695, %s32, 1
          %s697 = scalar_lea.vmem %s13, %s696
        $region88: #{siglip_vision_forward.1} parent=55 // pred_fallthru
          _
        // Predicated region
        $region89: #{siglip_vision_forward.1} parent=55 // pred_check
          %p698 = pneg %p386
        $region90: #{siglip_vision_forward.1} parent=55 // pred_check_branch
          %700 = sbr.rel (%p698) target = $region92
        $region91: #{siglip_vision_forward.1} parent=55 // pred_region
          %p701 = scmp.lt.s32.totalorder %s32, 1
          %s702 = scalar_select %p701, %s32, 1
          %s703 = smul.addr %s702, 16
          %s704 = smul.addr %s703, 8
          %s705 = scalar_lea.vmem %s14, %s704
        $region92: #{siglip_vision_forward.1} parent=55 // pred_fallthru
          _
        // Predicated region
        $region93: #{siglip_vision_forward.1} parent=55 // pred_check
          %p706 = pneg %p412
        $region94: #{siglip_vision_forward.1} parent=55 // pred_check_branch
          %708 = sbr.rel (%p706) target = $region96
        $region95: #{siglip_vision_forward.1} parent=55 // pred_region
          %p709 = scmp.lt.s32.totalorder %s32, 1
          %s710 = scalar_select %p709, %s32, 1
          %s711 = scalar_lea.vmem %s15, %s710
        $region96: #{siglip_vision_forward.1} parent=55 // pred_fallthru
          _
        // Predicated region
        $region97: #{siglip_vision_forward.1} parent=55 // pred_check
          %p712 = pneg %p438
        $region98: #{siglip_vision_forward.1} parent=55 // pred_check_branch
          %714 = sbr.rel (%p712) target = $region100
        $region99: #{siglip_vision_forward.1} parent=55 // pred_region
          %p715 = scmp.lt.s32.totalorder %s32, 1
          %s716 = scalar_select %p715, %s32, 1
          %s717 = smul.addr %s716, 16
          %s718 = smul.addr %s717, 8
          %s719 = scalar_lea.vmem %s16, %s718
        $region100: #{siglip_vision_forward.1} parent=55 // pred_fallthru
          _
        // Predicated region
        $region101: #{siglip_vision_forward.1} parent=55 // pred_check
          %p720 = pneg %p464
        $region102: #{siglip_vision_forward.1} parent=55 // pred_check_branch
          %722 = sbr.rel (%p720) target = $region104
        $region103: #{siglip_vision_forward.1} parent=55 // pred_region
          %p723 = scmp.lt.s32.totalorder %s32, 1
          %s724 = scalar_select %p723, %s32, 1
          %s725 = scalar_lea.vmem %s17, %s724
        $region104: #{siglip_vision_forward.1} parent=55 // pred_fallthru
          _
      $region56: #{siglip_vision_forward.1} parent=5 // pred_fallthru
        _
      %p726 = scmp.le.s32.totalorder 1, %s32
      %p727 = scmp.lt.s32.totalorder %s32, 3
      %p728 = pnand %p726, %p727
      %p729 = pneg %p728
      // Predicated region
      $region105: #{siglip_vision_forward.1} parent=5 // pred_check
        _
      $region106: #{siglip_vision_forward.1} parent=5 // pred_check_branch
        %731 = sbr.rel (%p728) target = $region108
      $region107: #{siglip_vision_forward.1} parent=5 // pred_region
        %s732 = ssub.s32 %s32, 1
        %p733 = pneg %p53
        %p734 = pneg %p50
        %p735 = pneg %p74
        %p736 = pneg %p71
        %p737 = pneg %p95
        %p738 = pneg %p92
        %p739 = pneg %p116
        %p740 = pneg %p113
        %p741 = pneg %p137
        %p742 = pneg %p134
        %p743 = pneg %p158
        %p744 = pneg %p155
        %p745 = scmp.lt.s32.totalorder %s37, 1
        %s746 = scalar_select %p745, %s37, 1
        %s747 = scalar_lea.vmem %s6, %s746
        %p748 = pneg %p184
        %p749 = pneg %p181
        %p750 = scmp.lt.s32.totalorder %s37, 1
        %s751 = scalar_select %p750, %s37, 1
        %s752 = scalar_lea.vmem %s7, %s751
        %p753 = pneg %p210
        %p754 = pneg %p207
        %p755 = scmp.lt.s32.totalorder %s37, 1
        %s756 = scalar_select %p755, %s37, 1
        %s757 = smul.addr %s756, 48
        %s758 = smul.addr %s757, 8
        %s759 = scalar_lea.vmem %s8, %s758
        %p760 = pneg %p236
        %p761 = pneg %p233
        %p762 = scmp.lt.s32.totalorder %s37, 1
        %s763 = scalar_select %p762, %s37, 1
        %s764 = smul.addr %s763, 3
        %s765 = scalar_lea.vmem %s9, %s764
        %p766 = pneg %p262
        %p767 = pneg %p259
        %p768 = scmp.lt.s32.totalorder %s37, 1
        %s769 = scalar_select %p768, %s37, 1
        %s770 = smul.addr %s769, 16
        %s771 = smul.addr %s770, 8
        %s772 = scalar_lea.vmem %s10, %s771
        %p773 = pneg %p288
        %p774 = pneg %p285
        %p775 = scmp.lt.s32.totalorder %s37, 1
        %s776 = scalar_select %p775, %s37, 1
        %s777 = scalar_lea.vmem %s11, %s776
        %p778 = pneg %p314
        %p779 = pneg %p311
        %p780 = scmp.lt.s32.totalorder %s37, 1
        %s781 = scalar_select %p780, %s37, 1
        %s782 = scalar_lea.vmem %s12, %s781
        %p783 = pneg %p340
        %p784 = pneg %p337
        %p785 = scmp.lt.s32.totalorder %s37, 1
        %s786 = scalar_select %p785, %s37, 1
        %s787 = scalar_lea.vmem %s13, %s786
        %p788 = pneg %p366
        %p789 = pneg %p363
        %p790 = scmp.lt.s32.totalorder %s37, 1
        %s791 = scalar_select %p790, %s37, 1
        %s792 = smul.addr %s791, 16
        %s793 = smul.addr %s792, 8
        %s794 = scalar_lea.vmem %s14, %s793
        %p795 = pneg %p392
        %p796 = pneg %p389
        %p797 = scmp.lt.s32.totalorder %s37, 1
        %s798 = scalar_select %p797, %s37, 1
        %s799 = scalar_lea.vmem %s15, %s798
        %p800 = pneg %p418
        %p801 = pneg %p415
        %p802 = scmp.lt.s32.totalorder %s37, 1
        %s803 = scalar_select %p802, %s37, 1
        %s804 = smul.addr %s803, 16
        %s805 = smul.addr %s804, 8
        %s806 = scalar_lea.vmem %s16, %s805
        %p807 = pneg %p444
        %p808 = pneg %p441
        %p809 = scmp.lt.s32.totalorder %s37, 1
        %s810 = scalar_select %p809, %s37, 1
        %s811 = scalar_lea.vmem %s17, %s810
        %p812 = pneg %p470
        %p813 = pneg %p467
        %p814 = pneg %p491
        %p815 = pneg %p488
        %p816 = pneg %p512
        %p817 = pneg %p509
        %p818 = pneg %p533
        %p819 = pneg %p530
        %p820 = pneg %p554
        %p821 = pneg %p551
        %p822 = pneg %p575
        %p823 = pneg %p572
        %p824 = pneg %p596
        %p825 = pneg %p593
        %p826 = scmp.lt.s32.totalorder %s37, 1
        %s827 = scalar_select %p826, %s37, 1
        %s828 = scalar_lea.vmem %s6, %s827
        %p829 = scmp.lt.s32.totalorder %s37, 1
        %s830 = scalar_select %p829, %s37, 1
        %s831 = scalar_lea.vmem %s7, %s830
        %p832 = scmp.lt.s32.totalorder %s37, 1
        %s833 = scalar_select %p832, %s37, 1
        %s834 = smul.addr %s833, 48
        %s835 = smul.addr %s834, 8
        %s836 = scalar_lea.vmem %s8, %s835
        %p837 = scmp.lt.s32.totalorder %s37, 1
        %s838 = scalar_select %p837, %s37, 1
        %s839 = smul.addr %s838, 3
        %s840 = scalar_lea.vmem %s9, %s839
        %p841 = scmp.lt.s32.totalorder %s37, 1
        %s842 = scalar_select %p841, %s37, 1
        %s843 = smul.addr %s842, 16
        %s844 = smul.addr %s843, 8
        %s845 = scalar_lea.vmem %s10, %s844
        %p846 = scmp.lt.s32.totalorder %s37, 1
        %s847 = scalar_select %p846, %s37, 1
        %s848 = scalar_lea.vmem %s11, %s847
        %p849 = scmp.lt.s32.totalorder %s37, 1
        %s850 = scalar_select %p849, %s37, 1
        %s851 = scalar_lea.vmem %s12, %s850
        %p852 = scmp.lt.s32.totalorder %s37, 1
        %s853 = scalar_select %p852, %s37, 1
        %s854 = scalar_lea.vmem %s13, %s853
        %p855 = scmp.lt.s32.totalorder %s37, 1
        %s856 = scalar_select %p855, %s37, 1
        %s857 = smul.addr %s856, 16
        %s858 = smul.addr %s857, 8
        %s859 = scalar_lea.vmem %s14, %s858
        %p860 = scmp.lt.s32.totalorder %s37, 1
        %s861 = scalar_select %p860, %s37, 1
        %s862 = scalar_lea.vmem %s15, %s861
        %p863 = scmp.lt.s32.totalorder %s37, 1
        %s864 = scalar_select %p863, %s37, 1
        %s865 = smul.addr %s864, 16
        %s866 = smul.addr %s865, 8
        %s867 = scalar_lea.vmem %s16, %s866
        %p868 = scmp.lt.s32.totalorder %s37, 1
        %s869 = scalar_select %p868, %s37, 1
        %s870 = scalar_lea.vmem %s17, %s869
        %p871 = scmp.eq.s32.totalorder %s37, 0
        // Predicated region
        $region109: #{siglip_vision_forward.1} parent=107 // pred_check
          %p872 = pneg %p871
        $region110: #{siglip_vision_forward.1} parent=107 // pred_check_branch
          %874 = sbr.rel (%p872) target = $region112
        $region111: #{siglip_vision_forward.1} parent=107 // pred_region
          %v875 = vld [vmem:[%s0] sm:$0xff]
          %v876 = vld [vmem:[%s0 + $0x8] sm:$0xff]
          %v877 = vld [vmem:[%s1] sm:$0xff]
          %v878 = vld [vmem:[%s1 + $0x8] sm:$0xff]
          %v879 = vld [vmem:[%s1 + $0x10] sm:$0xff]
          %v880 = vld [vmem:[%s1 + $0x18] sm:$0xff]
          %v881 = vld [vmem:[%s1 + $0x20] sm:$0xff]
          %v882 = vld [vmem:[%s1 + $0x28] sm:$0xff]
          %v883 = vld [vmem:[%s1 + $0x30] sm:$0xff]
          %v884 = vld [vmem:[%s1 + $0x38] sm:$0xff]
          %v885 = vld [vmem:[%s1 + $0x40] sm:$0xff]
          %v886 = vld [vmem:[%s1 + $0x48] sm:$0xff]
          %v887 = vld [vmem:[%s1 + $0x50] sm:$0xff]
          %v888 = vld [vmem:[%s1 + $0x58] sm:$0xff]
          %v889 = vld [vmem:[%s1 + $0x60] sm:$0xff]
          %v890 = vld [vmem:[%s1 + $0x68] sm:$0xff]
          %v891 = vld [vmem:[%s1 + $0x70] sm:$0xff]
          %v892 = vld [vmem:[%s1 + $0x78] sm:$0xff]
          %v893 = vld [vmem:[%s1 + $0x80] sm:$0xff]
          %v894 = vld [vmem:[%s1 + $0x88] sm:$0xff]
          %v895 = vld [vmem:[%s1 + $0x90] sm:$0xff]
          %v896 = vld [vmem:[%s1 + $0x98] sm:$0xff]
          %v897 = vld [vmem:[%s1 + $0xa0] sm:$0xff]
          %v898 = vld [vmem:[%s1 + $0xa8] sm:$0xff]
          %v899 = vld [vmem:[%s1 + $0xb0] sm:$0xff]
          %v900 = vld [vmem:[%s1 + $0xb8] sm:$0xff]
          %v901 = vld [vmem:[%s1 + $0xc0] sm:$0xff]
          %v902 = vld [vmem:[%s1 + $0xc8] sm:$0xff]
          %v903 = vld [vmem:[%s1 + $0xd0] sm:$0xff]
          %v904 = vld [vmem:[%s1 + $0xd8] sm:$0xff]
          %v905 = vld [vmem:[%s1 + $0xe0] sm:$0xff]
          %v906 = vld [vmem:[%s1 + $0xe8] sm:$0xff]
          %v907 = vld [vmem:[%s1 + $0xf0] sm:$0xff]
          %v908 = vld [vmem:[%s1 + $0xf8] sm:$0xff]
          %v909 = vld [vmem:[%s2] sm:$0xff]
          %910 = vmatprep.subr.mxu0 0.0
          %911 = vmatpush1.msra.mxu0 %v877
          %912 = vmatprep.subr.mxu0 0.0
          %913 = vmatpush1.msra.mxu0 %v878
          %914 = vmatprep.subr.mxu0 0.0
          %915 = vmatpush1.msra.mxu0 %v879
          %916 = vmatprep.subr.mxu0 0.0
          %917 = vmatpush1.msra.mxu0 %v880
          %918 = vmatprep.subr.mxu0 0.0
          %919 = vmatpush1.msra.mxu0 %v881
          %920 = vmatprep.subr.mxu0 0.0
          %921 = vmatpush1.msra.mxu0 %v882
          %922 = vmatprep.subr.mxu0 0.0
          %923 = vmatpush1.msra.mxu0 %v883
          %924 = vmatprep.subr.mxu0 0.0
          %925 = vmatpush1.msra.mxu0 %v884
          %926 = vmatprep.subr.mxu0 0.0
          %927 = vmatpush1.msra.mxu0 %v885
          %928 = vmatprep.subr.mxu0 0.0
          %929 = vmatpush1.msra.mxu0 %v886
          %930 = vmatprep.subr.mxu0 0.0
          %931 = vmatpush1.msra.mxu0 %v887
          %932 = vmatprep.subr.mxu0 0.0
          %933 = vmatpush1.msra.mxu0 %v888
          %934 = vmatprep.subr.mxu0 0.0
          %935 = vmatpush1.msra.mxu0 %v889
          %936 = vmatprep.subr.mxu0 0.0
          %937 = vmatpush1.msra.mxu0 %v890
          %938 = vmatprep.subr.mxu0 0.0
          %939 = vmatpush1.msra.mxu0 %v891
          %940 = vmatprep.subr.mxu0 0.0
          %941 = vmatpush1.msra.mxu0 %v892
          %942 = vmatprep.subr.mxu0 0.0
          %943 = vmatpush1.msra.mxu0 %v893
          %944 = vmatprep.subr.mxu0 0.0
          %945 = vmatpush1.msra.mxu0 %v894
          %946 = vmatprep.subr.mxu0 0.0
          %947 = vmatpush1.msra.mxu0 %v895
          %948 = vmatprep.subr.mxu0 0.0
          %949 = vmatpush1.msra.mxu0 %v896
          %950 = vmatprep.subr.mxu0 0.0
          %951 = vmatpush1.msra.mxu0 %v897
          %952 = vmatprep.subr.mxu0 0.0
          %953 = vmatpush1.msra.mxu0 %v898
          %954 = vmatprep.subr.mxu0 0.0
          %955 = vmatpush1.msra.mxu0 %v899
          %956 = vmatprep.subr.mxu0 0.0
          %957 = vmatpush1.msra.mxu0 %v900
          %958 = vmatprep.subr.mxu0 0.0
          %959 = vmatpush1.msra.mxu0 %v901
          %960 = vmatprep.subr.mxu0 0.0
          %961 = vmatpush1.msra.mxu0 %v902
          %962 = vmatprep.subr.mxu0 0.0
          %963 = vmatpush1.msra.mxu0 %v903
          %964 = vmatprep.subr.mxu0 0.0
          %965 = vmatpush1.msra.mxu0 %v904
          %966 = vmatprep.subr.mxu0 0.0
          %967 = vmatpush1.msra.mxu0 %v905
          %968 = vmatprep.subr.mxu0 0.0
          %969 = vmatpush1.msra.mxu0 %v906
          %970 = vmatprep.subr.mxu0 0.0
          %971 = vmatpush1.msra.mxu0 %v907
          %972 = vmatprep.subr.mxu0 0.0
          %973 = vmatpush1.msra.mxu0 %v908
          %974 = vmatprep.mubr.f32.mxu0 %v876
          %975 = vmatmul.mubr.f32.gmra.mrb[0].mxu0 %v875
          %v976 = vpop.f32.mrb[0].mxu0
          %v977 = vadd.f32 %v909, %v976
          %v978 = vpop.f32.mrb[0].mxu0
          %979 = vdwg.mxu0
          %980 = vst [vmem:[#allocation2] sm:$0xff] %v977
        $region112: #{siglip_vision_forward.1} parent=107 // pred_fallthru
          _
        %v981 = vld [vmem:[#allocation2] sm:$0xff]
        %v982 = vld [vmem:[%s828] sm:$0x1]
        %v983 = vld [vmem:[%s831] sm:$0x1]
        %984 = vadd.xlane.f32.xlu0 %v981
        %v985 = vpop.xlane.xlu0 %984
        %v986 = vmul.f32 %v981, %v981
        %987 = vadd.xlane.f32.xlu0 %v986
        %v988 = vpop.xlane.xlu0 %987
        %v989 = vrcp.pop 32.0
        %v990 = vmul.f32 %v985, %v989
        %v991 = vmul.f32 %v988, %v989
        %v992 = vmul.f32 %v990, %v990
        %v993 = vsub.f32 %v991, %v992
        %v994 = vsub.f32 %v981, %v990
        %v995 = vadd.f32 %v993, 1e-06
        %v996 = vrsqrt.pop %v995
        %v997 = vmul.f32 %v994, %v996
        %v999 = vlaneseq
        %v1000 = vshrl.u32 %v999, 7
        %v1001 = vsub.s32 0, %v1000
        %v1002 = vrot.slane %v982, %v1001
        %v1004 = vmul.f32 %v997, %v1002
        %v1006 = vlaneseq
        %v1007 = vshrl.u32 %v1006, 7
        %v1008 = vsub.s32 0, %v1007
        %v1009 = vrot.slane %v983, %v1008
        %v1011 = vadd.f32 %v1004, %v1009
        %v1012 = vld [vmem:[%s836] sm:$0xff]
        %v1013 = vld [vmem:[%s836 + $0x8] sm:$0xff]
        %v1014 = vld [vmem:[%s836 + $0x10] sm:$0xff]
        %v1015 = vld [vmem:[%s836 + $0x18] sm:$0xff]
        %v1016 = vld [vmem:[%s836 + $0x20] sm:$0xff]
        %v1017 = vld [vmem:[%s836 + $0x28] sm:$0xff]
        %v1018 = vld [vmem:[%s836 + $0x30] sm:$0xff]
        %v1019 = vld [vmem:[%s836 + $0x38] sm:$0xff]
        %v1020 = vld [vmem:[%s836 + $0x40] sm:$0xff]
        %v1021 = vld [vmem:[%s836 + $0x48] sm:$0xff]
        %v1022 = vld [vmem:[%s836 + $0x50] sm:$0xff]
        %v1023 = vld [vmem:[%s836 + $0x58] sm:$0xff]
        %v1024 = vld [vmem:[%s836 + $0x60] sm:$0xff]
        %v1025 = vld [vmem:[%s836 + $0x68] sm:$0xff]
        %v1026 = vld [vmem:[%s836 + $0x70] sm:$0xff]
        %v1027 = vld [vmem:[%s836 + $0x78] sm:$0xff]
        %v1028 = vld [vmem:[%s836 + $0x80] sm:$0xff]
        %v1029 = vld [vmem:[%s836 + $0x88] sm:$0xff]
        %v1030 = vld [vmem:[%s836 + $0x90] sm:$0xff]
        %v1031 = vld [vmem:[%s836 + $0x98] sm:$0xff]
        %v1032 = vld [vmem:[%s836 + $0xa0] sm:$0xff]
        %v1033 = vld [vmem:[%s836 + $0xa8] sm:$0xff]
        %v1034 = vld [vmem:[%s836 + $0xb0] sm:$0xff]
        %v1035 = vld [vmem:[%s836 + $0xb8] sm:$0xff]
        %v1036 = vld [vmem:[%s836 + $0xc0] sm:$0xff]
        %v1037 = vld [vmem:[%s836 + $0xc8] sm:$0xff]
        %v1038 = vld [vmem:[%s836 + $0xd0] sm:$0xff]
        %v1039 = vld [vmem:[%s836 + $0xd8] sm:$0xff]
        %v1040 = vld [vmem:[%s836 + $0xe0] sm:$0xff]
        %v1041 = vld [vmem:[%s836 + $0xe8] sm:$0xff]
        %v1042 = vld [vmem:[%s836 + $0xf0] sm:$0xff]
        %v1043 = vld [vmem:[%s836 + $0xf8] sm:$0xff]
        %v1044 = vld [vmem:[%s836 + $0x100] sm:$0xff]
        %v1045 = vld [vmem:[%s836 + $0x108] sm:$0xff]
        %v1046 = vld [vmem:[%s836 + $0x110] sm:$0xff]
        %v1047 = vld [vmem:[%s836 + $0x118] sm:$0xff]
        %v1048 = vld [vmem:[%s836 + $0x120] sm:$0xff]
        %v1049 = vld [vmem:[%s836 + $0x128] sm:$0xff]
        %v1050 = vld [vmem:[%s836 + $0x130] sm:$0xff]
        %v1051 = vld [vmem:[%s836 + $0x138] sm:$0xff]
        %v1052 = vld [vmem:[%s836 + $0x140] sm:$0xff]
        %v1053 = vld [vmem:[%s836 + $0x148] sm:$0xff]
        %v1054 = vld [vmem:[%s836 + $0x150] sm:$0xff]
        %v1055 = vld [vmem:[%s836 + $0x158] sm:$0xff]
        %v1056 = vld [vmem:[%s836 + $0x160] sm:$0xff]
        %v1057 = vld [vmem:[%s836 + $0x168] sm:$0xff]
        %v1058 = vld [vmem:[%s836 + $0x170] sm:$0xff]
        %v1059 = vld [vmem:[%s836 + $0x178] sm:$0xff]
        %v1060 = vld [vmem:[%s840] sm:$0x7]
        %v1062 = vlaneseq
        %v1063 = vshrl.u32 %v1062, 7
        %v1064 = vsub.s32 0, %v1063
        %v1065 = vrot.slane %v1060, %v1064
        %v1066 = vlaneseq
        %v1067 = vshrl.u32 %v1066, 7
        %v1068 = vsub.s32 1, %v1067
        %v1069 = vrot.slane %v1060, %v1068
        %v1070 = vlaneseq
        %v1071 = vshrl.u32 %v1070, 7
        %v1072 = vsub.s32 2, %v1071
        %v1073 = vrot.slane %v1060, %v1072
        %1077 = vmatprep.subr.mxu0 %v1013
        %1078 = vmatpush1.msra.mxu0 %v1012
        %1079 = vmatprep.subr.mxu0 %v1016
        %1080 = vmatpush1.msra.mxu0 %v1015
        %1081 = vmatprep.subr.mxu0 %v1019
        %1082 = vmatpush1.msra.mxu0 %v1018
        %1083 = vmatprep.subr.mxu0 %v1022
        %1084 = vmatpush1.msra.mxu0 %v1021
        %1085 = vmatprep.subr.mxu0 %v1025
        %1086 = vmatpush1.msra.mxu0 %v1024
        %1087 = vmatprep.subr.mxu0 %v1028
        %1088 = vmatpush1.msra.mxu0 %v1027
        %1089 = vmatprep.subr.mxu0 %v1031
        %1090 = vmatpush1.msra.mxu0 %v1030
        %1091 = vmatprep.subr.mxu0 %v1034
        %1092 = vmatpush1.msra.mxu0 %v1033
        %1093 = vmatprep.subr.mxu0 %v1037
        %1094 = vmatpush1.msra.mxu0 %v1036
        %1095 = vmatprep.subr.mxu0 %v1040
        %1096 = vmatpush1.msra.mxu0 %v1039
        %1097 = vmatprep.subr.mxu0 %v1043
        %1098 = vmatpush1.msra.mxu0 %v1042
        %1099 = vmatprep.subr.mxu0 %v1046
        %1100 = vmatpush1.msra.mxu0 %v1045
        %1101 = vmatprep.subr.mxu0 %v1049
        %1102 = vmatpush1.msra.mxu0 %v1048
        %1103 = vmatprep.subr.mxu0 %v1052
        %1104 = vmatpush1.msra.mxu0 %v1051
        %1105 = vmatprep.subr.mxu0 %v1055
        %1106 = vmatpush1.msra.mxu0 %v1054
        %1107 = vmatprep.subr.mxu0 %v1058
        %1108 = vmatpush1.msra.mxu0 %v1057
        %1109 = vmatprep.subr.mxu0 0.0
        %1110 = vmatpush1.msra.mxu0 0.0
        %1111 = vmatprep.subr.mxu0 0.0
        %1112 = vmatpush1.msra.mxu0 0.0
        %1113 = vmatprep.subr.mxu0 0.0
        %1114 = vmatpush1.msra.mxu0 0.0
        %1115 = vmatprep.subr.mxu0 0.0
        %1116 = vmatpush1.msra.mxu0 0.0
        %1117 = vmatprep.subr.mxu0 0.0
        %1118 = vmatpush1.msra.mxu0 0.0
        %1119 = vmatprep.subr.mxu0 0.0
        %1120 = vmatpush1.msra.mxu0 0.0
        %1121 = vmatprep.subr.mxu0 0.0
        %1122 = vmatpush1.msra.mxu0 0.0
        %1123 = vmatprep.subr.mxu0 0.0
        %1124 = vmatpush1.msra.mxu0 0.0
        %1125 = vmatprep.subr.mxu0 0.0
        %1126 = vmatpush1.msra.mxu0 0.0
        %1127 = vmatprep.subr.mxu0 0.0
        %1128 = vmatpush1.msra.mxu0 0.0
        %1129 = vmatprep.subr.mxu0 0.0
        %1130 = vmatpush1.msra.mxu0 0.0
        %1131 = vmatprep.subr.mxu0 0.0
        %1132 = vmatpush1.msra.mxu0 0.0
        %1133 = vmatprep.subr.mxu0 0.0
        %1134 = vmatpush1.msra.mxu0 0.0
        %1135 = vmatprep.subr.mxu0 0.0
        %1136 = vmatpush1.msra.mxu0 0.0
        %1137 = vmatprep.subr.mxu0 0.0
        %1138 = vmatpush1.msra.mxu0 0.0
        %1139 = vmatprep.subr.mxu0 0.0
        %1140 = vmatpush1.msra.mxu0 0.0
        %1141 = vmatprep.mubr.f32.mxu0 0.0
        %1142 = vmatmul.mubr.f32.gmra.mrb[0].mxu0 %v1011
        %v1143 = vpop.f32.mrb[0].mxu0
        %v1144 = vadd.f32 %v1065, %v1143
        %v1145 = vpop.f32.mrb[0].mxu0
        %v1146 = vadd.f32 %v1069, %v1145
        %1147 = vdwg.mxu0
        %1148 = vmatprep.subr.mxu0 0.0
        %1149 = vmatpush1.msra.mxu0 %v1014
        %1150 = vmatprep.subr.mxu0 0.0
        %1151 = vmatpush1.msra.mxu0 %v1017
        %1152 = vmatprep.subr.mxu0 0.0
        %1153 = vmatpush1.msra.mxu0 %v1020
        %1154 = vmatprep.subr.mxu0 0.0
        %1155 = vmatpush1.msra.mxu0 %v1023
        %1156 = vmatprep.subr.mxu0 0.0
        %1157 = vmatpush1.msra.mxu0 %v1026
        %1158 = vmatprep.subr.mxu0 0.0
        %1159 = vmatpush1.msra.mxu0 %v1029
        %1160 = vmatprep.subr.mxu0 0.0
        %1161 = vmatpush1.msra.mxu0 %v1032
        %1162 = vmatprep.subr.mxu0 0.0
        %1163 = vmatpush1.msra.mxu0 %v1035
        %1164 = vmatprep.subr.mxu0 0.0
        %1165 = vmatpush1.msra.mxu0 %v1038
        %1166 = vmatprep.subr.mxu0 0.0
        %1167 = vmatpush1.msra.mxu0 %v1041
        %1168 = vmatprep.subr.mxu0 0.0
        %1169 = vmatpush1.msra.mxu0 %v1044
        %1170 = vmatprep.subr.mxu0 0.0
        %1171 = vmatpush1.msra.mxu0 %v1047
        %1172 = vmatprep.subr.mxu0 0.0
        %1173 = vmatpush1.msra.mxu0 %v1050
        %1174 = vmatprep.subr.mxu0 0.0
        %1175 = vmatpush1.msra.mxu0 %v1053
        %1176 = vmatprep.subr.mxu0 0.0
        %1177 = vmatpush1.msra.mxu0 %v1056
        %1178 = vmatprep.subr.mxu0 0.0
        %1179 = vmatpush1.msra.mxu0 %v1059
        %1180 = vmatprep.subr.mxu0 0.0
        %1181 = vmatpush1.msra.mxu0 0.0
        %1182 = vmatprep.subr.mxu0 0.0
        %1183 = vmatpush1.msra.mxu0 0.0
        %1184 = vmatprep.subr.mxu0 0.0
        %1185 = vmatpush1.msra.mxu0 0.0
        %1186 = vmatprep.subr.mxu0 0.0
        %1187 = vmatpush1.msra.mxu0 0.0
        %1188 = vmatprep.subr.mxu0 0.0
        %1189 = vmatpush1.msra.mxu0 0.0
        %1190 = vmatprep.subr.mxu0 0.0
        %1191 = vmatpush1.msra.mxu0 0.0
        %1192 = vmatprep.subr.mxu0 0.0
        %1193 = vmatpush1.msra.mxu0 0.0
        %1194 = vmatprep.subr.mxu0 0.0
        %1195 = vmatpush1.msra.mxu0 0.0
        %1196 = vmatprep.subr.mxu0 0.0
        %1197 = vmatpush1.msra.mxu0 0.0
        %1198 = vmatprep.subr.mxu0 0.0
        %1199 = vmatpush1.msra.mxu0 0.0
        %1200 = vmatprep.subr.mxu0 0.0
        %1201 = vmatpush1.msra.mxu0 0.0
        %1202 = vmatprep.subr.mxu0 0.0
        %1203 = vmatpush1.msra.mxu0 0.0
        %1204 = vmatprep.subr.mxu0 0.0
        %1205 = vmatpush1.msra.mxu0 0.0
        %1206 = vmatprep.subr.mxu0 0.0
        %1207 = vmatpush1.msra.mxu0 0.0
        %1208 = vmatprep.subr.mxu0 0.0
        %1209 = vmatpush1.msra.mxu0 0.0
        %1210 = vmatprep.subr.mxu0 0.0
        %1211 = vmatpush1.msra.mxu0 0.0
        %1212 = vmatprep.mubr.f32.mxu0 0.0
        %1213 = vmatmul.mubr.f32.gmra.mrb[0].mxu0 %v1011
        %v1214 = vpop.f32.mrb[0].mxu0
        %v1215 = vadd.f32 %v1073, %v1214
        %v1216 = vpop.f32.mrb[0].mxu0
        %1217 = vdwg.mxu0
        %v1218 = vmul.f32 %v1144, 0.35355338
        %v1219 = vld [vmem:[%s3] sm:$0xff]
        %v1220 = vld [vmem:[%s5] sm:$0xf]
        %v1221 = vlaneseq
        %v1222 = vshrl.u32 %v1221, 7
        %v1223 = vsub.s32 0, %v1222
        %v1224 = vrot.slane %v1220, %v1223
        %v1225 = vmul.f32 %v1146, %v1224
        %v1226 = vmul.f32 %v1215, %v1224
        %1227 = vmatprep.subr.mxu0 0.0
        %1228 = vmatpush1.xpose.msra.mxu0 %v1225
        %1229 = vmatprep.subr.mxu0 0.0
        %1230 = vmatpush1.xpose.msra.mxu0 0.0
        %1231 = vmatprep.subr.mxu0 0.0
        %1232 = vmatpush1.xpose.msra.mxu0 0.0
        %1233 = vmatprep.subr.mxu0 0.0
        %1234 = vmatpush1.xpose.msra.mxu0 0.0
        %1235 = vmatprep.subr.mxu0 0.0
        %1236 = vmatpush1.xpose.msra.mxu0 0.0
        %1237 = vmatprep.subr.mxu0 0.0
        %1238 = vmatpush1.xpose.msra.mxu0 0.0
        %1239 = vmatprep.subr.mxu0 0.0
        %1240 = vmatpush1.xpose.msra.mxu0 0.0
        %1241 = vmatprep.subr.mxu0 0.0
        %1242 = vmatpush1.xpose.msra.mxu0 0.0
        %1243 = vmatprep.subr.mxu0 0.0
        %1244 = vmatpush1.xpose.msra.mxu0 0.0
        %1245 = vmatprep.subr.mxu0 0.0
        %1246 = vmatpush1.xpose.msra.mxu0 0.0
        %1247 = vmatprep.subr.mxu0 0.0
        %1248 = vmatpush1.xpose.msra.mxu0 0.0
        %1249 = vmatprep.subr.mxu0 0.0
        %1250 = vmatpush1.xpose.msra.mxu0 0.0
        %1251 = vmatprep.subr.mxu0 0.0
        %1252 = vmatpush1.xpose.msra.mxu0 0.0
        %1253 = vmatprep.subr.mxu0 0.0
        %1254 = vmatpush1.xpose.msra.mxu0 0.0
        %1255 = vmatprep.subr.mxu0 0.0
        %1256 = vmatpush1.xpose.msra.mxu0 0.0
        %1257 = vmatprep.subr.mxu0 0.0
        %1258 = vmatpush1.xpose.msra.mxu0 0.0
        %1259 = vmatprep.subr.mxu0 0.0
        %1260 = vmatpush1.xpose.msra.mxu0 0.0
        %1261 = vmatprep.subr.mxu0 0.0
        %1262 = vmatpush1.xpose.msra.mxu0 0.0
        %1263 = vmatprep.subr.mxu0 0.0
        %1264 = vmatpush1.xpose.msra.mxu0 0.0
        %1265 = vmatprep.subr.mxu0 0.0
        %1266 = vmatpush1.xpose.msra.mxu0 0.0
        %1267 = vmatprep.subr.mxu0 0.0
        %1268 = vmatpush1.xpose.msra.mxu0 0.0
        %1269 = vmatprep.subr.mxu0 0.0
        %1270 = vmatpush1.xpose.msra.mxu0 0.0
        %1271 = vmatprep.subr.mxu0 0.0
        %1272 = vmatpush1.xpose.msra.mxu0 0.0
        %1273 = vmatprep.subr.mxu0 0.0
        %1274 = vmatpush1.xpose.msra.mxu0 0.0
        %1275 = vmatprep.subr.mxu0 0.0
        %1276 = vmatpush1.xpose.msra.mxu0 0.0
        %1277 = vmatprep.subr.mxu0 0.0
        %1278 = vmatpush1.xpose.msra.mxu0 0.0
        %1279 = vmatprep.subr.mxu0 0.0
        %1280 = vmatpush1.xpose.msra.mxu0 0.0
        %1281 = vmatprep.subr.mxu0 0.0
        %1282 = vmatpush1.xpose.msra.mxu0 0.0
        %1283 = vmatprep.subr.mxu0 0.0
        %1284 = vmatpush1.xpose.msra.mxu0 0.0
        %1285 = vmatprep.subr.mxu0 0.0
        %1286 = vmatpush1.xpose.msra.mxu0 0.0
        %1287 = vmatprep.subr.mxu0 0.0
        %1288 = vmatpush1.xpose.msra.mxu0 0.0
        %1289 = vmatprep.subr.mxu0 0.0
        %1290 = vmatpush1.xpose.msra.mxu0 0.0
        %1291 = vmatprep.mubr.f32.mxu0 0.0
        %1292 = vmatmul.mubr.f32.gmra.mrb[0].mxu0 %v1218
        %v1293 = vpop.f32.mrb[0].mxu0
        %v1294 = vadd.f32 %v1219, %v1293
        %v1295 = vpop.f32.mrb[0].mxu0
        %1296 = vdwg.mxu0
        %vm1297 = vcmask 64512
        %v1298 = vsel %vm1297, %v1294, -inf
        %1299 = vmax.xlane.f32.xlu0 %v1298
        %v1300 = vpop.xlane.xlu0 %1299
        %v1301 = vsub.f32 %v1294, %v1300
        %v1302 = vmul.f32 %v1301, 1.442695
        %v1303 = vpow.pop %v1302
        %v1304 = vsel %vm1297, %v1303, 0.0
        %1305 = vadd.xlane.f32.xlu0 %v1304
        %v1306 = vpop.xlane.xlu0 %1305
        %v1307 = vrcp.pop %v1306
        %v1308 = vmul.f32 %v1303, %v1307
        %v1309 = vlaneseq
        %v1310 = vshrl.u32 %v1309, 7
        %v1311 = vsub.s32 1, %v1310
        %v1312 = vrot.slane %v1220, %v1311
        %v1313 = vmul.f32 %v1146, %v1312
        %v1314 = vmul.f32 %v1215, %v1312
        %1315 = vmatprep.subr.mxu0 0.0
        %1316 = vmatpush1.xpose.msra.mxu0 %v1313
        %1317 = vmatprep.subr.mxu0 0.0
        %1318 = vmatpush1.xpose.msra.mxu0 0.0
        %1319 = vmatprep.subr.mxu0 0.0
        %1320 = vmatpush1.xpose.msra.mxu0 0.0
        %1321 = vmatprep.subr.mxu0 0.0
        %1322 = vmatpush1.xpose.msra.mxu0 0.0
        %1323 = vmatprep.subr.mxu0 0.0
        %1324 = vmatpush1.xpose.msra.mxu0 0.0
        %1325 = vmatprep.subr.mxu0 0.0
        %1326 = vmatpush1.xpose.msra.mxu0 0.0
        %1327 = vmatprep.subr.mxu0 0.0
        %1328 = vmatpush1.xpose.msra.mxu0 0.0
        %1329 = vmatprep.subr.mxu0 0.0
        %1330 = vmatpush1.xpose.msra.mxu0 0.0
        %1331 = vmatprep.subr.mxu0 0.0
        %1332 = vmatpush1.xpose.msra.mxu0 0.0
        %1333 = vmatprep.subr.mxu0 0.0
        %1334 = vmatpush1.xpose.msra.mxu0 0.0
        %1335 = vmatprep.subr.mxu0 0.0
        %1336 = vmatpush1.xpose.msra.mxu0 0.0
        %1337 = vmatprep.subr.mxu0 0.0
        %1338 = vmatpush1.xpose.msra.mxu0 0.0
        %1339 = vmatprep.subr.mxu0 0.0
        %1340 = vmatpush1.xpose.msra.mxu0 0.0
        %1341 = vmatprep.subr.mxu0 0.0
        %1342 = vmatpush1.xpose.msra.mxu0 0.0
        %1343 = vmatprep.subr.mxu0 0.0
        %1344 = vmatpush1.xpose.msra.mxu0 0.0
        %1345 = vmatprep.subr.mxu0 0.0
        %1346 = vmatpush1.xpose.msra.mxu0 0.0
        %1347 = vmatprep.subr.mxu0 0.0
        %1348 = vmatpush1.xpose.msra.mxu0 0.0
        %1349 = vmatprep.subr.mxu0 0.0
        %1350 = vmatpush1.xpose.msra.mxu0 0.0
        %1351 = vmatprep.subr.mxu0 0.0
        %1352 = vmatpush1.xpose.msra.mxu0 0.0
        %1353 = vmatprep.subr.mxu0 0.0
        %1354 = vmatpush1.xpose.msra.mxu0 0.0
        %1355 = vmatprep.subr.mxu0 0.0
        %1356 = vmatpush1.xpose.msra.mxu0 0.0
        %1357 = vmatprep.subr.mxu0 0.0
        %1358 = vmatpush1.xpose.msra.mxu0 0.0
        %1359 = vmatprep.subr.mxu0 0.0
        %1360 = vmatpush1.xpose.msra.mxu0 0.0
        %1361 = vmatprep.subr.mxu0 0.0
        %1362 = vmatpush1.xpose.msra.mxu0 0.0
        %1363 = vmatprep.subr.mxu0 0.0
        %1364 = vmatpush1.xpose.msra.mxu0 0.0
        %1365 = vmatprep.subr.mxu0 0.0
        %1366 = vmatpush1.xpose.msra.mxu0 0.0
        %1367 = vmatprep.subr.mxu0 0.0
        %1368 = vmatpush1.xpose.msra.mxu0 0.0
        %1369 = vmatprep.subr.mxu0 0.0
        %1370 = vmatpush1.xpose.msra.mxu0 0.0
        %1371 = vmatprep.subr.mxu0 0.0
        %1372 = vmatpush1.xpose.msra.mxu0 0.0
        %1373 = vmatprep.subr.mxu0 0.0
        %1374 = vmatpush1.xpose.msra.mxu0 0.0
        %1375 = vmatprep.subr.mxu0 0.0
        %1376 = vmatpush1.xpose.msra.mxu0 0.0
        %1377 = vmatprep.subr.mxu0 0.0
        %1378 = vmatpush1.xpose.msra.mxu0 0.0
        %1379 = vmatprep.mubr.f32.mxu0 0.0
        %1380 = vmatmul.mubr.f32.gmra.mrb[0].mxu0 %v1218
        %v1381 = vpop.f32.mrb[0].mxu0
        %v1382 = vadd.f32 %v1219, %v1381
        %v1383 = vpop.f32.mrb[0].mxu0
        %1384 = vdwg.mxu0
        %v1385 = vsel %vm1297, %v1382, -inf
        %1386 = vmax.xlane.f32.xlu0 %v1385
        %v1387 = vpop.xlane.xlu0 %1386
        %v1388 = vsub.f32 %v1382, %v1387
        %v1389 = vmul.f32 %v1388, 1.442695
        %v1390 = vpow.pop %v1389
        %v1391 = vsel %vm1297, %v1390, 0.0
        %1392 = vadd.xlane.f32.xlu0 %v1391
        %v1393 = vpop.xlane.xlu0 %1392
        %v1394 = vrcp.pop %v1393
        %v1395 = vmul.f32 %v1390, %v1394
        %v1397 = vsel %vm1297, %v1395, 0
        %1399 = vmatprep.subr.mxu0 0.0
        %1400 = vmatpush1.msra.mxu0 %v1314
        %1401 = vmatprep.subr.mxu0 0.0
        %1402 = vmatpush1.msra.mxu0 0.0
        %1403 = vmatprep.subr.mxu0 0.0
        %1404 = vmatpush1.msra.mxu0 0.0
        %1405 = vmatprep.subr.mxu0 0.0
        %1406 = vmatpush1.msra.mxu0 0.0
        %1407 = vmatprep.subr.mxu0 0.0
        %1408 = vmatpush1.msra.mxu0 0.0
        %1409 = vmatprep.subr.mxu0 0.0
        %1410 = vmatpush1.msra.mxu0 0.0
        %1411 = vmatprep.subr.mxu0 0.0
        %1412 = vmatpush1.msra.mxu0 0.0
        %1413 = vmatprep.subr.mxu0 0.0
        %1414 = vmatpush1.msra.mxu0 0.0
        %1415 = vmatprep.subr.mxu0 0.0
        %1416 = vmatpush1.msra.mxu0 0.0
        %1417 = vmatprep.subr.mxu0 0.0
        %1418 = vmatpush1.msra.mxu0 0.0
        %1419 = vmatprep.subr.mxu0 0.0
        %1420 = vmatpush1.msra.mxu0 0.0
        %1421 = vmatprep.subr.mxu0 0.0
        %1422 = vmatpush1.msra.mxu0 0.0
        %1423 = vmatprep.subr.mxu0 0.0
        %1424 = vmatpush1.msra.mxu0 0.0
        %1425 = vmatprep.subr.mxu0 0.0
        %1426 = vmatpush1.msra.mxu0 0.0
        %1427 = vmatprep.subr.mxu0 0.0
        %1428 = vmatpush1.msra.mxu0 0.0
        %1429 = vmatprep.subr.mxu0 0.0
        %1430 = vmatpush1.msra.mxu0 0.0
        %1431 = vmatprep.subr.mxu0 0.0
        %1432 = vmatpush1.msra.mxu0 0.0
        %1433 = vmatprep.subr.mxu0 0.0
        %1434 = vmatpush1.msra.mxu0 0.0
        %1435 = vmatprep.subr.mxu0 0.0
        %1436 = vmatpush1.msra.mxu0 0.0
        %1437 = vmatprep.subr.mxu0 0.0
        %1438 = vmatpush1.msra.mxu0 0.0
        %1439 = vmatprep.subr.mxu0 0.0
        %1440 = vmatpush1.msra.mxu0 0.0
        %1441 = vmatprep.subr.mxu0 0.0
        %1442 = vmatpush1.msra.mxu0 0.0
        %1443 = vmatprep.subr.mxu0 0.0
        %1444 = vmatpush1.msra.mxu0 0.0
        %1445 = vmatprep.subr.mxu0 0.0
        %1446 = vmatpush1.msra.mxu0 0.0
        %1447 = vmatprep.subr.mxu0 0.0
        %1448 = vmatpush1.msra.mxu0 0.0
        %1449 = vmatprep.subr.mxu0 0.0
        %1450 = vmatpush1.msra.mxu0 0.0
        %1451 = vmatprep.subr.mxu0 0.0
        %1452 = vmatpush1.msra.mxu0 0.0
        %1453 = vmatprep.subr.mxu0 0.0
        %1454 = vmatpush1.msra.mxu0 0.0
        %1455 = vmatprep.subr.mxu0 0.0
        %1456 = vmatpush1.msra.mxu0 0.0
        %1457 = vmatprep.subr.mxu0 0.0
        %1458 = vmatpush1.msra.mxu0 0.0
        %1459 = vmatprep.subr.mxu0 0.0
        %1460 = vmatpush1.msra.mxu0 0.0
        %1461 = vmatprep.subr.mxu0 0.0
        %1462 = vmatpush1.msra.mxu0 0.0
        %1463 = vmatprep.mubr.f32.mxu0 0.0
        %1464 = vmatmul.mubr.f32.gmra.mrb[0].mxu0 %v1397
        %v1465 = vpop.f32.mrb[0].mxu0
        %v1466 = vadd.f32 0.0, %v1465
        %v1467 = vpop.f32.mrb[0].mxu0
        %1468 = vdwg.mxu0
        %v1470 = vsel %vm1297, %v1308, 0
        %1472 = vmatprep.subr.mxu0 0.0
        %1473 = vmatpush1.msra.mxu0 %v1226
        %1474 = vmatprep.subr.mxu0 0.0
        %1475 = vmatpush1.msra.mxu0 0.0
        %1476 = vmatprep.subr.mxu0 0.0
        %1477 = vmatpush1.msra.mxu0 0.0
        %1478 = vmatprep.subr.mxu0 0.0
        %1479 = vmatpush1.msra.mxu0 0.0
        %1480 = vmatprep.subr.mxu0 0.0
        %1481 = vmatpush1.msra.mxu0 0.0
        %1482 = vmatprep.subr.mxu0 0.0
        %1483 = vmatpush1.msra.mxu0 0.0
        %1484 = vmatprep.subr.mxu0 0.0
        %1485 = vmatpush1.msra.mxu0 0.0
        %1486 = vmatprep.subr.mxu0 0.0
        %1487 = vmatpush1.msra.mxu0 0.0
        %1488 = vmatprep.subr.mxu0 0.0
        %1489 = vmatpush1.msra.mxu0 0.0
        %1490 = vmatprep.subr.mxu0 0.0
        %1491 = vmatpush1.msra.mxu0 0.0
        %1492 = vmatprep.subr.mxu0 0.0
        %1493 = vmatpush1.msra.mxu0 0.0
        %1494 = vmatprep.subr.mxu0 0.0
        %1495 = vmatpush1.msra.mxu0 0.0
        %1496 = vmatprep.subr.mxu0 0.0
        %1497 = vmatpush1.msra.mxu0 0.0
        %1498 = vmatprep.subr.mxu0 0.0
        %1499 = vmatpush1.msra.mxu0 0.0
        %1500 = vmatprep.subr.mxu0 0.0
        %1501 = vmatpush1.msra.mxu0 0.0
        %1502 = vmatprep.subr.mxu0 0.0
        %1503 = vmatpush1.msra.mxu0 0.0
        %1504 = vmatprep.subr.mxu0 0.0
        %1505 = vmatpush1.msra.mxu0 0.0
        %1506 = vmatprep.subr.mxu0 0.0
        %1507 = vmatpush1.msra.mxu0 0.0
        %1508 = vmatprep.subr.mxu0 0.0
        %1509 = vmatpush1.msra.mxu0 0.0
        %1510 = vmatprep.subr.mxu0 0.0
        %1511 = vmatpush1.msra.mxu0 0.0
        %1512 = vmatprep.subr.mxu0 0.0
        %1513 = vmatpush1.msra.mxu0 0.0
        %1514 = vmatprep.subr.mxu0 0.0
        %1515 = vmatpush1.msra.mxu0 0.0
        %1516 = vmatprep.subr.mxu0 0.0
        %1517 = vmatpush1.msra.mxu0 0.0
        %1518 = vmatprep.subr.mxu0 0.0
        %1519 = vmatpush1.msra.mxu0 0.0
        %1520 = vmatprep.subr.mxu0 0.0
        %1521 = vmatpush1.msra.mxu0 0.0
        %1522 = vmatprep.subr.mxu0 0.0
        %1523 = vmatpush1.msra.mxu0 0.0
        %1524 = vmatprep.subr.mxu0 0.0
        %1525 = vmatpush1.msra.mxu0 0.0
        %1526 = vmatprep.subr.mxu0 0.0
        %1527 = vmatpush1.msra.mxu0 0.0
        %1528 = vmatprep.subr.mxu0 0.0
        %1529 = vmatpush1.msra.mxu0 0.0
        %1530 = vmatprep.subr.mxu0 0.0
        %1531 = vmatpush1.msra.mxu0 0.0
        %1532 = vmatprep.subr.mxu0 0.0
        %1533 = vmatpush1.msra.mxu0 0.0
        %1534 = vmatprep.subr.mxu0 0.0
        %1535 = vmatpush1.msra.mxu0 0.0
        %1536 = vmatprep.mubr.f32.mxu0 0.0
        %1537 = vmatmul.mubr.f32.gmra.mrb[0].mxu0 %v1470
        %v1538 = vpop.f32.mrb[0].mxu0
        %v1539 = vadd.f32 %v1466, %v1538
        %v1540 = vpop.f32.mrb[0].mxu0
        %1541 = vdwg.mxu0
        %v1542 = vlaneseq
        %v1543 = vshrl.u32 %v1542, 7
        %v1544 = vsub.s32 2, %v1543
        %v1545 = vrot.slane %v1220, %v1544
        %v1546 = vmul.f32 %v1146, %v1545
        %v1547 = vmul.f32 %v1215, %v1545
        %1548 = vmatprep.subr.mxu0 0.0
        %1549 = vmatpush1.xpose.msra.mxu0 %v1546
        %1550 = vmatprep.subr.mxu0 0.0
        %1551 = vmatpush1.xpose.msra.mxu0 0.0
        %1552 = vmatprep.subr.mxu0 0.0
        %1553 = vmatpush1.xpose.msra.mxu0 0.0
        %1554 = vmatprep.subr.mxu0 0.0
        %1555 = vmatpush1.xpose.msra.mxu0 0.0
        %1556 = vmatprep.subr.mxu0 0.0
        %1557 = vmatpush1.xpose.msra.mxu0 0.0
        %1558 = vmatprep.subr.mxu0 0.0
        %1559 = vmatpush1.xpose.msra.mxu0 0.0
        %1560 = vmatprep.subr.mxu0 0.0
        %1561 = vmatpush1.xpose.msra.mxu0 0.0
        %1562 = vmatprep.subr.mxu0 0.0
        %1563 = vmatpush1.xpose.msra.mxu0 0.0
        %1564 = vmatprep.subr.mxu0 0.0
        %1565 = vmatpush1.xpose.msra.mxu0 0.0
        %1566 = vmatprep.subr.mxu0 0.0
        %1567 = vmatpush1.xpose.msra.mxu0 0.0
        %1568 = vmatprep.subr.mxu0 0.0
        %1569 = vmatpush1.xpose.msra.mxu0 0.0
        %1570 = vmatprep.subr.mxu0 0.0
        %1571 = vmatpush1.xpose.msra.mxu0 0.0
        %1572 = vmatprep.subr.mxu0 0.0
        %1573 = vmatpush1.xpose.msra.mxu0 0.0
        %1574 = vmatprep.subr.mxu0 0.0
        %1575 = vmatpush1.xpose.msra.mxu0 0.0
        %1576 = vmatprep.subr.mxu0 0.0
        %1577 = vmatpush1.xpose.msra.mxu0 0.0
        %1578 = vmatprep.subr.mxu0 0.0
        %1579 = vmatpush1.xpose.msra.mxu0 0.0
        %1580 = vmatprep.subr.mxu0 0.0
        %1581 = vmatpush1.xpose.msra.mxu0 0.0
        %1582 = vmatprep.subr.mxu0 0.0
        %1583 = vmatpush1.xpose.msra.mxu0 0.0
        %1584 = vmatprep.subr.mxu0 0.0
        %1585 = vmatpush1.xpose.msra.mxu0 0.0
        %1586 = vmatprep.subr.mxu0 0.0
        %1587 = vmatpush1.xpose.msra.mxu0 0.0
        %1588 = vmatprep.subr.mxu0 0.0
        %1589 = vmatpush1.xpose.msra.mxu0 0.0
        %1590 = vmatprep.subr.mxu0 0.0
        %1591 = vmatpush1.xpose.msra.mxu0 0.0
        %1592 = vmatprep.subr.mxu0 0.0
        %1593 = vmatpush1.xpose.msra.mxu0 0.0
        %1594 = vmatprep.subr.mxu0 0.0
        %1595 = vmatpush1.xpose.msra.mxu0 0.0
        %1596 = vmatprep.subr.mxu0 0.0
        %1597 = vmatpush1.xpose.msra.mxu0 0.0
        %1598 = vmatprep.subr.mxu0 0.0
        %1599 = vmatpush1.xpose.msra.mxu0 0.0
        %1600 = vmatprep.subr.mxu0 0.0
        %1601 = vmatpush1.xpose.msra.mxu0 0.0
        %1602 = vmatprep.subr.mxu0 0.0
        %1603 = vmatpush1.xpose.msra.mxu0 0.0
        %1604 = vmatprep.subr.mxu0 0.0
        %1605 = vmatpush1.xpose.msra.mxu0 0.0
        %1606 = vmatprep.subr.mxu0 0.0
        %1607 = vmatpush1.xpose.msra.mxu0 0.0
        %1608 = vmatprep.subr.mxu0 0.0
        %1609 = vmatpush1.xpose.msra.mxu0 0.0
        %1610 = vmatprep.subr.mxu0 0.0
        %1611 = vmatpush1.xpose.msra.mxu0 0.0
        %1612 = vmatprep.mubr.f32.mxu0 0.0
        %1613 = vmatmul.mubr.f32.gmra.mrb[0].mxu0 %v1218
        %v1614 = vpop.f32.mrb[0].mxu0
        %v1615 = vadd.f32 %v1219, %v1614
        %v1616 = vpop.f32.mrb[0].mxu0
        %1617 = vdwg.mxu0
        %v1618 = vsel %vm1297, %v1615, -inf
        %1619 = vmax.xlane.f32.xlu0 %v1618
        %v1620 = vpop.xlane.xlu0 %1619
        %v1621 = vsub.f32 %v1615, %v1620
        %v1622 = vmul.f32 %v1621, 1.442695
        %v1623 = vpow.pop %v1622
        %v1624 = vsel %vm1297, %v1623, 0.0
        %1625 = vadd.xlane.f32.xlu0 %v1624
        %v1626 = vpop.xlane.xlu0 %1625
        %v1627 = vrcp.pop %v1626
        %v1628 = vmul.f32 %v1623, %v1627
        %v1630 = vsel %vm1297, %v1628, 0
        %1632 = vmatprep.subr.mxu0 0.0
        %1633 = vmatpush1.msra.mxu0 %v1547
        %1634 = vmatprep.subr.mxu0 0.0
        %1635 = vmatpush1.msra.mxu0 0.0
        %1636 = vmatprep.subr.mxu0 0.0
        %1637 = vmatpush1.msra.mxu0 0.0
        %1638 = vmatprep.subr.mxu0 0.0
        %1639 = vmatpush1.msra.mxu0 0.0
        %1640 = vmatprep.subr.mxu0 0.0
        %1641 = vmatpush1.msra.mxu0 0.0
        %1642 = vmatprep.subr.mxu0 0.0
        %1643 = vmatpush1.msra.mxu0 0.0
        %1644 = vmatprep.subr.mxu0 0.0
        %1645 = vmatpush1.msra.mxu0 0.0
        %1646 = vmatprep.subr.mxu0 0.0
        %1647 = vmatpush1.msra.mxu0 0.0
        %1648 = vmatprep.subr.mxu0 0.0
        %1649 = vmatpush1.msra.mxu0 0.0
        %1650 = vmatprep.subr.mxu0 0.0
        %1651 = vmatpush1.msra.mxu0 0.0
        %1652 = vmatprep.subr.mxu0 0.0
        %1653 = vmatpush1.msra.mxu0 0.0
        %1654 = vmatprep.subr.mxu0 0.0
        %1655 = vmatpush1.msra.mxu0 0.0
        %1656 = vmatprep.subr.mxu0 0.0
        %1657 = vmatpush1.msra.mxu0 0.0
        %1658 = vmatprep.subr.mxu0 0.0
        %1659 = vmatpush1.msra.mxu0 0.0
        %1660 = vmatprep.subr.mxu0 0.0
        %1661 = vmatpush1.msra.mxu0 0.0
        %1662 = vmatprep.subr.mxu0 0.0
        %1663 = vmatpush1.msra.mxu0 0.0
        %1664 = vmatprep.subr.mxu0 0.0
        %1665 = vmatpush1.msra.mxu0 0.0
        %1666 = vmatprep.subr.mxu0 0.0
        %1667 = vmatpush1.msra.mxu0 0.0
        %1668 = vmatprep.subr.mxu0 0.0
        %1669 = vmatpush1.msra.mxu0 0.0
        %1670 = vmatprep.subr.mxu0 0.0
        %1671 = vmatpush1.msra.mxu0 0.0
        %1672 = vmatprep.subr.mxu0 0.0
        %1673 = vmatpush1.msra.mxu0 0.0
        %1674 = vmatprep.subr.mxu0 0.0
        %1675 = vmatpush1.msra.mxu0 0.0
        %1676 = vmatprep.subr.mxu0 0.0
        %1677 = vmatpush1.msra.mxu0 0.0
        %1678 = vmatprep.subr.mxu0 0.0
        %1679 = vmatpush1.msra.mxu0 0.0
        %1680 = vmatprep.subr.mxu0 0.0
        %1681 = vmatpush1.msra.mxu0 0.0
        %1682 = vmatprep.subr.mxu0 0.0
        %1683 = vmatpush1.msra.mxu0 0.0
        %1684 = vmatprep.subr.mxu0 0.0
        %1685 = vmatpush1.msra.mxu0 0.0
        %1686 = vmatprep.subr.mxu0 0.0
        %1687 = vmatpush1.msra.mxu0 0.0
        %1688 = vmatprep.subr.mxu0 0.0
        %1689 = vmatpush1.msra.mxu0 0.0
        %1690 = vmatprep.subr.mxu0 0.0
        %1691 = vmatpush1.msra.mxu0 0.0
        %1692 = vmatprep.subr.mxu0 0.0
        %1693 = vmatpush1.msra.mxu0 0.0
        %1694 = vmatprep.subr.mxu0 0.0
        %1695 = vmatpush1.msra.mxu0 0.0
        %1696 = vmatprep.mubr.f32.mxu0 0.0
        %1697 = vmatmul.mubr.f32.gmra.mrb[0].mxu0 %v1630
        %v1698 = vpop.f32.mrb[0].mxu0
        %v1699 = vadd.f32 0.0, %v1698
        %v1700 = vpop.f32.mrb[0].mxu0
        %1701 = vdwg.mxu0
        %v1702 = vadd.f32 %v1539, %v1699
        %v1703 = vlaneseq
        %v1704 = vshrl.u32 %v1703, 7
        %v1705 = vsub.s32 3, %v1704
        %v1706 = vrot.slane %v1220, %v1705
        %v1707 = vmul.f32 %v1146, %v1706
        %v1708 = vmul.f32 %v1215, %v1706
        %1709 = vmatprep.subr.mxu0 0.0
        %1710 = vmatpush1.xpose.msra.mxu0 %v1707
        %1711 = vmatprep.subr.mxu0 0.0
        %1712 = vmatpush1.xpose.msra.mxu0 0.0
        %1713 = vmatprep.subr.mxu0 0.0
        %1714 = vmatpush1.xpose.msra.mxu0 0.0
        %1715 = vmatprep.subr.mxu0 0.0
        %1716 = vmatpush1.xpose.msra.mxu0 0.0
        %1717 = vmatprep.subr.mxu0 0.0
        %1718 = vmatpush1.xpose.msra.mxu0 0.0
        %1719 = vmatprep.subr.mxu0 0.0
        %1720 = vmatpush1.xpose.msra.mxu0 0.0
        %1721 = vmatprep.subr.mxu0 0.0
        %1722 = vmatpush1.xpose.msra.mxu0 0.0
        %1723 = vmatprep.subr.mxu0 0.0
        %1724 = vmatpush1.xpose.msra.mxu0 0.0
        %1725 = vmatprep.subr.mxu0 0.0
        %1726 = vmatpush1.xpose.msra.mxu0 0.0
        %1727 = vmatprep.subr.mxu0 0.0
        %1728 = vmatpush1.xpose.msra.mxu0 0.0
        %1729 = vmatprep.subr.mxu0 0.0
        %1730 = vmatpush1.xpose.msra.mxu0 0.0
        %1731 = vmatprep.subr.mxu0 0.0
        %1732 = vmatpush1.xpose.msra.mxu0 0.0
        %1733 = vmatprep.subr.mxu0 0.0
        %1734 = vmatpush1.xpose.msra.mxu0 0.0
        %1735 = vmatprep.subr.mxu0 0.0
        %1736 = vmatpush1.xpose.msra.mxu0 0.0
        %1737 = vmatprep.subr.mxu0 0.0
        %1738 = vmatpush1.xpose.msra.mxu0 0.0
        %1739 = vmatprep.subr.mxu0 0.0
        %1740 = vmatpush1.xpose.msra.mxu0 0.0
        %1741 = vmatprep.subr.mxu0 0.0
        %1742 = vmatpush1.xpose.msra.mxu0 0.0
        %1743 = vmatprep.subr.mxu0 0.0
        %1744 = vmatpush1.xpose.msra.mxu0 0.0
        %1745 = vmatprep.subr.mxu0 0.0
        %1746 = vmatpush1.xpose.msra.mxu0 0.0
        %1747 = vmatprep.subr.mxu0 0.0
        %1748 = vmatpush1.xpose.msra.mxu0 0.0
        %1749 = vmatprep.subr.mxu0 0.0
        %1750 = vmatpush1.xpose.msra.mxu0 0.0
        %1751 = vmatprep.subr.mxu0 0.0
        %1752 = vmatpush1.xpose.msra.mxu0 0.0
        %1753 = vmatprep.subr.mxu0 0.0
        %1754 = vmatpush1.xpose.msra.mxu0 0.0
        %1755 = vmatprep.subr.mxu0 0.0
        %1756 = vmatpush1.xpose.msra.mxu0 0.0
        %1757 = vmatprep.subr.mxu0 0.0
        %1758 = vmatpush1.xpose.msra.mxu0 0.0
        %1759 = vmatprep.subr.mxu0 0.0
        %1760 = vmatpush1.xpose.msra.mxu0 0.0
        %1761 = vmatprep.subr.mxu0 0.0
        %1762 = vmatpush1.xpose.msra.mxu0 0.0
        %1763 = vmatprep.subr.mxu0 0.0
        %1764 = vmatpush1.xpose.msra.mxu0 0.0
        %1765 = vmatprep.subr.mxu0 0.0
        %1766 = vmatpush1.xpose.msra.mxu0 0.0
        %1767 = vmatprep.subr.mxu0 0.0
        %1768 = vmatpush1.xpose.msra.mxu0 0.0
        %1769 = vmatprep.subr.mxu0 0.0
        %1770 = vmatpush1.xpose.msra.mxu0 0.0
        %1771 = vmatprep.subr.mxu0 0.0
        %1772 = vmatpush1.xpose.msra.mxu0 0.0
        %1773 = vmatprep.mubr.f32.mxu0 0.0
        %1774 = vmatmul.mubr.f32.gmra.mrb[0].mxu0 %v1218
        %v1775 = vpop.f32.mrb[0].mxu0
        %v1776 = vadd.f32 %v1219, %v1775
        %v1777 = vpop.f32.mrb[0].mxu0
        %1778 = vdwg.mxu0
        %v1779 = vsel %vm1297, %v1776, -inf
        %1780 = vmax.xlane.f32.xlu0 %v1779
        %v1781 = vpop.xlane.xlu0 %1780
        %v1782 = vsub.f32 %v1776, %v1781
        %v1783 = vmul.f32 %v1782, 1.442695
        %v1784 = vpow.pop %v1783
        %v1785 = vsel %vm1297, %v1784, 0.0
        %1786 = vadd.xlane.f32.xlu0 %v1785
        %v1787 = vpop.xlane.xlu0 %1786
        %v1788 = vrcp.pop %v1787
        %v1789 = vmul.f32 %v1784, %v1788
        %v1791 = vsel %vm1297, %v1789, 0
        %1793 = vmatprep.subr.mxu0 0.0
        %1794 = vmatpush1.msra.mxu0 %v1708
        %1795 = vmatprep.subr.mxu0 0.0
        %1796 = vmatpush1.msra.mxu0 0.0
        %1797 = vmatprep.subr.mxu0 0.0
        %1798 = vmatpush1.msra.mxu0 0.0
        %1799 = vmatprep.subr.mxu0 0.0
        %1800 = vmatpush1.msra.mxu0 0.0
        %1801 = vmatprep.subr.mxu0 0.0
        %1802 = vmatpush1.msra.mxu0 0.0
        %1803 = vmatprep.subr.mxu0 0.0
        %1804 = vmatpush1.msra.mxu0 0.0
        %1805 = vmatprep.subr.mxu0 0.0
        %1806 = vmatpush1.msra.mxu0 0.0
        %1807 = vmatprep.subr.mxu0 0.0
        %1808 = vmatpush1.msra.mxu0 0.0
        %1809 = vmatprep.subr.mxu0 0.0
        %1810 = vmatpush1.msra.mxu0 0.0
        %1811 = vmatprep.subr.mxu0 0.0
        %1812 = vmatpush1.msra.mxu0 0.0
        %1813 = vmatprep.subr.mxu0 0.0
        %1814 = vmatpush1.msra.mxu0 0.0
        %1815 = vmatprep.subr.mxu0 0.0
        %1816 = vmatpush1.msra.mxu0 0.0
        %1817 = vmatprep.subr.mxu0 0.0
        %1818 = vmatpush1.msra.mxu0 0.0
        %1819 = vmatprep.subr.mxu0 0.0
        %1820 = vmatpush1.msra.mxu0 0.0
        %1821 = vmatprep.subr.mxu0 0.0
        %1822 = vmatpush1.msra.mxu0 0.0
        %1823 = vmatprep.subr.mxu0 0.0
        %1824 = vmatpush1.msra.mxu0 0.0
        %1825 = vmatprep.subr.mxu0 0.0
        %1826 = vmatpush1.msra.mxu0 0.0
        %1827 = vmatprep.subr.mxu0 0.0
        %1828 = vmatpush1.msra.mxu0 0.0
        %1829 = vmatprep.subr.mxu0 0.0
        %1830 = vmatpush1.msra.mxu0 0.0
        %1831 = vmatprep.subr.mxu0 0.0
        %1832 = vmatpush1.msra.mxu0 0.0
        %1833 = vmatprep.subr.mxu0 0.0
        %1834 = vmatpush1.msra.mxu0 0.0
        %1835 = vmatprep.subr.mxu0 0.0
        %1836 = vmatpush1.msra.mxu0 0.0
        %1837 = vmatprep.subr.mxu0 0.0
        %1838 = vmatpush1.msra.mxu0 0.0
        %1839 = vmatprep.subr.mxu0 0.0
        %1840 = vmatpush1.msra.mxu0 0.0
        %1841 = vmatprep.subr.mxu0 0.0
        %1842 = vmatpush1.msra.mxu0 0.0
        %1843 = vmatprep.subr.mxu0 0.0
        %1844 = vmatpush1.msra.mxu0 0.0
        %1845 = vmatprep.subr.mxu0 0.0
        %1846 = vmatpush1.msra.mxu0 0.0
        %1847 = vmatprep.subr.mxu0 0.0
        %1848 = vmatpush1.msra.mxu0 0.0
        %1849 = vmatprep.subr.mxu0 0.0
        %1850 = vmatpush1.msra.mxu0 0.0
        %1851 = vmatprep.subr.mxu0 0.0
        %1852 = vmatpush1.msra.mxu0 0.0
        %1853 = vmatprep.subr.mxu0 0.0
        %1854 = vmatpush1.msra.mxu0 0.0
        %1855 = vmatprep.subr.mxu0 0.0
        %1856 = vmatpush1.msra.mxu0 0.0
        %1857 = vmatprep.mubr.f32.mxu0 0.0
        %1858 = vmatmul.mubr.f32.gmra.mrb[0].mxu0 %v1791
        %v1859 = vpop.f32.mrb[0].mxu0
        %v1860 = vadd.f32 0.0, %v1859
        %v1861 = vpop.f32.mrb[0].mxu0
        %1862 = vdwg.mxu0
        %v1863 = vadd.f32 %v1702, %v1860
        %v1864 = vld [vmem:[%s845] sm:$0xff]
        %v1865 = vld [vmem:[%s845 + $0x8] sm:$0xff]
        %v1866 = vld [vmem:[%s845 + $0x10] sm:$0xff]
        %v1867 = vld [vmem:[%s845 + $0x18] sm:$0xff]
        %v1868 = vld [vmem:[%s845 + $0x20] sm:$0xff]
        %v1869 = vld [vmem:[%s845 + $0x28] sm:$0xff]
        %v1870 = vld [vmem:[%s845 + $0x30] sm:$0xff]
        %v1871 = vld [vmem:[%s845 + $0x38] sm:$0xff]
        %v1872 = vld [vmem:[%s845 + $0x40] sm:$0xff]
        %v1873 = vld [vmem:[%s845 + $0x48] sm:$0xff]
        %v1874 = vld [vmem:[%s845 + $0x50] sm:$0xff]
        %v1875 = vld [vmem:[%s845 + $0x58] sm:$0xff]
        %v1876 = vld [vmem:[%s845 + $0x60] sm:$0xff]
        %v1877 = vld [vmem:[%s845 + $0x68] sm:$0xff]
        %v1878 = vld [vmem:[%s845 + $0x70] sm:$0xff]
        %v1879 = vld [vmem:[%s845 + $0x78] sm:$0xff]
        %v1880 = vld [vmem:[%s848] sm:$0x1]
        %v1882 = vlaneseq
        %v1883 = vshrl.u32 %v1882, 7
        %v1884 = vsub.s32 0, %v1883
        %v1885 = vrot.slane %v1880, %v1884
        %1887 = vmatprep.subr.mxu0 0.0
        %1888 = vmatpush1.msra.mxu0 %v1864
        %1889 = vmatprep.subr.mxu0 0.0
        %1890 = vmatpush1.msra.mxu0 %v1865
        %1891 = vmatprep.subr.mxu0 0.0
        %1892 = vmatpush1.msra.mxu0 %v1866
        %1893 = vmatprep.subr.mxu0 0.0
        %1894 = vmatpush1.msra.mxu0 %v1867
        %1895 = vmatprep.subr.mxu0 0.0
        %1896 = vmatpush1.msra.mxu0 %v1868
        %1897 = vmatprep.subr.mxu0 0.0
        %1898 = vmatpush1.msra.mxu0 %v1869
        %1899 = vmatprep.subr.mxu0 0.0
        %1900 = vmatpush1.msra.mxu0 %v1870
        %1901 = vmatprep.subr.mxu0 0.0
        %1902 = vmatpush1.msra.mxu0 %v1871
        %1903 = vmatprep.subr.mxu0 0.0
        %1904 = vmatpush1.msra.mxu0 %v1872
        %1905 = vmatprep.subr.mxu0 0.0
        %1906 = vmatpush1.msra.mxu0 %v1873
        %1907 = vmatprep.subr.mxu0 0.0
        %1908 = vmatpush1.msra.mxu0 %v1874
        %1909 = vmatprep.subr.mxu0 0.0
        %1910 = vmatpush1.msra.mxu0 %v1875
        %1911 = vmatprep.subr.mxu0 0.0
        %1912 = vmatpush1.msra.mxu0 %v1876
        %1913 = vmatprep.subr.mxu0 0.0
        %1914 = vmatpush1.msra.mxu0 %v1877
        %1915 = vmatprep.subr.mxu0 0.0
        %1916 = vmatpush1.msra.mxu0 %v1878
        %1917 = vmatprep.subr.mxu0 0.0
        %1918 = vmatpush1.msra.mxu0 %v1879
        %1919 = vmatprep.subr.mxu0 0.0
        %1920 = vmatpush1.msra.mxu0 0.0
        %1921 = vmatprep.subr.mxu0 0.0
        %1922 = vmatpush1.msra.mxu0 0.0
        %1923 = vmatprep.subr.mxu0 0.0
        %1924 = vmatpush1.msra.mxu0 0.0
        %1925 = vmatprep.subr.mxu0 0.0
        %1926 = vmatpush1.msra.mxu0 0.0
        %1927 = vmatprep.subr.mxu0 0.0
        %1928 = vmatpush1.msra.mxu0 0.0
        %1929 = vmatprep.subr.mxu0 0.0
        %1930 = vmatpush1.msra.mxu0 0.0
        %1931 = vmatprep.subr.mxu0 0.0
        %1932 = vmatpush1.msra.mxu0 0.0
        %1933 = vmatprep.subr.mxu0 0.0
        %1934 = vmatpush1.msra.mxu0 0.0
        %1935 = vmatprep.subr.mxu0 0.0
        %1936 = vmatpush1.msra.mxu0 0.0
        %1937 = vmatprep.subr.mxu0 0.0
        %1938 = vmatpush1.msra.mxu0 0.0
        %1939 = vmatprep.subr.mxu0 0.0
        %1940 = vmatpush1.msra.mxu0 0.0
        %1941 = vmatprep.subr.mxu0 0.0
        %1942 = vmatpush1.msra.mxu0 0.0
        %1943 = vmatprep.subr.mxu0 0.0
        %1944 = vmatpush1.msra.mxu0 0.0
        %1945 = vmatprep.subr.mxu0 0.0
        %1946 = vmatpush1.msra.mxu0 0.0
        %1947 = vmatprep.subr.mxu0 0.0
        %1948 = vmatpush1.msra.mxu0 0.0
        %1949 = vmatprep.subr.mxu0 0.0
        %1950 = vmatpush1.msra.mxu0 0.0
        %1951 = vmatprep.mubr.f32.mxu0 0.0
        %1952 = vmatmul.mubr.f32.gmra.mrb[0].mxu0 %v1863
        %v1953 = vpop.f32.mrb[0].mxu0
        %v1954 = vadd.f32 %v1885, %v1953
        %v1955 = vpop.f32.mrb[0].mxu0
        %1956 = vdwg.mxu0
        %v1957 = vadd.f32 %v981, %v1954
        %v1958 = vld [vmem:[%s851] sm:$0x1]
        %v1959 = vld [vmem:[%s854] sm:$0x1]
        %1960 = vadd.xlane.f32.xlu0 %v1957
        %v1961 = vpop.xlane.xlu0 %1960
        %v1962 = vmul.f32 %v1957, %v1957
        %1963 = vadd.xlane.f32.xlu0 %v1962
        %v1964 = vpop.xlane.xlu0 %1963
        %v1965 = vmul.f32 %v1961, %v989
        %v1966 = vmul.f32 %v1964, %v989
        %v1967 = vmul.f32 %v1965, %v1965
        %v1968 = vsub.f32 %v1966, %v1967
        %v1969 = vsub.f32 %v1957, %v1965
        %v1970 = vadd.f32 %v1968, 1e-06
        %v1971 = vrsqrt.pop %v1970
        %v1972 = vmul.f32 %v1969, %v1971
        %v1974 = vlaneseq
        %v1975 = vshrl.u32 %v1974, 7
        %v1976 = vsub.s32 0, %v1975
        %v1977 = vrot.slane %v1958, %v1976
        %v1979 = vmul.f32 %v1972, %v1977
        %v1981 = vlaneseq
        %v1982 = vshrl.u32 %v1981, 7
        %v1983 = vsub.s32 0, %v1982
        %v1984 = vrot.slane %v1959, %v1983
        %v1986 = vadd.f32 %v1979, %v1984
        %v1987 = vld [vmem:[%s859] sm:$0xff]
        %v1988 = vld [vmem:[%s859 + $0x8] sm:$0xff]
        %v1989 = vld [vmem:[%s859 + $0x10] sm:$0xff]
        %v1990 = vld [vmem:[%s859 + $0x18] sm:$0xff]
        %v1991 = vld [vmem:[%s859 + $0x20] sm:$0xff]
        %v1992 = vld [vmem:[%s859 + $0x28] sm:$0xff]
        %v1993 = vld [vmem:[%s859 + $0x30] sm:$0xff]
        %v1994 = vld [vmem:[%s859 + $0x38] sm:$0xff]
        %v1995 = vld [vmem:[%s859 + $0x40] sm:$0xff]
        %v1996 = vld [vmem:[%s859 + $0x48] sm:$0xff]
        %v1997 = vld [vmem:[%s859 + $0x50] sm:$0xff]
        %v1998 = vld [vmem:[%s859 + $0x58] sm:$0xff]
        %v1999 = vld [vmem:[%s859 + $0x60] sm:$0xff]
        %v2000 = vld [vmem:[%s859 + $0x68] sm:$0xff]
        %v2001 = vld [vmem:[%s859 + $0x70] sm:$0xff]
        %v2002 = vld [vmem:[%s859 + $0x78] sm:$0xff]
        %v2003 = vld [vmem:[%s862] sm:$0x1]
        %v2005 = vlaneseq
        %v2006 = vshrl.u32 %v2005, 7
        %v2007 = vsub.s32 0, %v2006
        %v2008 = vrot.slane %v2003, %v2007
        %2010 = vmatprep.subr.mxu0 0.0
        %2011 = vmatpush1.msra.mxu0 %v1987
        %2012 = vmatprep.subr.mxu0 0.0
        %2013 = vmatpush1.msra.mxu0 %v1988
        %2014 = vmatprep.subr.mxu0 0.0
        %2015 = vmatpush1.msra.mxu0 %v1989
        %2016 = vmatprep.subr.mxu0 0.0
        %2017 = vmatpush1.msra.mxu0 %v1990
        %2018 = vmatprep.subr.mxu0 0.0
        %2019 = vmatpush1.msra.mxu0 %v1991
        %2020 = vmatprep.subr.mxu0 0.0
        %2021 = vmatpush1.msra.mxu0 %v1992
        %2022 = vmatprep.subr.mxu0 0.0
        %2023 = vmatpush1.msra.mxu0 %v1993
        %2024 = vmatprep.subr.mxu0 0.0
        %2025 = vmatpush1.msra.mxu0 %v1994
        %2026 = vmatprep.subr.mxu0 0.0
        %2027 = vmatpush1.msra.mxu0 %v1995
        %2028 = vmatprep.subr.mxu0 0.0
        %2029 = vmatpush1.msra.mxu0 %v1996
        %2030 = vmatprep.subr.mxu0 0.0
        %2031 = vmatpush1.msra.mxu0 %v1997
        %2032 = vmatprep.subr.mxu0 0.0
        %2033 = vmatpush1.msra.mxu0 %v1998
        %2034 = vmatprep.subr.mxu0 0.0
        %2035 = vmatpush1.msra.mxu0 %v1999
        %2036 = vmatprep.subr.mxu0 0.0
        %2037 = vmatpush1.msra.mxu0 %v2000
        %2038 = vmatprep.subr.mxu0 0.0
        %2039 = vmatpush1.msra.mxu0 %v2001
        %2040 = vmatprep.subr.mxu0 0.0
        %2041 = vmatpush1.msra.mxu0 %v2002
        %2042 = vmatprep.subr.mxu0 0.0
        %2043 = vmatpush1.msra.mxu0 0.0
        %2044 = vmatprep.subr.mxu0 0.0
        %2045 = vmatpush1.msra.mxu0 0.0
        %2046 = vmatprep.subr.mxu0 0.0
        %2047 = vmatpush1.msra.mxu0 0.0
        %2048 = vmatprep.subr.mxu0 0.0
        %2049 = vmatpush1.msra.mxu0 0.0
        %2050 = vmatprep.subr.mxu0 0.0
        %2051 = vmatpush1.msra.mxu0 0.0
        %2052 = vmatprep.subr.mxu0 0.0
        %2053 = vmatpush1.msra.mxu0 0.0
        %2054 = vmatprep.subr.mxu0 0.0
        %2055 = vmatpush1.msra.mxu0 0.0
        %2056 = vmatprep.subr.mxu0 0.0
        %2057 = vmatpush1.msra.mxu0 0.0
        %2058 = vmatprep.subr.mxu0 0.0
        %2059 = vmatpush1.msra.mxu0 0.0
        %2060 = vmatprep.subr.mxu0 0.0
        %2061 = vmatpush1.msra.mxu0 0.0
        %2062 = vmatprep.subr.mxu0 0.0
        %2063 = vmatpush1.msra.mxu0 0.0
        %2064 = vmatprep.subr.mxu0 0.0
        %2065 = vmatpush1.msra.mxu0 0.0
        %2066 = vmatprep.subr.mxu0 0.0
        %2067 = vmatpush1.msra.mxu0 0.0
        %2068 = vmatprep.subr.mxu0 0.0
        %2069 = vmatpush1.msra.mxu0 0.0
        %2070 = vmatprep.subr.mxu0 0.0
        %2071 = vmatpush1.msra.mxu0 0.0
        %2072 = vmatprep.subr.mxu0 0.0
        %2073 = vmatpush1.msra.mxu0 0.0
        %2074 = vmatprep.mubr.f32.mxu0 0.0
        %2075 = vmatmul.mubr.f32.gmra.mrb[0].mxu0 %v1986
        %v2076 = vpop.f32.mrb[0].mxu0
        %v2077 = vadd.f32 %v2008, %v2076
        %v2078 = vpop.f32.mrb[0].mxu0
        %2079 = vdwg.mxu0
        %v2080 = vmul.f32 %v2077, 0.5
        %v2081 = vmul.f32 %v2077, 0.044715
        %v2082 = vmul.f32 %v2081, %v2077
        %v2083 = vmul.f32 %v2082, %v2077
        %v2084 = vadd.f32 %v2077, %v2083
        %v2085 = vmul.f32 %v2084, 0.7978846
        %v2086 = vtanh.pop %v2085
        %v2087 = vadd.f32 %v2086, 1.0
        %v2088 = vmul.f32 %v2080, %v2087
        %v2089 = vld [vmem:[%s867] sm:$0xff]
        %v2090 = vld [vmem:[%s867 + $0x8] sm:$0xff]
        %v2091 = vld [vmem:[%s867 + $0x10] sm:$0xff]
        %v2092 = vld [vmem:[%s867 + $0x18] sm:$0xff]
        %v2093 = vld [vmem:[%s867 + $0x20] sm:$0xff]
        %v2094 = vld [vmem:[%s867 + $0x28] sm:$0xff]
        %v2095 = vld [vmem:[%s867 + $0x30] sm:$0xff]
        %v2096 = vld [vmem:[%s867 + $0x38] sm:$0xff]
        %v2097 = vld [vmem:[%s867 + $0x40] sm:$0xff]
        %v2098 = vld [vmem:[%s867 + $0x48] sm:$0xff]
        %v2099 = vld [vmem:[%s867 + $0x50] sm:$0xff]
        %v2100 = vld [vmem:[%s867 + $0x58] sm:$0xff]
        %v2101 = vld [vmem:[%s867 + $0x60] sm:$0xff]
        %v2102 = vld [vmem:[%s867 + $0x68] sm:$0xff]
        %v2103 = vld [vmem:[%s867 + $0x70] sm:$0xff]
        %v2104 = vld [vmem:[%s867 + $0x78] sm:$0xff]
        %v2105 = vld [vmem:[%s870] sm:$0x1]
        %v2107 = vlaneseq
        %v2108 = vshrl.u32 %v2107, 7
        %v2109 = vsub.s32 0, %v2108
        %v2110 = vrot.slane %v2105, %v2109
        %2112 = vmatprep.subr.mxu0 0.0
        %2113 = vmatpush1.msra.mxu0 %v2089
        %2114 = vmatprep.subr.mxu0 0.0
        %2115 = vmatpush1.msra.mxu0 %v2090
        %2116 = vmatprep.subr.mxu0 0.0
        %2117 = vmatpush1.msra.mxu0 %v2091
        %2118 = vmatprep.subr.mxu0 0.0
        %2119 = vmatpush1.msra.mxu0 %v2092
        %2120 = vmatprep.subr.mxu0 0.0
        %2121 = vmatpush1.msra.mxu0 %v2093
        %2122 = vmatprep.subr.mxu0 0.0
        %2123 = vmatpush1.msra.mxu0 %v2094
        %2124 = vmatprep.subr.mxu0 0.0
        %2125 = vmatpush1.msra.mxu0 %v2095
        %2126 = vmatprep.subr.mxu0 0.0
        %2127 = vmatpush1.msra.mxu0 %v2096
        %2128 = vmatprep.subr.mxu0 0.0
        %2129 = vmatpush1.msra.mxu0 %v2097
        %2130 = vmatprep.subr.mxu0 0.0
        %2131 = vmatpush1.msra.mxu0 %v2098
        %2132 = vmatprep.subr.mxu0 0.0
        %2133 = vmatpush1.msra.mxu0 %v2099
        %2134 = vmatprep.subr.mxu0 0.0
        %2135 = vmatpush1.msra.mxu0 %v2100
        %2136 = vmatprep.subr.mxu0 0.0
        %2137 = vmatpush1.msra.mxu0 %v2101
        %2138 = vmatprep.subr.mxu0 0.0
        %2139 = vmatpush1.msra.mxu0 %v2102
        %2140 = vmatprep.subr.mxu0 0.0
        %2141 = vmatpush1.msra.mxu0 %v2103
        %2142 = vmatprep.subr.mxu0 0.0
        %2143 = vmatpush1.msra.mxu0 %v2104
        %2144 = vmatprep.subr.mxu0 0.0
        %2145 = vmatpush1.msra.mxu0 0.0
        %2146 = vmatprep.subr.mxu0 0.0
        %2147 = vmatpush1.msra.mxu0 0.0
        %2148 = vmatprep.subr.mxu0 0.0
        %2149 = vmatpush1.msra.mxu0 0.0
        %2150 = vmatprep.subr.mxu0 0.0
        %2151 = vmatpush1.msra.mxu0 0.0
        %2152 = vmatprep.subr.mxu0 0.0
        %2153 = vmatpush1.msra.mxu0 0.0
        %2154 = vmatprep.subr.mxu0 0.0
        %2155 = vmatpush1.msra.mxu0 0.0
        %2156 = vmatprep.subr.mxu0 0.0
        %2157 = vmatpush1.msra.mxu0 0.0
        %2158 = vmatprep.subr.mxu0 0.0
        %2159 = vmatpush1.msra.mxu0 0.0
        %2160 = vmatprep.subr.mxu0 0.0
        %2161 = vmatpush1.msra.mxu0 0.0
        %2162 = vmatprep.subr.mxu0 0.0
        %2163 = vmatpush1.msra.mxu0 0.0
        %2164 = vmatprep.subr.mxu0 0.0
        %2165 = vmatpush1.msra.mxu0 0.0
        %2166 = vmatprep.subr.mxu0 0.0
        %2167 = vmatpush1.msra.mxu0 0.0
        %2168 = vmatprep.subr.mxu0 0.0
        %2169 = vmatpush1.msra.mxu0 0.0
        %2170 = vmatprep.subr.mxu0 0.0
        %2171 = vmatpush1.msra.mxu0 0.0
        %2172 = vmatprep.subr.mxu0 0.0
        %2173 = vmatpush1.msra.mxu0 0.0
        %2174 = vmatprep.subr.mxu0 0.0
        %2175 = vmatpush1.msra.mxu0 0.0
        %2176 = vmatprep.mubr.f32.mxu0 0.0
        %2177 = vmatmul.mubr.f32.gmra.mrb[0].mxu0 %v2088
        %v2178 = vpop.f32.mrb[0].mxu0
        %v2179 = vadd.f32 %v2110, %v2178
        %v2180 = vpop.f32.mrb[0].mxu0
        %2181 = vdwg.mxu0
        %v2182 = vadd.f32 %v1957, %v2179
        %2183 = vst [vmem:[#allocation2] sm:$0xff] %v2182
        %p2184 = scmp.eq.s32.totalorder %s37, 1
        // Predicated region
        $region113: #{siglip_vision_forward.1} parent=107 // pred_check
          %p2185 = pneg %p2184
        $region114: #{siglip_vision_forward.1} parent=107 // pred_check_branch
          %2187 = sbr.rel (%p2185) target = $region116
        $region115: #{siglip_vision_forward.1} parent=107 // pred_region
          %v2188 = vld [vmem:[%s18] sm:$0x1]
          %v2189 = vld [vmem:[%s19] sm:$0x1]
          %2190 = vadd.xlane.f32.xlu0 %v2182
          %v2191 = vpop.xlane.xlu0 %2190
          %v2192 = vmul.f32 %v2182, %v2182
          %2193 = vadd.xlane.f32.xlu0 %v2192
          %v2194 = vpop.xlane.xlu0 %2193
          %v2195 = vmul.f32 %v2191, %v989
          %v2196 = vmul.f32 %v2194, %v989
          %v2197 = vmul.f32 %v2195, %v2195
          %v2198 = vsub.f32 %v2196, %v2197
          %v2199 = vsub.f32 %v2182, %v2195
          %v2200 = vadd.f32 %v2198, 1e-06
          %v2201 = vrsqrt.pop %v2200
          %v2202 = vmul.f32 %v2199, %v2201
          %v2204 = vlaneseq
          %v2205 = vshrl.u32 %v2204, 7
          %v2206 = vsub.s32 0, %v2205
          %v2207 = vrot.slane %v2188, %v2206
          %v2209 = vmul.f32 %v2202, %v2207
          %v2211 = vlaneseq
          %v2212 = vshrl.u32 %v2211, 7
          %v2213 = vsub.s32 0, %v2212
          %v2214 = vrot.slane %v2189, %v2213
          %v2216 = vadd.f32 %v2209, %v2214
          %2217 = vst [vmem:[#allocation3] sm:$0xff] %v2216
          %v2218 = vld [vmem:[%s4] sm:$0x3]
          %v2220 = vsel %vm1297, %v2218, 0
          %2222 = vmatprep.subr.mxu0 0.0
          %2223 = vmatpush1.msra.mxu0 %v2216
          %2224 = vmatprep.subr.mxu0 0.0
          %2225 = vmatpush1.msra.mxu0 0.0
          %2226 = vmatprep.subr.mxu0 0.0
          %2227 = vmatpush1.msra.mxu0 0.0
          %2228 = vmatprep.subr.mxu0 0.0
          %2229 = vmatpush1.msra.mxu0 0.0
          %2230 = vmatprep.subr.mxu0 0.0
          %2231 = vmatpush1.msra.mxu0 0.0
          %2232 = vmatprep.subr.mxu0 0.0
          %2233 = vmatpush1.msra.mxu0 0.0
          %2234 = vmatprep.subr.mxu0 0.0
          %2235 = vmatpush1.msra.mxu0 0.0
          %2236 = vmatprep.subr.mxu0 0.0
          %2237 = vmatpush1.msra.mxu0 0.0
          %2238 = vmatprep.subr.mxu0 0.0
          %2239 = vmatpush1.msra.mxu0 0.0
          %2240 = vmatprep.subr.mxu0 0.0
          %2241 = vmatpush1.msra.mxu0 0.0
          %2242 = vmatprep.subr.mxu0 0.0
          %2243 = vmatpush1.msra.mxu0 0.0
          %2244 = vmatprep.subr.mxu0 0.0
          %2245 = vmatpush1.msra.mxu0 0.0
          %2246 = vmatprep.subr.mxu0 0.0
          %2247 = vmatpush1.msra.mxu0 0.0
          %2248 = vmatprep.subr.mxu0 0.0
          %2249 = vmatpush1.msra.mxu0 0.0
          %2250 = vmatprep.subr.mxu0 0.0
          %2251 = vmatpush1.msra.mxu0 0.0
          %2252 = vmatprep.subr.mxu0 0.0
          %2253 = vmatpush1.msra.mxu0 0.0
          %2254 = vmatprep.subr.mxu0 0.0
          %2255 = vmatpush1.msra.mxu0 0.0
          %2256 = vmatprep.subr.mxu0 0.0
          %2257 = vmatpush1.msra.mxu0 0.0
          %2258 = vmatprep.subr.mxu0 0.0
          %2259 = vmatpush1.msra.mxu0 0.0
          %2260 = vmatprep.subr.mxu0 0.0
          %2261 = vmatpush1.msra.mxu0 0.0
          %2262 = vmatprep.subr.mxu0 0.0
          %2263 = vmatpush1.msra.mxu0 0.0
          %2264 = vmatprep.subr.mxu0 0.0
          %2265 = vmatpush1.msra.mxu0 0.0
          %2266 = vmatprep.subr.mxu0 0.0
          %2267 = vmatpush1.msra.mxu0 0.0
          %2268 = vmatprep.subr.mxu0 0.0
          %2269 = vmatpush1.msra.mxu0 0.0
          %2270 = vmatprep.subr.mxu0 0.0
          %2271 = vmatpush1.msra.mxu0 0.0
          %2272 = vmatprep.subr.mxu0 0.0
          %2273 = vmatpush1.msra.mxu0 0.0
          %2274 = vmatprep.subr.mxu0 0.0
          %2275 = vmatpush1.msra.mxu0 0.0
          %2276 = vmatprep.subr.mxu0 0.0
          %2277 = vmatpush1.msra.mxu0 0.0
          %2278 = vmatprep.subr.mxu0 0.0
          %2279 = vmatpush1.msra.mxu0 0.0
          %2280 = vmatprep.subr.mxu0 0.0
          %2281 = vmatpush1.msra.mxu0 0.0
          %2282 = vmatprep.subr.mxu0 0.0
          %2283 = vmatpush1.msra.mxu0 0.0
          %2284 = vmatprep.subr.mxu0 0.0
          %2285 = vmatpush1.msra.mxu0 0.0
          %2286 = vmatprep.mubr.f32.mxu0 0.0
          %2287 = vmatmul.mubr.f32.gmra.mrb[0].mxu0 %v2220
          %v2288 = vpop.f32.mrb[0].mxu0
          %v2289 = vadd.f32 0.0, %v2288
          %v2290 = vpop.f32.mrb[0].mxu0
          %2291 = vdwg.mxu0
          %v2292 = vld [vmem:[%s20] sm:$0xff]
          %v2293 = vld [vmem:[%s20 + $0x8] sm:$0xff]
          %v2294 = vld [vmem:[%s20 + $0x10] sm:$0xff]
          %v2295 = vld [vmem:[%s20 + $0x18] sm:$0xff]
          %v2296 = vld [vmem:[%s20 + $0x20] sm:$0xff]
          %v2297 = vld [vmem:[%s20 + $0x28] sm:$0xff]
          %v2298 = vld [vmem:[%s20 + $0x30] sm:$0xff]
          %v2299 = vld [vmem:[%s20 + $0x38] sm:$0xff]
          %v2300 = vld [vmem:[%s20 + $0x40] sm:$0xff]
          %v2301 = vld [vmem:[%s20 + $0x48] sm:$0xff]
          %v2302 = vld [vmem:[%s20 + $0x50] sm:$0xff]
          %v2303 = vld [vmem:[%s20 + $0x58] sm:$0xff]
          %v2304 = vld [vmem:[%s20 + $0x60] sm:$0xff]
          %v2305 = vld [vmem:[%s20 + $0x68] sm:$0xff]
          %v2306 = vld [vmem:[%s20 + $0x70] sm:$0xff]
          %v2307 = vld [vmem:[%s20 + $0x78] sm:$0xff]
          %v2308 = vld [vmem:[%s21] sm:$0x1]
          %v2310 = vlaneseq
          %v2311 = vshrl.u32 %v2310, 7
          %v2312 = vsub.s32 0, %v2311
          %v2313 = vrot.slane %v2308, %v2312
          %2315 = vmatprep.subr.mxu0 0.0
          %2316 = vmatpush1.msra.mxu0 %v2292
          %2317 = vmatprep.subr.mxu0 0.0
          %2318 = vmatpush1.msra.mxu0 %v2293
          %2319 = vmatprep.subr.mxu0 0.0
          %2320 = vmatpush1.msra.mxu0 %v2294
          %2321 = vmatprep.subr.mxu0 0.0
          %2322 = vmatpush1.msra.mxu0 %v2295
          %2323 = vmatprep.subr.mxu0 0.0
          %2324 = vmatpush1.msra.mxu0 %v2296
          %2325 = vmatprep.subr.mxu0 0.0
          %2326 = vmatpush1.msra.mxu0 %v2297
          %2327 = vmatprep.subr.mxu0 0.0
          %2328 = vmatpush1.msra.mxu0 %v2298
          %2329 = vmatprep.subr.mxu0 0.0
          %2330 = vmatpush1.msra.mxu0 %v2299
          %2331 = vmatprep.subr.mxu0 0.0
          %2332 = vmatpush1.msra.mxu0 %v2300
          %2333 = vmatprep.subr.mxu0 0.0
          %2334 = vmatpush1.msra.mxu0 %v2301
          %2335 = vmatprep.subr.mxu0 0.0
          %2336 = vmatpush1.msra.mxu0 %v2302
          %2337 = vmatprep.subr.mxu0 0.0
          %2338 = vmatpush1.msra.mxu0 %v2303
          %2339 = vmatprep.subr.mxu0 0.0
          %2340 = vmatpush1.msra.mxu0 %v2304
          %2341 = vmatprep.subr.mxu0 0.0
          %2342 = vmatpush1.msra.mxu0 %v2305
          %2343 = vmatprep.subr.mxu0 0.0
          %2344 = vmatpush1.msra.mxu0 %v2306
          %2345 = vmatprep.subr.mxu0 0.0
          %2346 = vmatpush1.msra.mxu0 %v2307
          %2347 = vmatprep.subr.mxu0 0.0
          %2348 = vmatpush1.msra.mxu0 0.0
          %2349 = vmatprep.subr.mxu0 0.0
          %2350 = vmatpush1.msra.mxu0 0.0
          %2351 = vmatprep.subr.mxu0 0.0
          %2352 = vmatpush1.msra.mxu0 0.0
          %2353 = vmatprep.subr.mxu0 0.0
          %2354 = vmatpush1.msra.mxu0 0.0
          %2355 = vmatprep.subr.mxu0 0.0
          %2356 = vmatpush1.msra.mxu0 0.0
          %2357 = vmatprep.subr.mxu0 0.0
          %2358 = vmatpush1.msra.mxu0 0.0
          %2359 = vmatprep.subr.mxu0 0.0
          %2360 = vmatpush1.msra.mxu0 0.0
          %2361 = vmatprep.subr.mxu0 0.0
          %2362 = vmatpush1.msra.mxu0 0.0
          %2363 = vmatprep.subr.mxu0 0.0
          %2364 = vmatpush1.msra.mxu0 0.0
          %2365 = vmatprep.subr.mxu0 0.0
          %2366 = vmatpush1.msra.mxu0 0.0
          %2367 = vmatprep.subr.mxu0 0.0
          %2368 = vmatpush1.msra.mxu0 0.0
          %2369 = vmatprep.subr.mxu0 0.0
          %2370 = vmatpush1.msra.mxu0 0.0
          %2371 = vmatprep.subr.mxu0 0.0
          %2372 = vmatpush1.msra.mxu0 0.0
          %2373 = vmatprep.subr.mxu0 0.0
          %2374 = vmatpush1.msra.mxu0 0.0
          %2375 = vmatprep.subr.mxu0 0.0
          %2376 = vmatpush1.msra.mxu0 0.0
          %2377 = vmatprep.subr.mxu0 0.0
          %2378 = vmatpush1.msra.mxu0 0.0
          %2379 = vmatprep.mubr.f32.mxu0 0.0
          %2380 = vmatmul.mubr.f32.gmra.mrb[0].mxu0 %v2289
          %v2381 = vpop.f32.mrb[0].mxu0
          %v2382 = vadd.f32 %v2313, %v2381
          %v2383 = vpop.f32.mrb[0].mxu0
          %2384 = vdwg.mxu0
          %v2385 = vtanh.pop %v2382
          %2386 = vst [vmem:[#allocation5] sm:$0x3] %v2385
        $region116: #{siglip_vision_forward.1} parent=107 // pred_fallthru
          _
        // Predicated region
        $region117: #{siglip_vision_forward.1} parent=107 // pred_check
          %p2387 = pneg %p572
        $region118: #{siglip_vision_forward.1} parent=107 // pred_check_branch
          %2389 = sbr.rel (%p2387) target = $region120
        $region119: #{siglip_vision_forward.1} parent=107 // pred_region
          %s2391 = ssub.s32 128, 128
          %2392 = vsyncadd [#allocation4], %s2391
          %s2394 = sshll.u32 [#allocation3], 4
          %s2395 = int_to_ptr.vmem [resolvable:$true] %s2394
          %2397 = dma.vmem_to_hbm [thread:$0]  %s2395, 128, %s22, [#allocation4]
        $region120: #{siglip_vision_forward.1} parent=107 // pred_fallthru
          _
        // Predicated region
        $region121: #{siglip_vision_forward.1} parent=107 // pred_check
          %p2398 = pneg %p593
        $region122: #{siglip_vision_forward.1} parent=107 // pred_check_branch
          %2400 = sbr.rel (%p2398) target = $region124
        $region123: #{siglip_vision_forward.1} parent=107 // pred_region
          %s2402 = ssub.s32 32, 32
          %2403 = vsyncadd [#allocation6], %s2402
          %s2405 = sshll.u32 [#allocation5], 4
          %s2406 = int_to_ptr.vmem [resolvable:$true] %s2405
          %2408 = dma.vmem_to_hbm [thread:$0]  %s2406, 32, %s23, [#allocation6]
        $region124: #{siglip_vision_forward.1} parent=107 // pred_fallthru
          _
        // Predicated region
        $region125: #{siglip_vision_forward.1} parent=107 // pred_check
          %p2409 = pneg %p572
        $region126: #{siglip_vision_forward.1} parent=107 // pred_check_branch
          %2411 = sbr.rel (%p2409) target = $region128
        $region127: #{siglip_vision_forward.1} parent=107 // pred_region
          %2412 = dma.done [#allocation4], 128
        $region128: #{siglip_vision_forward.1} parent=107 // pred_fallthru
          _
        // Predicated region
        $region129: #{siglip_vision_forward.1} parent=107 // pred_check
          %p2413 = pneg %p593
        $region130: #{siglip_vision_forward.1} parent=107 // pred_check_branch
          %2415 = sbr.rel (%p2413) target = $region132
        $region131: #{siglip_vision_forward.1} parent=107 // pred_region
          %2416 = dma.done [#allocation6], 32
        $region132: #{siglip_vision_forward.1} parent=107 // pred_fallthru
          _
      $region108: #{siglip_vision_forward.1} parent=5 // pred_fallthru
        _
      %p2417 = scmp.le.s32.totalorder 2, %s32
      // Predicated region
      $region133: #{siglip_vision_forward.1} parent=5 // pred_check
        %p2418 = pneg %p2417
      $region134: #{siglip_vision_forward.1} parent=5 // pred_check_branch
        %2420 = sbr.rel (%p2418) target = $region136
      $region135: #{siglip_vision_forward.1} parent=5 // pred_region
        %s2421 = ssub.s32 %s32, 2
      $region136: #{siglip_vision_forward.1} parent=5 // pred_fallthru
        _
    $region6: #{siglip_vision_forward.1} parent=1 // loop_footer
      %s36 = sadd.s32 1, %s32
    $region7: #{siglip_vision_forward.1} parent=1 // loop_footer_branch
      %31 = sbr.rel target = $region3
    $region8: #{siglip_vision_forward.1} parent=1 // loop_exit
      _
    %2422 = vsyncpa [#allocation4], 1
    %s2423 = scalar_lea.sflag [#allocation4], 1
    %2424 = vsyncpa %s2423, 1
    %2425 = vsyncpa [#allocation6], 1

</llo_original>
